<compile_context>
chip_gen: v7x
topology: tpu7x:2x2x1
jax: 0.10.0
libtpu: 0.0.40
codegen_flags: <defaults>
</compile_context>

<pallas_src>
import jax
import jax.numpy as jnp
from jax.experimental import pallas as pl
from jax.experimental.pallas import tpu as pltpu

# ---- small-shape configuration (architecture dims scaled down) --------------
B = 2                         # batch
NUM_POINTS = 256              # num_points
NB_PRIM = 4                   # nb_primitives
P = NUM_POINTS // NB_PRIM     # points per primitive
BOTTLENECK = 32               # bottleneck_size (1024 in the paper)
FEAT = 64                     # PointNetfeat global-feature dim (1024 in paper)
C1, C2 = 16, 32               # PointNetfeat hidden dims (64, 128 in paper)
DIN = 2 + BOTTLENECK          # PointGenCon input channels
D1, D2, D3 = DIN, DIN // 2, DIN // 4
EPS = 1e-5


# ------------------------------ fused kernel ----------------------------------
def fused_kernel(x_ref, rg_ref,
                 ew1_ref, eb1_ref, ew2_ref, eb2_ref, ew3_ref, eb3_ref,
                 ewl_ref, ebl_ref,
                 dw1g_ref, dw1l_ref, db1_ref, dw2_ref, db2_ref,
                 dw3_ref, db3_ref, dw4_ref, db4_ref,
                 out_ref):
    """One grid step = one batch element.  Everything is channels-first (NCL):
    activations are (C, points) so the point axis (256 / 64) sits on lanes."""
    f32 = jnp.float32

    # ---------------- encoder (PointNetfeat, trans=False) ---------------------
    x = x_ref[...]                                                      # (3, N)
    h = jnp.maximum(
        jnp.dot(ew1_ref[...], x, preferred_element_type=f32) + eb1_ref[...], 0.0)
    h = jnp.maximum(
        jnp.dot(ew2_ref[...], h, preferred_element_type=f32) + eb2_ref[...], 0.0)
    h = jnp.dot(ew3_ref[...], h, preferred_element_type=f32) + eb3_ref[...]
    g = jnp.max(h, axis=1, keepdims=True)                               # (FEAT, 1) global max-pool
    latent = jnp.maximum(                                               # Linear + BN + ReLU
        jnp.dot(ewl_ref[...], g, preferred_element_type=f32) + ebl_ref[...], 0.0)  # (BOTTLENECK, 1)

    # ---------------- decoders (PointGenCon per primitive) --------------------
    pieces = []
    for i in range(NB_PRIM):                                            # unrolled, static i
        grid_i = rg_ref[i]                                              # (2, P)
        # conv1 on cat(grid, latent) == W_g @ grid + W_l @ latent (latent column
        # is identical for every point, so compute it once at width 1).
        lat_col = jnp.dot(dw1l_ref[i], latent, preferred_element_type=f32)      # (D1, 1)
        t = jnp.maximum(
            jnp.dot(dw1g_ref[i], grid_i, preferred_element_type=f32)
            + lat_col + db1_ref[i], 0.0)                                # (D1, P)
        t = jnp.maximum(
            jnp.dot(dw2_ref[i], t, preferred_element_type=f32) + db2_ref[i], 0.0)
        t = jnp.maximum(
            jnp.dot(dw3_ref[i], t, preferred_element_type=f32) + db3_ref[i], 0.0)
        pieces.append(2.0 * jnp.tanh(
            jnp.dot(dw4_ref[i], t, preferred_element_type=f32) + db4_ref[i]))   # (3, P)

    # torch.cat(outs, 2): primitive blocks laid out along the point axis.
    out_ref[...] = jnp.concatenate(pieces, axis=1)                      # (3, NUM_POINTS)


# ------------------------------ wrapper ----------------------------------------
def ae_atlasnet_forward(x_ncl, enc_params, dec_params, rand_grid):
    """x_ncl: (B, 3, NUM_POINTS)  (PyTorch NCL layout, used as-is).
    rand_grid: (B, NB_PRIM, 2, P) uniform samples (passed explicitly so the
    pure-JAX reference sees identical randomness)."""
    dw1, db1, dw2, db2, dw3, db3, dw4, db4 = dec_params
    dw1g, dw1l = dw1[:, :, :2], dw1[:, :, 2:]     # split conv1 weights: grid part / latent part

    operands = (x_ncl, rand_grid, *enc_params,
                dw1g, dw1l, db1, dw2, db2, dw3, db3, dw4, db4)

    def const_spec(a):                            # whole (small) weight array every step
        return pl.BlockSpec(a.shape, lambda b, nd=a.ndim: (0,) * nd)

    in_specs = [
        pl.BlockSpec((None, 3, NUM_POINTS), lambda b: (b, 0, 0)),       # x: one batch per step
        pl.BlockSpec((None, NB_PRIM, 2, P), lambda b: (b, 0, 0, 0)),    # rand_grid for that batch
    ] + [const_spec(a) for a in operands[2:]]

    return pl.pallas_call(
        fused_kernel,
        out_shape=jax.ShapeDtypeStruct((B, 3, NUM_POINTS), jnp.float32),
        grid=(B,),
        in_specs=in_specs,
        out_specs=pl.BlockSpec((None, 3, NUM_POINTS), lambda b: (b, 0, 0)),
        compiler_params=pltpu.CompilerParams(dimension_semantics=("parallel",)),
    )(*operands)


# ------------------------- deterministic parameter setup ----------------------
def conv_params(key, cin, cout):
    kw, kb = jax.random.split(key)
    w = jax.random.normal(kw, (cin, cout), jnp.float32) / jnp.sqrt(cin)
    b = 0.1 * jax.random.normal(kb, (1, cout), jnp.float32)
    return w, b


def bn_params(key, c):
    k1, k2, k3, k4 = jax.random.split(key, 4)
    gamma = 1.0 + 0.1 * jax.random.normal(k1, (c,), jnp.float32)
    beta = 0.1 * jax.random.normal(k2, (c,), jnp.float32)
    mean = 0.1 * jax.random.normal(k3, (c,), jnp.float32)
    var = (1.0 + 0.1 * jax.random.normal(k4, (c,), jnp.float32)) ** 2
    return gamma, beta, mean, var


def fold_bn(w, b, bn):
    gamma, beta, mean, var = bn
    scale = gamma / jnp.sqrt(var + EPS)
    return w * scale[None, :], (b - mean[None, :]) * scale[None, :] + beta[None, :]


def to_ncl(w, b):
    # (cin, cout), (1, cout)  ->  (cout, cin), (cout, 1)   (channels-first layout)
    return w.T, b.T


def make_decoder_params(key):
    ks = jax.random.split(key, 7)
    w1, b1 = to_ncl(*fold_bn(*conv_params(ks[0], DIN, D1), bn_params(ks[1], D1)))
    w2, b2 = to_ncl(*fold_bn(*conv_params(ks[2], D1, D2), bn_params(ks[3], D2)))
    w3, b3 = to_ncl(*fold_bn(*conv_params(ks[4], D2, D3), bn_params(ks[5], D3)))
    w4, b4 = to_ncl(*conv_params(ks[6], D3, 3))          # conv4 has no BatchNorm
    return w1, b1, w2, b2, w3, b3, w4, b4


# ----------------------------- pure-JAX reference ------------------------------
def reference_forward(x_ncl, enc_params, dec_params, rand_grid):
    ew1, eb1, ew2, eb2, ew3, eb3, ewl, ebl = enc_params
    h = jnp.maximum(jnp.einsum('oc,bcn->bon', ew1, x_ncl) + eb1[None], 0.0)
    h = jnp.maximum(jnp.einsum('oc,bcn->bon', ew2, h) + eb2[None], 0.0)
    h = jnp.einsum('oc,bcn->bon', ew3, h) + eb3[None]
    g = jnp.max(h, axis=-1)                                            # (B, FEAT)
    latent = jnp.maximum(jnp.einsum('oc,bc->bo', ewl, g) + ebl[:, 0][None], 0.0)

    lat = jnp.broadcast_to(latent[:, None, :, None], (B, NB_PRIM, BOTTLENECK, P))
    y = jnp.concatenate([rand_grid, lat], axis=2)                      # (B, NB, DIN, P)

    dw1, db1, dw2, db2, dw3, db3, dw4, db4 = dec_params
    t = jnp.maximum(jnp.einsum('nod,bndp->bnop', dw1, y) + db1[None], 0.0)
    t = jnp.maximum(jnp.einsum('nod,bndp->bnop', dw2, t) + db2[None], 0.0)
    t = jnp.maximum(jnp.einsum('nod,bndp->bnop', dw3, t) + db3[None], 0.0)
    o = 2.0 * jnp.tanh(jnp.einsum('nod,bndp->bnop', dw4, t) + db4[None])  # (B, NB, 3, P)
    return jnp.transpose(o, (0, 2, 1, 3)).reshape(B, 3, NUM_POINTS)


# ------------------------------------ main -------------------------------------
if __name__ == "__main__":
    key = jax.random.PRNGKey(0)
    k_x, k_grid, k_params = jax.random.split(key, 3)

    x = jax.random.normal(k_x, (B, 3, NUM_POINTS), jnp.float32)        # PyTorch NCL input

    pk = jax.random.split(k_params, 9)
    enc_params = (
        *to_ncl(*fold_bn(*conv_params(pk[0], 3, C1), bn_params(pk[1], C1))),
        *to_ncl(*fold_bn(*conv_params(pk[2], C1, C2), bn_params(pk[3], C2))),
        *to_ncl(*fold_bn(*conv_params(pk[4], C2, FEAT), bn_params(pk[5], FEAT))),
        *to_ncl(*fold_bn(*conv_params(pk[6], FEAT, BOTTLENECK), bn_params(pk[7], BOTTLENECK))),
    )
    per_prim = [make_decoder_params(k) for k in jax.random.split(pk[8], NB_PRIM)]
    dec_params = tuple(jnp.stack([pp[j] for pp in per_prim]) for j in range(8))

    # fixed_points=False path: rand_grid ~ U(0,1), one (2, P) grid per (batch, primitive).
    rand_grid = jax.random.uniform(k_grid, (B, NB_PRIM, 2, P), jnp.float32)

    out = ae_atlasnet_forward(x, enc_params, dec_params, rand_grid)
    out = jax.block_until_ready(out)
    assert out.shape == (B, 3, NUM_POINTS), out.shape

    ref = reference_forward(x, enc_params, dec_params, rand_grid)
    max_err = float(jnp.max(jnp.abs(out - ref)))
    assert jnp.allclose(out, ref, atol=2e-3, rtol=2e-3), max_err

    print("KERNEL_OK")
</pallas_src>

<mosaic_0001>
module attributes {stable_mosaic.version = 11 : i64} {
  func.func @fused_kernel(%arg0: i32, %arg1: memref<1x3x256xf32, #tpu.memory_space<vmem>>, %arg2: memref<1x4x2x64xf32, #tpu.memory_space<vmem>>, %arg3: memref<16x3xf32, #tpu.memory_space<vmem>>, %arg4: memref<16x1xf32, #tpu.memory_space<vmem>>, %arg5: memref<32x16xf32, #tpu.memory_space<vmem>>, %arg6: memref<32x1xf32, #tpu.memory_space<vmem>>, %arg7: memref<64x32xf32, #tpu.memory_space<vmem>>, %arg8: memref<64x1xf32, #tpu.memory_space<vmem>>, %arg9: memref<32x64xf32, #tpu.memory_space<vmem>>, %arg10: memref<32x1xf32, #tpu.memory_space<vmem>>, %arg11: memref<4x34x2xf32, #tpu.memory_space<vmem>>, %arg12: memref<4x34x32xf32, #tpu.memory_space<vmem>>, %arg13: memref<4x34x1xf32, #tpu.memory_space<vmem>>, %arg14: memref<4x17x34xf32, #tpu.memory_space<vmem>>, %arg15: memref<4x17x1xf32, #tpu.memory_space<vmem>>, %arg16: memref<4x8x17xf32, #tpu.memory_space<vmem>>, %arg17: memref<4x8x1xf32, #tpu.memory_space<vmem>>, %arg18: memref<4x3x8xf32, #tpu.memory_space<vmem>>, %arg19: memref<4x3x1xf32, #tpu.memory_space<vmem>>, %arg20: memref<1x3x256xf32, #tpu.memory_space<vmem>>) attributes {dimension_semantics = [#tpu.dimension_semantics<parallel>], iteration_bounds = array<i64: 2>, scalar_prefetch = 0 : i64, scratch_operands = 0 : i64, tpu.core_type = #tpu.core_type<tc>, window_params = [{transform_indices = @transform_0, window_bounds = array<i64: 1, 3, 256>}, {transform_indices = @transform_1, window_bounds = array<i64: 1, 4, 2, 64>}, {pipeline_mode = #tpu.pipeline_mode<synchronous>, transform_indices = @transform_2, window_bounds = array<i64: 16, 3>}, {pipeline_mode = #tpu.pipeline_mode<synchronous>, transform_indices = @transform_3, window_bounds = array<i64: 16, 1>}, {pipeline_mode = #tpu.pipeline_mode<synchronous>, transform_indices = @transform_4, window_bounds = array<i64: 32, 16>}, {pipeline_mode = #tpu.pipeline_mode<synchronous>, transform_indices = @transform_5, window_bounds = array<i64: 32, 1>}, {pipeline_mode = #tpu.pipeline_mode<synchronous>, transform_indices = @transform_6, window_bounds = array<i64: 64, 32>}, {pipeline_mode = #tpu.pipeline_mode<synchronous>, transform_indices = @transform_7, window_bounds = array<i64: 64, 1>}, {pipeline_mode = #tpu.pipeline_mode<synchronous>, transform_indices = @transform_8, window_bounds = array<i64: 32, 64>}, {pipeline_mode = #tpu.pipeline_mode<synchronous>, transform_indices = @transform_9, window_bounds = array<i64: 32, 1>}, {pipeline_mode = #tpu.pipeline_mode<synchronous>, transform_indices = @transform_10, window_bounds = array<i64: 4, 34, 2>}, {pipeline_mode = #tpu.pipeline_mode<synchronous>, transform_indices = @transform_11, window_bounds = array<i64: 4, 34, 32>}, {pipeline_mode = #tpu.pipeline_mode<synchronous>, transform_indices = @transform_12, window_bounds = array<i64: 4, 34, 1>}, {pipeline_mode = #tpu.pipeline_mode<synchronous>, transform_indices = @transform_13, window_bounds = array<i64: 4, 17, 34>}, {pipeline_mode = #tpu.pipeline_mode<synchronous>, transform_indices = @transform_14, window_bounds = array<i64: 4, 17, 1>}, {pipeline_mode = #tpu.pipeline_mode<synchronous>, transform_indices = @transform_15, window_bounds = array<i64: 4, 8, 17>}, {pipeline_mode = #tpu.pipeline_mode<synchronous>, transform_indices = @transform_16, window_bounds = array<i64: 4, 8, 1>}, {pipeline_mode = #tpu.pipeline_mode<synchronous>, transform_indices = @transform_17, window_bounds = array<i64: 4, 3, 8>}, {pipeline_mode = #tpu.pipeline_mode<synchronous>, transform_indices = @transform_18, window_bounds = array<i64: 4, 3, 1>}, {transform_indices = @transform_19, window_bounds = array<i64: 1, 3, 256>}]} {
    %c0 = arith.constant 0 : index
    %c0_0 = arith.constant 0 : index
    %c0_1 = arith.constant 0 : index
    %0 = vector.load %arg1[%c0, %c0_0, %c0_1] : memref<1x3x256xf32, #tpu.memory_space<vmem>>, vector<1x3x256xf32>
    %1 = vector.shape_cast %0 : vector<1x3x256xf32> to vector<3x256xf32>
    %c0_2 = arith.constant 0 : index
    %c0_3 = arith.constant 0 : index
    %2 = vector.load %arg3[%c0_2, %c0_3] : memref<16x3xf32, #tpu.memory_space<vmem>>, vector<16x3xf32>
    %cst = arith.constant dense<0.000000e+00> : vector<16x256xf32>
    %3 = tpu.matmul %2, %1, %cst {dimension_numbers = #tpu.dot_dimension_numbers<[1], [0], [0], [1], [0, 0, 1, 1], [], []>} : vector<16x3xf32>, vector<3x256xf32>, vector<16x256xf32> -> vector<16x256xf32>
    %c0_4 = arith.constant 0 : index
    %c0_5 = arith.constant 0 : index
    %4 = vector.load %arg4[%c0_4, %c0_5] : memref<16x1xf32, #tpu.memory_space<vmem>>, vector<16x1xf32>
    %5 = vector.broadcast %4 : vector<16x1xf32> to vector<16x256xf32>
    %6 = arith.addf %3, %5 : vector<16x256xf32>
    %cst_6 = arith.constant 0.000000e+00 : f32
    %7 = vector.broadcast %cst_6 : f32 to vector<16x256xf32>
    %8 = arith.maximumf %6, %7 : vector<16x256xf32>
    %c0_7 = arith.constant 0 : index
    %c0_8 = arith.constant 0 : index
    %9 = vector.load %arg5[%c0_7, %c0_8] : memref<32x16xf32, #tpu.memory_space<vmem>>, vector<32x16xf32>
    %cst_9 = arith.constant dense<0.000000e+00> : vector<32x256xf32>
    %10 = tpu.matmul %9, %8, %cst_9 {dimension_numbers = #tpu.dot_dimension_numbers<[1], [0], [0], [1], [0, 0, 1, 1], [], []>} : vector<32x16xf32>, vector<16x256xf32>, vector<32x256xf32> -> vector<32x256xf32>
    %c0_10 = arith.constant 0 : index
    %c0_11 = arith.constant 0 : index
    %11 = vector.load %arg6[%c0_10, %c0_11] : memref<32x1xf32, #tpu.memory_space<vmem>>, vector<32x1xf32>
    %12 = vector.broadcast %11 : vector<32x1xf32> to vector<32x256xf32>
    %13 = arith.addf %10, %12 : vector<32x256xf32>
    %cst_12 = arith.constant 0.000000e+00 : f32
    %14 = vector.broadcast %cst_12 : f32 to vector<32x256xf32>
    %15 = arith.maximumf %13, %14 : vector<32x256xf32>
    %c0_13 = arith.constant 0 : index
    %c0_14 = arith.constant 0 : index
    %16 = vector.load %arg7[%c0_13, %c0_14] : memref<64x32xf32, #tpu.memory_space<vmem>>, vector<64x32xf32>
    %cst_15 = arith.constant dense<0.000000e+00> : vector<64x256xf32>
    %17 = tpu.matmul %16, %15, %cst_15 {dimension_numbers = #tpu.dot_dimension_numbers<[1], [0], [0], [1], [0, 0, 1, 1], [], []>} : vector<64x32xf32>, vector<32x256xf32>, vector<64x256xf32> -> vector<64x256xf32>
    %c0_16 = arith.constant 0 : index
    %c0_17 = arith.constant 0 : index
    %18 = vector.load %arg8[%c0_16, %c0_17] : memref<64x1xf32, #tpu.memory_space<vmem>>, vector<64x1xf32>
    %19 = vector.broadcast %18 : vector<64x1xf32> to vector<64x256xf32>
    %20 = arith.addf %17, %19 : vector<64x256xf32>
    %cst_18 = arith.constant dense<0xFF800000> : vector<64xf32>
    %21 = vector.multi_reduction <maximumf>, %20, %cst_18 [1] : vector<64x256xf32> to vector<64xf32>
    %22 = vector.shape_cast %21 : vector<64xf32> to vector<64x1xf32>
    %c0_19 = arith.constant 0 : index
    %c0_20 = arith.constant 0 : index
    %23 = vector.load %arg9[%c0_19, %c0_20] : memref<32x64xf32, #tpu.memory_space<vmem>>, vector<32x64xf32>
    %cst_21 = arith.constant dense<0.000000e+00> : vector<32x1xf32>
    %24 = tpu.matmul %23, %22, %cst_21 {dimension_numbers = #tpu.dot_dimension_numbers<[1], [0], [0], [1], [0, 0, 1, 1], [], []>} : vector<32x64xf32>, vector<64x1xf32>, vector<32x1xf32> -> vector<32x1xf32>
    %c0_22 = arith.constant 0 : index
    %c0_23 = arith.constant 0 : index
    %25 = vector.load %arg10[%c0_22, %c0_23] : memref<32x1xf32, #tpu.memory_space<vmem>>, vector<32x1xf32>
    %26 = arith.addf %24, %25 : vector<32x1xf32>
    %cst_24 = arith.constant 0.000000e+00 : f32
    %27 = vector.broadcast %cst_24 : f32 to vector<32x1xf32>
    %28 = arith.maximumf %26, %27 : vector<32x1xf32>
    %c0_25 = arith.constant 0 : index
    %c0_26 = arith.constant 0 : index
    %c0_27 = arith.constant 0 : index
    %c0_28 = arith.constant 0 : index
    %29 = vector.load %arg2[%c0_25, %c0_26, %c0_27, %c0_28] : memref<1x4x2x64xf32, #tpu.memory_space<vmem>>, vector<1x1x2x64xf32>
    %30 = vector.shape_cast %29 : vector<1x1x2x64xf32> to vector<2x64xf32>
    %c0_29 = arith.constant 0 : index
    %c0_30 = arith.constant 0 : index
    %c0_31 = arith.constant 0 : index
    %31 = vector.load %arg12[%c0_29, %c0_30, %c0_31] : memref<4x34x32xf32, #tpu.memory_space<vmem>>, vector<1x34x32xf32>
    %32 = vector.shape_cast %31 : vector<1x34x32xf32> to vector<34x32xf32>
    %cst_32 = arith.constant dense<0.000000e+00> : vector<34x1xf32>
    %33 = tpu.matmul %32, %28, %cst_32 {dimension_numbers = #tpu.dot_dimension_numbers<[1], [0], [0], [1], [0, 0, 1, 1], [], []>} : vector<34x32xf32>, vector<32x1xf32>, vector<34x1xf32> -> vector<34x1xf32>
    %c0_33 = arith.constant 0 : index
    %c0_34 = arith.constant 0 : index
    %c0_35 = arith.constant 0 : index
    %34 = vector.load %arg11[%c0_33, %c0_34, %c0_35] : memref<4x34x2xf32, #tpu.memory_space<vmem>>, vector<1x34x2xf32>
    %35 = vector.shape_cast %34 : vector<1x34x2xf32> to vector<34x2xf32>
    %cst_36 = arith.constant dense<0.000000e+00> : vector<34x64xf32>
    %36 = tpu.matmul %35, %30, %cst_36 {dimension_numbers = #tpu.dot_dimension_numbers<[1], [0], [0], [1], [0, 0, 1, 1], [], []>} : vector<34x2xf32>, vector<2x64xf32>, vector<34x64xf32> -> vector<34x64xf32>
    %37 = vector.broadcast %33 : vector<34x1xf32> to vector<34x64xf32>
    %38 = arith.addf %36, %37 : vector<34x64xf32>
    %c0_37 = arith.constant 0 : index
    %c0_38 = arith.constant 0 : index
    %c0_39 = arith.constant 0 : index
    %39 = vector.load %arg13[%c0_37, %c0_38, %c0_39] : memref<4x34x1xf32, #tpu.memory_space<vmem>>, vector<1x34x1xf32>
    %40 = vector.shape_cast %39 : vector<1x34x1xf32> to vector<34x1xf32>
    %41 = vector.broadcast %40 : vector<34x1xf32> to vector<34x64xf32>
    %42 = arith.addf %38, %41 : vector<34x64xf32>
    %cst_40 = arith.constant 0.000000e+00 : f32
    %43 = vector.broadcast %cst_40 : f32 to vector<34x64xf32>
    %44 = arith.maximumf %42, %43 : vector<34x64xf32>
    %c0_41 = arith.constant 0 : index
    %c0_42 = arith.constant 0 : index
    %c0_43 = arith.constant 0 : index
    %45 = vector.load %arg14[%c0_41, %c0_42, %c0_43] : memref<4x17x34xf32, #tpu.memory_space<vmem>>, vector<1x17x34xf32>
    %46 = vector.shape_cast %45 : vector<1x17x34xf32> to vector<17x34xf32>
    %cst_44 = arith.constant dense<0.000000e+00> : vector<17x64xf32>
    %47 = tpu.matmul %46, %44, %cst_44 {dimension_numbers = #tpu.dot_dimension_numbers<[1], [0], [0], [1], [0, 0, 1, 1], [], []>} : vector<17x34xf32>, vector<34x64xf32>, vector<17x64xf32> -> vector<17x64xf32>
    %c0_45 = arith.constant 0 : index
    %c0_46 = arith.constant 0 : index
    %c0_47 = arith.constant 0 : index
    %48 = vector.load %arg15[%c0_45, %c0_46, %c0_47] : memref<4x17x1xf32, #tpu.memory_space<vmem>>, vector<1x17x1xf32>
    %49 = vector.shape_cast %48 : vector<1x17x1xf32> to vector<17x1xf32>
    %50 = vector.broadcast %49 : vector<17x1xf32> to vector<17x64xf32>
    %51 = arith.addf %47, %50 : vector<17x64xf32>
    %cst_48 = arith.constant 0.000000e+00 : f32
    %52 = vector.broadcast %cst_48 : f32 to vector<17x64xf32>
    %53 = arith.maximumf %51, %52 : vector<17x64xf32>
    %c0_49 = arith.constant 0 : index
    %c0_50 = arith.constant 0 : index
    %c0_51 = arith.constant 0 : index
    %54 = vector.load %arg16[%c0_49, %c0_50, %c0_51] : memref<4x8x17xf32, #tpu.memory_space<vmem>>, vector<1x8x17xf32>
    %55 = vector.shape_cast %54 : vector<1x8x17xf32> to vector<8x17xf32>
    %cst_52 = arith.constant dense<0.000000e+00> : vector<8x64xf32>
    %56 = tpu.matmul %55, %53, %cst_52 {dimension_numbers = #tpu.dot_dimension_numbers<[1], [0], [0], [1], [0, 0, 1, 1], [], []>} : vector<8x17xf32>, vector<17x64xf32>, vector<8x64xf32> -> vector<8x64xf32>
    %c0_53 = arith.constant 0 : index
    %c0_54 = arith.constant 0 : index
    %c0_55 = arith.constant 0 : index
    %57 = vector.load %arg17[%c0_53, %c0_54, %c0_55] : memref<4x8x1xf32, #tpu.memory_space<vmem>>, vector<1x8x1xf32>
    %58 = vector.shape_cast %57 : vector<1x8x1xf32> to vector<8x1xf32>
    %59 = vector.broadcast %58 : vector<8x1xf32> to vector<8x64xf32>
    %60 = arith.addf %56, %59 : vector<8x64xf32>
    %cst_56 = arith.constant 0.000000e+00 : f32
    %61 = vector.broadcast %cst_56 : f32 to vector<8x64xf32>
    %62 = arith.maximumf %60, %61 : vector<8x64xf32>
    %c0_57 = arith.constant 0 : index
    %c0_58 = arith.constant 0 : index
    %c0_59 = arith.constant 0 : index
    %63 = vector.load %arg18[%c0_57, %c0_58, %c0_59] : memref<4x3x8xf32, #tpu.memory_space<vmem>>, vector<1x3x8xf32>
    %64 = vector.shape_cast %63 : vector<1x3x8xf32> to vector<3x8xf32>
    %cst_60 = arith.constant dense<0.000000e+00> : vector<3x64xf32>
    %65 = tpu.matmul %64, %62, %cst_60 {dimension_numbers = #tpu.dot_dimension_numbers<[1], [0], [0], [1], [0, 0, 1, 1], [], []>} : vector<3x8xf32>, vector<8x64xf32>, vector<3x64xf32> -> vector<3x64xf32>
    %c0_61 = arith.constant 0 : index
    %c0_62 = arith.constant 0 : index
    %c0_63 = arith.constant 0 : index
    %66 = vector.load %arg19[%c0_61, %c0_62, %c0_63] : memref<4x3x1xf32, #tpu.memory_space<vmem>>, vector<1x3x1xf32>
    %67 = vector.shape_cast %66 : vector<1x3x1xf32> to vector<3x1xf32>
    %68 = vector.broadcast %67 : vector<3x1xf32> to vector<3x64xf32>
    %69 = arith.addf %65, %68 : vector<3x64xf32>
    %70 = math.tanh %69 : vector<3x64xf32>
    %cst_64 = arith.constant 2.000000e+00 : f32
    %71 = vector.broadcast %cst_64 : f32 to vector<3x64xf32>
    %72 = arith.mulf %71, %70 : vector<3x64xf32>
    %c0_65 = arith.constant 0 : index
    %c1 = arith.constant 1 : index
    %c0_66 = arith.constant 0 : index
    %c0_67 = arith.constant 0 : index
    %73 = vector.load %arg2[%c0_65, %c1, %c0_66, %c0_67] : memref<1x4x2x64xf32, #tpu.memory_space<vmem>>, vector<1x1x2x64xf32>
    %74 = vector.shape_cast %73 : vector<1x1x2x64xf32> to vector<2x64xf32>
    %c1_68 = arith.constant 1 : index
    %c0_69 = arith.constant 0 : index
    %c0_70 = arith.constant 0 : index
    %75 = vector.load %arg12[%c1_68, %c0_69, %c0_70] : memref<4x34x32xf32, #tpu.memory_space<vmem>>, vector<1x34x32xf32>
    %76 = vector.shape_cast %75 : vector<1x34x32xf32> to vector<34x32xf32>
    %cst_71 = arith.constant dense<0.000000e+00> : vector<34x1xf32>
    %77 = tpu.matmul %76, %28, %cst_71 {dimension_numbers = #tpu.dot_dimension_numbers<[1], [0], [0], [1], [0, 0, 1, 1], [], []>} : vector<34x32xf32>, vector<32x1xf32>, vector<34x1xf32> -> vector<34x1xf32>
    %c1_72 = arith.constant 1 : index
    %c0_73 = arith.constant 0 : index
    %c0_74 = arith.constant 0 : index
    %78 = vector.load %arg11[%c1_72, %c0_73, %c0_74] : memref<4x34x2xf32, #tpu.memory_space<vmem>>, vector<1x34x2xf32>
    %79 = vector.shape_cast %78 : vector<1x34x2xf32> to vector<34x2xf32>
    %cst_75 = arith.constant dense<0.000000e+00> : vector<34x64xf32>
    %80 = tpu.matmul %79, %74, %cst_75 {dimension_numbers = #tpu.dot_dimension_numbers<[1], [0], [0], [1], [0, 0, 1, 1], [], []>} : vector<34x2xf32>, vector<2x64xf32>, vector<34x64xf32> -> vector<34x64xf32>
    %81 = vector.broadcast %77 : vector<34x1xf32> to vector<34x64xf32>
    %82 = arith.addf %80, %81 : vector<34x64xf32>
    %c1_76 = arith.constant 1 : index
    %c0_77 = arith.constant 0 : index
    %c0_78 = arith.constant 0 : index
    %83 = vector.load %arg13[%c1_76, %c0_77, %c0_78] : memref<4x34x1xf32, #tpu.memory_space<vmem>>, vector<1x34x1xf32>
    %84 = vector.shape_cast %83 : vector<1x34x1xf32> to vector<34x1xf32>
    %85 = vector.broadcast %84 : vector<34x1xf32> to vector<34x64xf32>
    %86 = arith.addf %82, %85 : vector<34x64xf32>
    %cst_79 = arith.constant 0.000000e+00 : f32
    %87 = vector.broadcast %cst_79 : f32 to vector<34x64xf32>
    %88 = arith.maximumf %86, %87 : vector<34x64xf32>
    %c1_80 = arith.constant 1 : index
    %c0_81 = arith.constant 0 : index
    %c0_82 = arith.constant 0 : index
    %89 = vector.load %arg14[%c1_80, %c0_81, %c0_82] : memref<4x17x34xf32, #tpu.memory_space<vmem>>, vector<1x17x34xf32>
    %90 = vector.shape_cast %89 : vector<1x17x34xf32> to vector<17x34xf32>
    %cst_83 = arith.constant dense<0.000000e+00> : vector<17x64xf32>
    %91 = tpu.matmul %90, %88, %cst_83 {dimension_numbers = #tpu.dot_dimension_numbers<[1], [0], [0], [1], [0, 0, 1, 1], [], []>} : vector<17x34xf32>, vector<34x64xf32>, vector<17x64xf32> -> vector<17x64xf32>
    %c1_84 = arith.constant 1 : index
    %c0_85 = arith.constant 0 : index
    %c0_86 = arith.constant 0 : index
    %92 = vector.load %arg15[%c1_84, %c0_85, %c0_86] : memref<4x17x1xf32, #tpu.memory_space<vmem>>, vector<1x17x1xf32>
    %93 = vector.shape_cast %92 : vector<1x17x1xf32> to vector<17x1xf32>
    %94 = vector.broadcast %93 : vector<17x1xf32> to vector<17x64xf32>
    %95 = arith.addf %91, %94 : vector<17x64xf32>
    %cst_87 = arith.constant 0.000000e+00 : f32
    %96 = vector.broadcast %cst_87 : f32 to vector<17x64xf32>
    %97 = arith.maximumf %95, %96 : vector<17x64xf32>
    %c1_88 = arith.constant 1 : index
    %c0_89 = arith.constant 0 : index
    %c0_90 = arith.constant 0 : index
    %98 = vector.load %arg16[%c1_88, %c0_89, %c0_90] : memref<4x8x17xf32, #tpu.memory_space<vmem>>, vector<1x8x17xf32>
    %99 = vector.shape_cast %98 : vector<1x8x17xf32> to vector<8x17xf32>
    %cst_91 = arith.constant dense<0.000000e+00> : vector<8x64xf32>
    %100 = tpu.matmul %99, %97, %cst_91 {dimension_numbers = #tpu.dot_dimension_numbers<[1], [0], [0], [1], [0, 0, 1, 1], [], []>} : vector<8x17xf32>, vector<17x64xf32>, vector<8x64xf32> -> vector<8x64xf32>
    %c1_92 = arith.constant 1 : index
    %c0_93 = arith.constant 0 : index
    %c0_94 = arith.constant 0 : index
    %101 = vector.load %arg17[%c1_92, %c0_93, %c0_94] : memref<4x8x1xf32, #tpu.memory_space<vmem>>, vector<1x8x1xf32>
    %102 = vector.shape_cast %101 : vector<1x8x1xf32> to vector<8x1xf32>
    %103 = vector.broadcast %102 : vector<8x1xf32> to vector<8x64xf32>
    %104 = arith.addf %100, %103 : vector<8x64xf32>
    %cst_95 = arith.constant 0.000000e+00 : f32
    %105 = vector.broadcast %cst_95 : f32 to vector<8x64xf32>
    %106 = arith.maximumf %104, %105 : vector<8x64xf32>
    %c1_96 = arith.constant 1 : index
    %c0_97 = arith.constant 0 : index
    %c0_98 = arith.constant 0 : index
    %107 = vector.load %arg18[%c1_96, %c0_97, %c0_98] : memref<4x3x8xf32, #tpu.memory_space<vmem>>, vector<1x3x8xf32>
    %108 = vector.shape_cast %107 : vector<1x3x8xf32> to vector<3x8xf32>
    %cst_99 = arith.constant dense<0.000000e+00> : vector<3x64xf32>
    %109 = tpu.matmul %108, %106, %cst_99 {dimension_numbers = #tpu.dot_dimension_numbers<[1], [0], [0], [1], [0, 0, 1, 1], [], []>} : vector<3x8xf32>, vector<8x64xf32>, vector<3x64xf32> -> vector<3x64xf32>
    %c1_100 = arith.constant 1 : index
    %c0_101 = arith.constant 0 : index
    %c0_102 = arith.constant 0 : index
    %110 = vector.load %arg19[%c1_100, %c0_101, %c0_102] : memref<4x3x1xf32, #tpu.memory_space<vmem>>, vector<1x3x1xf32>
    %111 = vector.shape_cast %110 : vector<1x3x1xf32> to vector<3x1xf32>
    %112 = vector.broadcast %111 : vector<3x1xf32> to vector<3x64xf32>
    %113 = arith.addf %109, %112 : vector<3x64xf32>
    %114 = math.tanh %113 : vector<3x64xf32>
    %cst_103 = arith.constant 2.000000e+00 : f32
    %115 = vector.broadcast %cst_103 : f32 to vector<3x64xf32>
    %116 = arith.mulf %115, %114 : vector<3x64xf32>
    %c0_104 = arith.constant 0 : index
    %c2 = arith.constant 2 : index
    %c0_105 = arith.constant 0 : index
    %c0_106 = arith.constant 0 : index
    %117 = vector.load %arg2[%c0_104, %c2, %c0_105, %c0_106] : memref<1x4x2x64xf32, #tpu.memory_space<vmem>>, vector<1x1x2x64xf32>
    %118 = vector.shape_cast %117 : vector<1x1x2x64xf32> to vector<2x64xf32>
    %c2_107 = arith.constant 2 : index
    %c0_108 = arith.constant 0 : index
    %c0_109 = arith.constant 0 : index
    %119 = vector.load %arg12[%c2_107, %c0_108, %c0_109] : memref<4x34x32xf32, #tpu.memory_space<vmem>>, vector<1x34x32xf32>
    %120 = vector.shape_cast %119 : vector<1x34x32xf32> to vector<34x32xf32>
    %cst_110 = arith.constant dense<0.000000e+00> : vector<34x1xf32>
    %121 = tpu.matmul %120, %28, %cst_110 {dimension_numbers = #tpu.dot_dimension_numbers<[1], [0], [0], [1], [0, 0, 1, 1], [], []>} : vector<34x32xf32>, vector<32x1xf32>, vector<34x1xf32> -> vector<34x1xf32>
    %c2_111 = arith.constant 2 : index
    %c0_112 = arith.constant 0 : index
    %c0_113 = arith.constant 0 : index
    %122 = vector.load %arg11[%c2_111, %c0_112, %c0_113] : memref<4x34x2xf32, #tpu.memory_space<vmem>>, vector<1x34x2xf32>
    %123 = vector.shape_cast %122 : vector<1x34x2xf32> to vector<34x2xf32>
    %cst_114 = arith.constant dense<0.000000e+00> : vector<34x64xf32>
    %124 = tpu.matmul %123, %118, %cst_114 {dimension_numbers = #tpu.dot_dimension_numbers<[1], [0], [0], [1], [0, 0, 1, 1], [], []>} : vector<34x2xf32>, vector<2x64xf32>, vector<34x64xf32> -> vector<34x64xf32>
    %125 = vector.broadcast %121 : vector<34x1xf32> to vector<34x64xf32>
    %126 = arith.addf %124, %125 : vector<34x64xf32>
    %c2_115 = arith.constant 2 : index
    %c0_116 = arith.constant 0 : index
    %c0_117 = arith.constant 0 : index
    %127 = vector.load %arg13[%c2_115, %c0_116, %c0_117] : memref<4x34x1xf32, #tpu.memory_space<vmem>>, vector<1x34x1xf32>
    %128 = vector.shape_cast %127 : vector<1x34x1xf32> to vector<34x1xf32>
    %129 = vector.broadcast %128 : vector<34x1xf32> to vector<34x64xf32>
    %130 = arith.addf %126, %129 : vector<34x64xf32>
    %cst_118 = arith.constant 0.000000e+00 : f32
    %131 = vector.broadcast %cst_118 : f32 to vector<34x64xf32>
    %132 = arith.maximumf %130, %131 : vector<34x64xf32>
    %c2_119 = arith.constant 2 : index
    %c0_120 = arith.constant 0 : index
    %c0_121 = arith.constant 0 : index
    %133 = vector.load %arg14[%c2_119, %c0_120, %c0_121] : memref<4x17x34xf32, #tpu.memory_space<vmem>>, vector<1x17x34xf32>
    %134 = vector.shape_cast %133 : vector<1x17x34xf32> to vector<17x34xf32>
    %cst_122 = arith.constant dense<0.000000e+00> : vector<17x64xf32>
    %135 = tpu.matmul %134, %132, %cst_122 {dimension_numbers = #tpu.dot_dimension_numbers<[1], [0], [0], [1], [0, 0, 1, 1], [], []>} : vector<17x34xf32>, vector<34x64xf32>, vector<17x64xf32> -> vector<17x64xf32>
    %c2_123 = arith.constant 2 : index
    %c0_124 = arith.constant 0 : index
    %c0_125 = arith.constant 0 : index
    %136 = vector.load %arg15[%c2_123, %c0_124, %c0_125] : memref<4x17x1xf32, #tpu.memory_space<vmem>>, vector<1x17x1xf32>
    %137 = vector.shape_cast %136 : vector<1x17x1xf32> to vector<17x1xf32>
    %138 = vector.broadcast %137 : vector<17x1xf32> to vector<17x64xf32>
    %139 = arith.addf %135, %138 : vector<17x64xf32>
    %cst_126 = arith.constant 0.000000e+00 : f32
    %140 = vector.broadcast %cst_126 : f32 to vector<17x64xf32>
    %141 = arith.maximumf %139, %140 : vector<17x64xf32>
    %c2_127 = arith.constant 2 : index
    %c0_128 = arith.constant 0 : index
    %c0_129 = arith.constant 0 : index
    %142 = vector.load %arg16[%c2_127, %c0_128, %c0_129] : memref<4x8x17xf32, #tpu.memory_space<vmem>>, vector<1x8x17xf32>
    %143 = vector.shape_cast %142 : vector<1x8x17xf32> to vector<8x17xf32>
    %cst_130 = arith.constant dense<0.000000e+00> : vector<8x64xf32>
    %144 = tpu.matmul %143, %141, %cst_130 {dimension_numbers = #tpu.dot_dimension_numbers<[1], [0], [0], [1], [0, 0, 1, 1], [], []>} : vector<8x17xf32>, vector<17x64xf32>, vector<8x64xf32> -> vector<8x64xf32>
    %c2_131 = arith.constant 2 : index
    %c0_132 = arith.constant 0 : index
    %c0_133 = arith.constant 0 : index
    %145 = vector.load %arg17[%c2_131, %c0_132, %c0_133] : memref<4x8x1xf32, #tpu.memory_space<vmem>>, vector<1x8x1xf32>
    %146 = vector.shape_cast %145 : vector<1x8x1xf32> to vector<8x1xf32>
    %147 = vector.broadcast %146 : vector<8x1xf32> to vector<8x64xf32>
    %148 = arith.addf %144, %147 : vector<8x64xf32>
    %cst_134 = arith.constant 0.000000e+00 : f32
    %149 = vector.broadcast %cst_134 : f32 to vector<8x64xf32>
    %150 = arith.maximumf %148, %149 : vector<8x64xf32>
    %c2_135 = arith.constant 2 : index
    %c0_136 = arith.constant 0 : index
    %c0_137 = arith.constant 0 : index
    %151 = vector.load %arg18[%c2_135, %c0_136, %c0_137] : memref<4x3x8xf32, #tpu.memory_space<vmem>>, vector<1x3x8xf32>
    %152 = vector.shape_cast %151 : vector<1x3x8xf32> to vector<3x8xf32>
    %cst_138 = arith.constant dense<0.000000e+00> : vector<3x64xf32>
    %153 = tpu.matmul %152, %150, %cst_138 {dimension_numbers = #tpu.dot_dimension_numbers<[1], [0], [0], [1], [0, 0, 1, 1], [], []>} : vector<3x8xf32>, vector<8x64xf32>, vector<3x64xf32> -> vector<3x64xf32>
    %c2_139 = arith.constant 2 : index
    %c0_140 = arith.constant 0 : index
    %c0_141 = arith.constant 0 : index
    %154 = vector.load %arg19[%c2_139, %c0_140, %c0_141] : memref<4x3x1xf32, #tpu.memory_space<vmem>>, vector<1x3x1xf32>
    %155 = vector.shape_cast %154 : vector<1x3x1xf32> to vector<3x1xf32>
    %156 = vector.broadcast %155 : vector<3x1xf32> to vector<3x64xf32>
    %157 = arith.addf %153, %156 : vector<3x64xf32>
    %158 = math.tanh %157 : vector<3x64xf32>
    %cst_142 = arith.constant 2.000000e+00 : f32
    %159 = vector.broadcast %cst_142 : f32 to vector<3x64xf32>
    %160 = arith.mulf %159, %158 : vector<3x64xf32>
    %c0_143 = arith.constant 0 : index
    %c3 = arith.constant 3 : index
    %c0_144 = arith.constant 0 : index
    %c0_145 = arith.constant 0 : index
    %161 = vector.load %arg2[%c0_143, %c3, %c0_144, %c0_145] : memref<1x4x2x64xf32, #tpu.memory_space<vmem>>, vector<1x1x2x64xf32>
    %162 = vector.shape_cast %161 : vector<1x1x2x64xf32> to vector<2x64xf32>
    %c3_146 = arith.constant 3 : index
    %c0_147 = arith.constant 0 : index
    %c0_148 = arith.constant 0 : index
    %163 = vector.load %arg12[%c3_146, %c0_147, %c0_148] : memref<4x34x32xf32, #tpu.memory_space<vmem>>, vector<1x34x32xf32>
    %164 = vector.shape_cast %163 : vector<1x34x32xf32> to vector<34x32xf32>
    %cst_149 = arith.constant dense<0.000000e+00> : vector<34x1xf32>
    %165 = tpu.matmul %164, %28, %cst_149 {dimension_numbers = #tpu.dot_dimension_numbers<[1], [0], [0], [1], [0, 0, 1, 1], [], []>} : vector<34x32xf32>, vector<32x1xf32>, vector<34x1xf32> -> vector<34x1xf32>
    %c3_150 = arith.constant 3 : index
    %c0_151 = arith.constant 0 : index
    %c0_152 = arith.constant 0 : index
    %166 = vector.load %arg11[%c3_150, %c0_151, %c0_152] : memref<4x34x2xf32, #tpu.memory_space<vmem>>, vector<1x34x2xf32>
    %167 = vector.shape_cast %166 : vector<1x34x2xf32> to vector<34x2xf32>
    %cst_153 = arith.constant dense<0.000000e+00> : vector<34x64xf32>
    %168 = tpu.matmul %167, %162, %cst_153 {dimension_numbers = #tpu.dot_dimension_numbers<[1], [0], [0], [1], [0, 0, 1, 1], [], []>} : vector<34x2xf32>, vector<2x64xf32>, vector<34x64xf32> -> vector<34x64xf32>
    %169 = vector.broadcast %165 : vector<34x1xf32> to vector<34x64xf32>
    %170 = arith.addf %168, %169 : vector<34x64xf32>
    %c3_154 = arith.constant 3 : index
    %c0_155 = arith.constant 0 : index
    %c0_156 = arith.constant 0 : index
    %171 = vector.load %arg13[%c3_154, %c0_155, %c0_156] : memref<4x34x1xf32, #tpu.memory_space<vmem>>, vector<1x34x1xf32>
    %172 = vector.shape_cast %171 : vector<1x34x1xf32> to vector<34x1xf32>
    %173 = vector.broadcast %172 : vector<34x1xf32> to vector<34x64xf32>
    %174 = arith.addf %170, %173 : vector<34x64xf32>
    %cst_157 = arith.constant 0.000000e+00 : f32
    %175 = vector.broadcast %cst_157 : f32 to vector<34x64xf32>
    %176 = arith.maximumf %174, %175 : vector<34x64xf32>
    %c3_158 = arith.constant 3 : index
    %c0_159 = arith.constant 0 : index
    %c0_160 = arith.constant 0 : index
    %177 = vector.load %arg14[%c3_158, %c0_159, %c0_160] : memref<4x17x34xf32, #tpu.memory_space<vmem>>, vector<1x17x34xf32>
    %178 = vector.shape_cast %177 : vector<1x17x34xf32> to vector<17x34xf32>
    %cst_161 = arith.constant dense<0.000000e+00> : vector<17x64xf32>
    %179 = tpu.matmul %178, %176, %cst_161 {dimension_numbers = #tpu.dot_dimension_numbers<[1], [0], [0], [1], [0, 0, 1, 1], [], []>} : vector<17x34xf32>, vector<34x64xf32>, vector<17x64xf32> -> vector<17x64xf32>
    %c3_162 = arith.constant 3 : index
    %c0_163 = arith.constant 0 : index
    %c0_164 = arith.constant 0 : index
    %180 = vector.load %arg15[%c3_162, %c0_163, %c0_164] : memref<4x17x1xf32, #tpu.memory_space<vmem>>, vector<1x17x1xf32>
    %181 = vector.shape_cast %180 : vector<1x17x1xf32> to vector<17x1xf32>
    %182 = vector.broadcast %181 : vector<17x1xf32> to vector<17x64xf32>
    %183 = arith.addf %179, %182 : vector<17x64xf32>
    %cst_165 = arith.constant 0.000000e+00 : f32
    %184 = vector.broadcast %cst_165 : f32 to vector<17x64xf32>
    %185 = arith.maximumf %183, %184 : vector<17x64xf32>
    %c3_166 = arith.constant 3 : index
    %c0_167 = arith.constant 0 : index
    %c0_168 = arith.constant 0 : index
    %186 = vector.load %arg16[%c3_166, %c0_167, %c0_168] : memref<4x8x17xf32, #tpu.memory_space<vmem>>, vector<1x8x17xf32>
    %187 = vector.shape_cast %186 : vector<1x8x17xf32> to vector<8x17xf32>
    %cst_169 = arith.constant dense<0.000000e+00> : vector<8x64xf32>
    %188 = tpu.matmul %187, %185, %cst_169 {dimension_numbers = #tpu.dot_dimension_numbers<[1], [0], [0], [1], [0, 0, 1, 1], [], []>} : vector<8x17xf32>, vector<17x64xf32>, vector<8x64xf32> -> vector<8x64xf32>
    %c3_170 = arith.constant 3 : index
    %c0_171 = arith.constant 0 : index
    %c0_172 = arith.constant 0 : index
    %189 = vector.load %arg17[%c3_170, %c0_171, %c0_172] : memref<4x8x1xf32, #tpu.memory_space<vmem>>, vector<1x8x1xf32>
    %190 = vector.shape_cast %189 : vector<1x8x1xf32> to vector<8x1xf32>
    %191 = vector.broadcast %190 : vector<8x1xf32> to vector<8x64xf32>
    %192 = arith.addf %188, %191 : vector<8x64xf32>
    %cst_173 = arith.constant 0.000000e+00 : f32
    %193 = vector.broadcast %cst_173 : f32 to vector<8x64xf32>
    %194 = arith.maximumf %192, %193 : vector<8x64xf32>
    %c3_174 = arith.constant 3 : index
    %c0_175 = arith.constant 0 : index
    %c0_176 = arith.constant 0 : index
    %195 = vector.load %arg18[%c3_174, %c0_175, %c0_176] : memref<4x3x8xf32, #tpu.memory_space<vmem>>, vector<1x3x8xf32>
    %196 = vector.shape_cast %195 : vector<1x3x8xf32> to vector<3x8xf32>
    %cst_177 = arith.constant dense<0.000000e+00> : vector<3x64xf32>
    %197 = tpu.matmul %196, %194, %cst_177 {dimension_numbers = #tpu.dot_dimension_numbers<[1], [0], [0], [1], [0, 0, 1, 1], [], []>} : vector<3x8xf32>, vector<8x64xf32>, vector<3x64xf32> -> vector<3x64xf32>
    %c3_178 = arith.constant 3 : index
    %c0_179 = arith.constant 0 : index
    %c0_180 = arith.constant 0 : index
    %198 = vector.load %arg19[%c3_178, %c0_179, %c0_180] : memref<4x3x1xf32, #tpu.memory_space<vmem>>, vector<1x3x1xf32>
    %199 = vector.shape_cast %198 : vector<1x3x1xf32> to vector<3x1xf32>
    %200 = vector.broadcast %199 : vector<3x1xf32> to vector<3x64xf32>
    %201 = arith.addf %197, %200 : vector<3x64xf32>
    %202 = math.tanh %201 : vector<3x64xf32>
    %cst_181 = arith.constant 2.000000e+00 : f32
    %203 = vector.broadcast %cst_181 : f32 to vector<3x64xf32>
    %204 = arith.mulf %203, %202 : vector<3x64xf32>
    %205 = tpu.concatenate %72, %116, %160, %204 in 1 : vector<3x64xf32>, vector<3x64xf32>, vector<3x64xf32>, vector<3x64xf32> -> vector<3x256xf32>
    %c0_182 = arith.constant 0 : index
    %c0_183 = arith.constant 0 : index
    %c0_184 = arith.constant 0 : index
    %206 = vector.load %arg20[%c0_182, %c0_183, %c0_184] : memref<1x3x256xf32, #tpu.memory_space<vmem>>, vector<1x3x256xf32>
    %207 = vector.shape_cast %206 : vector<1x3x256xf32> to vector<3x256xf32>
    %208 = vector.shape_cast %205 : vector<3x256xf32> to vector<1x3x256xf32>
    tpu.vector_store %arg20[%c0_182, %c0_183, %c0_184], %208 {strides = array<i32>} : memref<1x3x256xf32, #tpu.memory_space<vmem>>, vector<1x3x256xf32>,
    return
  }
  func.func @transform_0(%arg0: i32) -> (i32, i32, i32) {
    %c0_i32 = arith.constant 0 : i32
    %c0_i32_0 = arith.constant 0 : i32
    %c0_i32_1 = arith.constant 0 : i32
    return %arg0, %c0_i32, %c0_i32_0 : i32, i32, i32
  }
  func.func @transform_1(%arg0: i32) -> (i32, i32, i32, i32) {
    %c0_i32 = arith.constant 0 : i32
    %c0_i32_0 = arith.constant 0 : i32
    %c0_i32_1 = arith.constant 0 : i32
    %c0_i32_2 = arith.constant 0 : i32
    return %arg0, %c0_i32, %c0_i32_0, %c0_i32_1 : i32, i32, i32, i32
  }
  func.func @transform_2(%arg0: i32) -> (i32, i32) {
    %c0_i32 = arith.constant 0 : i32
    %c0_i32_0 = arith.constant 0 : i32
    %c0_i32_1 = arith.constant 0 : i32
    return %c0_i32, %c0_i32_0 : i32, i32
  }
  func.func @transform_3(%arg0: i32) -> (i32, i32) {
    %c0_i32 = arith.constant 0 : i32
    %c0_i32_0 = arith.constant 0 : i32
    %c0_i32_1 = arith.constant 0 : i32
    return %c0_i32, %c0_i32_0 : i32, i32
  }
  func.func @transform_4(%arg0: i32) -> (i32, i32) {
    %c0_i32 = arith.constant 0 : i32
    %c0_i32_0 = arith.constant 0 : i32
    %c0_i32_1 = arith.constant 0 : i32
    return %c0_i32, %c0_i32_0 : i32, i32
  }
  func.func @transform_5(%arg0: i32) -> (i32, i32) {
    %c0_i32 = arith.constant 0 : i32
    %c0_i32_0 = arith.constant 0 : i32
    %c0_i32_1 = arith.constant 0 : i32
    return %c0_i32, %c0_i32_0 : i32, i32
  }
  func.func @transform_6(%arg0: i32) -> (i32, i32) {
    %c0_i32 = arith.constant 0 : i32
    %c0_i32_0 = arith.constant 0 : i32
    %c0_i32_1 = arith.constant 0 : i32
    return %c0_i32, %c0_i32_0 : i32, i32
  }
  func.func @transform_7(%arg0: i32) -> (i32, i32) {
    %c0_i32 = arith.constant 0 : i32
    %c0_i32_0 = arith.constant 0 : i32
    %c0_i32_1 = arith.constant 0 : i32
    return %c0_i32, %c0_i32_0 : i32, i32
  }
  func.func @transform_8(%arg0: i32) -> (i32, i32) {
    %c0_i32 = arith.constant 0 : i32
    %c0_i32_0 = arith.constant 0 : i32
    %c0_i32_1 = arith.constant 0 : i32
    return %c0_i32, %c0_i32_0 : i32, i32
  }
  func.func @transform_9(%arg0: i32) -> (i32, i32) {
    %c0_i32 = arith.constant 0 : i32
    %c0_i32_0 = arith.constant 0 : i32
    %c0_i32_1 = arith.constant 0 : i32
    return %c0_i32, %c0_i32_0 : i32, i32
  }
  func.func @transform_10(%arg0: i32) -> (i32, i32, i32) {
    %c0_i32 = arith.constant 0 : i32
    %c0_i32_0 = arith.constant 0 : i32
    %c0_i32_1 = arith.constant 0 : i32
    %c0_i32_2 = arith.constant 0 : i32
    return %c0_i32, %c0_i32_0, %c0_i32_1 : i32, i32, i32
  }
  func.func @transform_11(%arg0: i32) -> (i32, i32, i32) {
    %c0_i32 = arith.constant 0 : i32
    %c0_i32_0 = arith.constant 0 : i32
    %c0_i32_1 = arith.constant 0 : i32
    %c0_i32_2 = arith.constant 0 : i32
    return %c0_i32, %c0_i32_0, %c0_i32_1 : i32, i32, i32
  }
  func.func @transform_12(%arg0: i32) -> (i32, i32, i32) {
    %c0_i32 = arith.constant 0 : i32
    %c0_i32_0 = arith.constant 0 : i32
    %c0_i32_1 = arith.constant 0 : i32
    %c0_i32_2 = arith.constant 0 : i32
    return %c0_i32, %c0_i32_0, %c0_i32_1 : i32, i32, i32
  }
  func.func @transform_13(%arg0: i32) -> (i32, i32, i32) {
    %c0_i32 = arith.constant 0 : i32
    %c0_i32_0 = arith.constant 0 : i32
    %c0_i32_1 = arith.constant 0 : i32
    %c0_i32_2 = arith.constant 0 : i32
    return %c0_i32, %c0_i32_0, %c0_i32_1 : i32, i32, i32
  }
  func.func @transform_14(%arg0: i32) -> (i32, i32, i32) {
    %c0_i32 = arith.constant 0 : i32
    %c0_i32_0 = arith.constant 0 : i32
    %c0_i32_1 = arith.constant 0 : i32
    %c0_i32_2 = arith.constant 0 : i32
    return %c0_i32, %c0_i32_0, %c0_i32_1 : i32, i32, i32
  }
  func.func @transform_15(%arg0: i32) -> (i32, i32, i32) {
    %c0_i32 = arith.constant 0 : i32
    %c0_i32_0 = arith.constant 0 : i32
    %c0_i32_1 = arith.constant 0 : i32
    %c0_i32_2 = arith.constant 0 : i32
    return %c0_i32, %c0_i32_0, %c0_i32_1 : i32, i32, i32
  }
  func.func @transform_16(%arg0: i32) -> (i32, i32, i32) {
    %c0_i32 = arith.constant 0 : i32
    %c0_i32_0 = arith.constant 0 : i32
    %c0_i32_1 = arith.constant 0 : i32
    %c0_i32_2 = arith.constant 0 : i32
    return %c0_i32, %c0_i32_0, %c0_i32_1 : i32, i32, i32
  }
  func.func @transform_17(%arg0: i32) -> (i32, i32, i32) {
    %c0_i32 = arith.constant 0 : i32
    %c0_i32_0 = arith.constant 0 : i32
    %c0_i32_1 = arith.constant 0 : i32
    %c0_i32_2 = arith.constant 0 : i32
    return %c0_i32, %c0_i32_0, %c0_i32_1 : i32, i32, i32
  }
  func.func @transform_18(%arg0: i32) -> (i32, i32, i32) {
    %c0_i32 = arith.constant 0 : i32
    %c0_i32_0 = arith.constant 0 : i32
    %c0_i32_1 = arith.constant 0 : i32
    %c0_i32_2 = arith.constant 0 : i32
    return %c0_i32, %c0_i32_0, %c0_i32_1 : i32, i32, i32
  }
  func.func @transform_19(%arg0: i32) -> (i32, i32, i32) {
    %c0_i32 = arith.constant 0 : i32
    %c0_i32_0 = arith.constant 0 : i32
    %c0_i32_1 = arith.constant 0 : i32
    return %arg0, %c0_i32, %c0_i32_0 : i32, i32, i32
  }
}

</mosaic_0001>

<llo_original>
// kernel: tpu_custom_call.1
$region0: #{tpu_custom_call.1}
  #allocation0 [shape = 'u32[]', space=smem, size = 0x4, offset = 0x4, fixed_abs, tag = 'smem constant byte address 0x4 - core index']
  #allocation1 [shape = 'u32[144,128]{1,0:T(1,128)}', space=vmem, size = 0x12000, scoped, tag = 'internal scratch']
  %s0 = inlined_call_operand.vmem [shape: f32[2,3,256], index: 0, kind: input, shape index: {}]
  %s1 = inlined_call_operand.vmem [shape: f32[2,4,2,64], index: 1, kind: input, shape index: {}]
  %s2 = inlined_call_operand.vmem [shape: f32[16,3], index: 2, kind: input, shape index: {}]
  %s3 = inlined_call_operand.vmem [shape: f32[16,1], index: 3, kind: input, shape index: {}]
  %s4 = inlined_call_operand.vmem [shape: f32[32,16], index: 4, kind: input, shape index: {}]
  %s5 = inlined_call_operand.vmem [shape: f32[32,1], index: 5, kind: input, shape index: {}]
  %s6 = inlined_call_operand.vmem [shape: f32[64,32], index: 6, kind: input, shape index: {}]
  %s7 = inlined_call_operand.vmem [shape: f32[64,1], index: 7, kind: input, shape index: {}]
  %s8 = inlined_call_operand.vmem [shape: f32[32,64], index: 8, kind: input, shape index: {}]
  %s9 = inlined_call_operand.vmem [shape: f32[32,1], index: 9, kind: input, shape index: {}]
  %s10 = inlined_call_operand.vmem [shape: f32[4,34,2], index: 10, kind: input, shape index: {}]
  %s11 = inlined_call_operand.vmem [shape: f32[4,34,32], index: 11, kind: input, shape index: {}]
  %s12 = inlined_call_operand.vmem [shape: f32[4,34,1], index: 12, kind: input, shape index: {}]
  %s13 = inlined_call_operand.vmem [shape: f32[4,17,34], index: 13, kind: input, shape index: {}]
  %s14 = inlined_call_operand.vmem [shape: f32[4,17,1], index: 14, kind: input, shape index: {}]
  %s15 = inlined_call_operand.vmem [shape: f32[4,8,17], index: 15, kind: input, shape index: {}]
  %s16 = inlined_call_operand.vmem [shape: f32[4,8,1], index: 16, kind: input, shape index: {}]
  %s17 = inlined_call_operand.vmem [shape: f32[4,3,8], index: 17, kind: input, shape index: {}]
  %s18 = inlined_call_operand.vmem [shape: f32[4,3,1], index: 18, kind: input, shape index: {}]
  %s19 = inlined_call_operand.vmem [shape: f32[2,3,256], index: 19, kind: output, shape index: {}]
  %s20 = sld [smem:[#allocation0]]
  $region109: #{tpu_custom_call.1} parent=0
    _
  %s22 = ssub.s32 1, %s20
  %s23 = scalar_select 0, %s22, %s20
  loop: start=0, step=1, limit=4
  $region2: #{tpu_custom_call.1} parent=0 // loop_pre_header
    _
  $region3: #{tpu_custom_call.1} parent=0 // loop_header
    %s25 = sphi 0, %s29
    %p26 = scmp.ge.s32.totalorder %s25, 4
    %s35 = sphi 0, %s37
    %s38 = sphi 0, %s35
    %s39 = sphi 0, %s38
    %s55 = sphi 0, %s39
    %s61 = sphi 0, %s63
    %s64 = sphi 0, %s61
    %s65 = sphi 0, %s64
    %s81 = sphi 0, %s65
    %s85 = sphi 0, %s85
    %s87 = sphi 0, %s85
    %s88 = sphi 0, %s87
    %s102 = sphi 0, %s88
    %s106 = sphi 0, %s106
    %s108 = sphi 0, %s106
    %s109 = sphi 0, %s108
    %s123 = sphi 0, %s109
    %s127 = sphi 0, %s127
    %s129 = sphi 0, %s127
    %s130 = sphi 0, %s129
    %s144 = sphi 0, %s130
    %s148 = sphi 0, %s148
    %s150 = sphi 0, %s148
    %s151 = sphi 0, %s150
    %s165 = sphi 0, %s151
    %s169 = sphi 0, %s169
    %s171 = sphi 0, %s169
    %s172 = sphi 0, %s171
    %s186 = sphi 0, %s172
    %s190 = sphi 0, %s190
    %s192 = sphi 0, %s190
    %s193 = sphi 0, %s192
    %s207 = sphi 0, %s193
    %s211 = sphi 0, %s211
    %s213 = sphi 0, %s211
    %s214 = sphi 0, %s213
    %s228 = sphi 0, %s214
    %s232 = sphi 0, %s232
    %s234 = sphi 0, %s232
    %s235 = sphi 0, %s234
    %s249 = sphi 0, %s235
    %s253 = sphi 0, %s253
    %s255 = sphi 0, %s253
    %s256 = sphi 0, %s255
    %s270 = sphi 0, %s256
    %s274 = sphi 0, %s274
    %s276 = sphi 0, %s274
    %s277 = sphi 0, %s276
    %s291 = sphi 0, %s277
    %s295 = sphi 0, %s295
    %s297 = sphi 0, %s295
    %s298 = sphi 0, %s297
    %s312 = sphi 0, %s298
    %s316 = sphi 0, %s316
    %s318 = sphi 0, %s316
    %s319 = sphi 0, %s318
    %s333 = sphi 0, %s319
    %s337 = sphi 0, %s337
    %s339 = sphi 0, %s337
    %s340 = sphi 0, %s339
    %s354 = sphi 0, %s340
    %s358 = sphi 0, %s358
    %s360 = sphi 0, %s358
    %s361 = sphi 0, %s360
    %s375 = sphi 0, %s361
    %s379 = sphi 0, %s379
    %s381 = sphi 0, %s379
    %s382 = sphi 0, %s381
    %s396 = sphi 0, %s382
    %s400 = sphi 0, %s400
    %s402 = sphi 0, %s400
    %s403 = sphi 0, %s402
    %s417 = sphi 0, %s403
    %s421 = sphi 0, %s421
    %s423 = sphi 0, %s421
    %s424 = sphi 0, %s423
    %s438 = sphi 0, %s424
    %s444 = sphi 0, %s446
    %s447 = sphi 0, %s444
    %s448 = sphi 0, %s447
    %s464 = sphi 0, %s448
  $region4: #{tpu_custom_call.1} parent=0 // loop_header_branch
    %28 = sbr.rel (%p26) target = $region8
  $region5: #{tpu_custom_call.1} parent=0 // loop_body
    %s30 = ssub.s32 %s25, 1
    %s31 = ssub.s32 %s25, 2
    %s32 = sadd.s32 %s25, 1
    %s33 = ssub.s32 %s25, %s32
    %p34 = scmp.eq.s32.totalorder %s33, 0
    %s36 = sadd.s32 %s35, 1
    %s37 = scalar_select %p34, %s35, %s36
    %p40 = pneg %p34
    %p41 = scmp.eq.s32.totalorder %s25, 1
    %p42 = por %p40, %p41
    %p43 = scmp.ne.s32.totalorder %s35, %s38
    %p44 = scmp.eq.s32.totalorder %s25, 0
    %p45 = por %p43, %p44
    %p46 = scmp.ne.s32.totalorder %s35, %s38
    %p47 = scmp.eq.s32.totalorder %s30, 1
    %p48 = por %p46, %p47
    %p49 = scmp.ne.s32.totalorder %s38, %s39
    %p50 = scmp.eq.s32.totalorder %s30, 0
    %p51 = por %p49, %p50
    %p52 = scmp.ne.s32.totalorder %s38, %s39
    %p53 = scmp.eq.s32.totalorder %s31, 1
    %p54 = por %p52, %p53
    %p56 = scmp.ne.s32.totalorder %s39, %s55
    %p57 = scmp.eq.s32.totalorder %s31, 0
    %p58 = por %p56, %p57
    %s59 = ssub.s32 %s25, %s32
    %p60 = scmp.eq.s32.totalorder %s59, 0
    %s62 = sadd.s32 %s61, 1
    %s63 = scalar_select %p60, %s61, %s62
    %p66 = pneg %p60
    %p67 = scmp.eq.s32.totalorder %s25, 1
    %p68 = por %p66, %p67
    %p69 = scmp.ne.s32.totalorder %s61, %s64
    %p70 = scmp.eq.s32.totalorder %s25, 0
    %p71 = por %p69, %p70
    %p72 = scmp.ne.s32.totalorder %s61, %s64
    %p73 = scmp.eq.s32.totalorder %s30, 1
    %p74 = por %p72, %p73
    %p75 = scmp.ne.s32.totalorder %s64, %s65
    %p76 = scmp.eq.s32.totalorder %s30, 0
    %p77 = por %p75, %p76
    %p78 = scmp.ne.s32.totalorder %s64, %s65
    %p79 = scmp.eq.s32.totalorder %s31, 1
    %p80 = por %p78, %p79
    %p82 = scmp.ne.s32.totalorder %s65, %s81
    %p83 = scmp.eq.s32.totalorder %s31, 0
    %p84 = por %p82, %p83
    %s86 = sadd.s32 %s85, 1
    %p89 = scmp.eq.s32.totalorder %s25, 1
    %p90 = scmp.ne.s32.totalorder %s85, %s87
    %p91 = scmp.eq.s32.totalorder %s25, 0
    %p92 = por %p90, %p91
    %p93 = scmp.ne.s32.totalorder %s85, %s87
    %p94 = scmp.eq.s32.totalorder %s30, 1
    %p95 = por %p93, %p94
    %p96 = scmp.ne.s32.totalorder %s87, %s88
    %p97 = scmp.eq.s32.totalorder %s30, 0
    %p98 = por %p96, %p97
    %p99 = scmp.ne.s32.totalorder %s87, %s88
    %p100 = scmp.eq.s32.totalorder %s31, 1
    %p101 = por %p99, %p100
    %p103 = scmp.ne.s32.totalorder %s88, %s102
    %p104 = scmp.eq.s32.totalorder %s31, 0
    %p105 = por %p103, %p104
    %s107 = sadd.s32 %s106, 1
    %p110 = scmp.eq.s32.totalorder %s25, 1
    %p111 = scmp.ne.s32.totalorder %s106, %s108
    %p112 = scmp.eq.s32.totalorder %s25, 0
    %p113 = por %p111, %p112
    %p114 = scmp.ne.s32.totalorder %s106, %s108
    %p115 = scmp.eq.s32.totalorder %s30, 1
    %p116 = por %p114, %p115
    %p117 = scmp.ne.s32.totalorder %s108, %s109
    %p118 = scmp.eq.s32.totalorder %s30, 0
    %p119 = por %p117, %p118
    %p120 = scmp.ne.s32.totalorder %s108, %s109
    %p121 = scmp.eq.s32.totalorder %s31, 1
    %p122 = por %p120, %p121
    %p124 = scmp.ne.s32.totalorder %s109, %s123
    %p125 = scmp.eq.s32.totalorder %s31, 0
    %p126 = por %p124, %p125
    %s128 = sadd.s32 %s127, 1
    %p131 = scmp.eq.s32.totalorder %s25, 1
    %p132 = scmp.ne.s32.totalorder %s127, %s129
    %p133 = scmp.eq.s32.totalorder %s25, 0
    %p134 = por %p132, %p133
    %p135 = scmp.ne.s32.totalorder %s127, %s129
    %p136 = scmp.eq.s32.totalorder %s30, 1
    %p137 = por %p135, %p136
    %p138 = scmp.ne.s32.totalorder %s129, %s130
    %p139 = scmp.eq.s32.totalorder %s30, 0
    %p140 = por %p138, %p139
    %p141 = scmp.ne.s32.totalorder %s129, %s130
    %p142 = scmp.eq.s32.totalorder %s31, 1
    %p143 = por %p141, %p142
    %p145 = scmp.ne.s32.totalorder %s130, %s144
    %p146 = scmp.eq.s32.totalorder %s31, 0
    %p147 = por %p145, %p146
    %s149 = sadd.s32 %s148, 1
    %p152 = scmp.eq.s32.totalorder %s25, 1
    %p153 = scmp.ne.s32.totalorder %s148, %s150
    %p154 = scmp.eq.s32.totalorder %s25, 0
    %p155 = por %p153, %p154
    %p156 = scmp.ne.s32.totalorder %s148, %s150
    %p157 = scmp.eq.s32.totalorder %s30, 1
    %p158 = por %p156, %p157
    %p159 = scmp.ne.s32.totalorder %s150, %s151
    %p160 = scmp.eq.s32.totalorder %s30, 0
    %p161 = por %p159, %p160
    %p162 = scmp.ne.s32.totalorder %s150, %s151
    %p163 = scmp.eq.s32.totalorder %s31, 1
    %p164 = por %p162, %p163
    %p166 = scmp.ne.s32.totalorder %s151, %s165
    %p167 = scmp.eq.s32.totalorder %s31, 0
    %p168 = por %p166, %p167
    %s170 = sadd.s32 %s169, 1
    %p173 = scmp.eq.s32.totalorder %s25, 1
    %p174 = scmp.ne.s32.totalorder %s169, %s171
    %p175 = scmp.eq.s32.totalorder %s25, 0
    %p176 = por %p174, %p175
    %p177 = scmp.ne.s32.totalorder %s169, %s171
    %p178 = scmp.eq.s32.totalorder %s30, 1
    %p179 = por %p177, %p178
    %p180 = scmp.ne.s32.totalorder %s171, %s172
    %p181 = scmp.eq.s32.totalorder %s30, 0
    %p182 = por %p180, %p181
    %p183 = scmp.ne.s32.totalorder %s171, %s172
    %p184 = scmp.eq.s32.totalorder %s31, 1
    %p185 = por %p183, %p184
    %p187 = scmp.ne.s32.totalorder %s172, %s186
    %p188 = scmp.eq.s32.totalorder %s31, 0
    %p189 = por %p187, %p188
    %s191 = sadd.s32 %s190, 1
    %p194 = scmp.eq.s32.totalorder %s25, 1
    %p195 = scmp.ne.s32.totalorder %s190, %s192
    %p196 = scmp.eq.s32.totalorder %s25, 0
    %p197 = por %p195, %p196
    %p198 = scmp.ne.s32.totalorder %s190, %s192
    %p199 = scmp.eq.s32.totalorder %s30, 1
    %p200 = por %p198, %p199
    %p201 = scmp.ne.s32.totalorder %s192, %s193
    %p202 = scmp.eq.s32.totalorder %s30, 0
    %p203 = por %p201, %p202
    %p204 = scmp.ne.s32.totalorder %s192, %s193
    %p205 = scmp.eq.s32.totalorder %s31, 1
    %p206 = por %p204, %p205
    %p208 = scmp.ne.s32.totalorder %s193, %s207
    %p209 = scmp.eq.s32.totalorder %s31, 0
    %p210 = por %p208, %p209
    %s212 = sadd.s32 %s211, 1
    %p215 = scmp.eq.s32.totalorder %s25, 1
    %p216 = scmp.ne.s32.totalorder %s211, %s213
    %p217 = scmp.eq.s32.totalorder %s25, 0
    %p218 = por %p216, %p217
    %p219 = scmp.ne.s32.totalorder %s211, %s213
    %p220 = scmp.eq.s32.totalorder %s30, 1
    %p221 = por %p219, %p220
    %p222 = scmp.ne.s32.totalorder %s213, %s214
    %p223 = scmp.eq.s32.totalorder %s30, 0
    %p224 = por %p222, %p223
    %p225 = scmp.ne.s32.totalorder %s213, %s214
    %p226 = scmp.eq.s32.totalorder %s31, 1
    %p227 = por %p225, %p226
    %p229 = scmp.ne.s32.totalorder %s214, %s228
    %p230 = scmp.eq.s32.totalorder %s31, 0
    %p231 = por %p229, %p230
    %s233 = sadd.s32 %s232, 1
    %p236 = scmp.eq.s32.totalorder %s25, 1
    %p237 = scmp.ne.s32.totalorder %s232, %s234
    %p238 = scmp.eq.s32.totalorder %s25, 0
    %p239 = por %p237, %p238
    %p240 = scmp.ne.s32.totalorder %s232, %s234
    %p241 = scmp.eq.s32.totalorder %s30, 1
    %p242 = por %p240, %p241
    %p243 = scmp.ne.s32.totalorder %s234, %s235
    %p244 = scmp.eq.s32.totalorder %s30, 0
    %p245 = por %p243, %p244
    %p246 = scmp.ne.s32.totalorder %s234, %s235
    %p247 = scmp.eq.s32.totalorder %s31, 1
    %p248 = por %p246, %p247
    %p250 = scmp.ne.s32.totalorder %s235, %s249
    %p251 = scmp.eq.s32.totalorder %s31, 0
    %p252 = por %p250, %p251
    %s254 = sadd.s32 %s253, 1
    %p257 = scmp.eq.s32.totalorder %s25, 1
    %p258 = scmp.ne.s32.totalorder %s253, %s255
    %p259 = scmp.eq.s32.totalorder %s25, 0
    %p260 = por %p258, %p259
    %p261 = scmp.ne.s32.totalorder %s253, %s255
    %p262 = scmp.eq.s32.totalorder %s30, 1
    %p263 = por %p261, %p262
    %p264 = scmp.ne.s32.totalorder %s255, %s256
    %p265 = scmp.eq.s32.totalorder %s30, 0
    %p266 = por %p264, %p265
    %p267 = scmp.ne.s32.totalorder %s255, %s256
    %p268 = scmp.eq.s32.totalorder %s31, 1
    %p269 = por %p267, %p268
    %p271 = scmp.ne.s32.totalorder %s256, %s270
    %p272 = scmp.eq.s32.totalorder %s31, 0
    %p273 = por %p271, %p272
    %s275 = sadd.s32 %s274, 1
    %p278 = scmp.eq.s32.totalorder %s25, 1
    %p279 = scmp.ne.s32.totalorder %s274, %s276
    %p280 = scmp.eq.s32.totalorder %s25, 0
    %p281 = por %p279, %p280
    %p282 = scmp.ne.s32.totalorder %s274, %s276
    %p283 = scmp.eq.s32.totalorder %s30, 1
    %p284 = por %p282, %p283
    %p285 = scmp.ne.s32.totalorder %s276, %s277
    %p286 = scmp.eq.s32.totalorder %s30, 0
    %p287 = por %p285, %p286
    %p288 = scmp.ne.s32.totalorder %s276, %s277
    %p289 = scmp.eq.s32.totalorder %s31, 1
    %p290 = por %p288, %p289
    %p292 = scmp.ne.s32.totalorder %s277, %s291
    %p293 = scmp.eq.s32.totalorder %s31, 0
    %p294 = por %p292, %p293
    %s296 = sadd.s32 %s295, 1
    %p299 = scmp.eq.s32.totalorder %s25, 1
    %p300 = scmp.ne.s32.totalorder %s295, %s297
    %p301 = scmp.eq.s32.totalorder %s25, 0
    %p302 = por %p300, %p301
    %p303 = scmp.ne.s32.totalorder %s295, %s297
    %p304 = scmp.eq.s32.totalorder %s30, 1
    %p305 = por %p303, %p304
    %p306 = scmp.ne.s32.totalorder %s297, %s298
    %p307 = scmp.eq.s32.totalorder %s30, 0
    %p308 = por %p306, %p307
    %p309 = scmp.ne.s32.totalorder %s297, %s298
    %p310 = scmp.eq.s32.totalorder %s31, 1
    %p311 = por %p309, %p310
    %p313 = scmp.ne.s32.totalorder %s298, %s312
    %p314 = scmp.eq.s32.totalorder %s31, 0
    %p315 = por %p313, %p314
    %s317 = sadd.s32 %s316, 1
    %p320 = scmp.eq.s32.totalorder %s25, 1
    %p321 = scmp.ne.s32.totalorder %s316, %s318
    %p322 = scmp.eq.s32.totalorder %s25, 0
    %p323 = por %p321, %p322
    %p324 = scmp.ne.s32.totalorder %s316, %s318
    %p325 = scmp.eq.s32.totalorder %s30, 1
    %p326 = por %p324, %p325
    %p327 = scmp.ne.s32.totalorder %s318, %s319
    %p328 = scmp.eq.s32.totalorder %s30, 0
    %p329 = por %p327, %p328
    %p330 = scmp.ne.s32.totalorder %s318, %s319
    %p331 = scmp.eq.s32.totalorder %s31, 1
    %p332 = por %p330, %p331
    %p334 = scmp.ne.s32.totalorder %s319, %s333
    %p335 = scmp.eq.s32.totalorder %s31, 0
    %p336 = por %p334, %p335
    %s338 = sadd.s32 %s337, 1
    %p341 = scmp.eq.s32.totalorder %s25, 1
    %p342 = scmp.ne.s32.totalorder %s337, %s339
    %p343 = scmp.eq.s32.totalorder %s25, 0
    %p344 = por %p342, %p343
    %p345 = scmp.ne.s32.totalorder %s337, %s339
    %p346 = scmp.eq.s32.totalorder %s30, 1
    %p347 = por %p345, %p346
    %p348 = scmp.ne.s32.totalorder %s339, %s340
    %p349 = scmp.eq.s32.totalorder %s30, 0
    %p350 = por %p348, %p349
    %p351 = scmp.ne.s32.totalorder %s339, %s340
    %p352 = scmp.eq.s32.totalorder %s31, 1
    %p353 = por %p351, %p352
    %p355 = scmp.ne.s32.totalorder %s340, %s354
    %p356 = scmp.eq.s32.totalorder %s31, 0
    %p357 = por %p355, %p356
    %s359 = sadd.s32 %s358, 1
    %p362 = scmp.eq.s32.totalorder %s25, 1
    %p363 = scmp.ne.s32.totalorder %s358, %s360
    %p364 = scmp.eq.s32.totalorder %s25, 0
    %p365 = por %p363, %p364
    %p366 = scmp.ne.s32.totalorder %s358, %s360
    %p367 = scmp.eq.s32.totalorder %s30, 1
    %p368 = por %p366, %p367
    %p369 = scmp.ne.s32.totalorder %s360, %s361
    %p370 = scmp.eq.s32.totalorder %s30, 0
    %p371 = por %p369, %p370
    %p372 = scmp.ne.s32.totalorder %s360, %s361
    %p373 = scmp.eq.s32.totalorder %s31, 1
    %p374 = por %p372, %p373
    %p376 = scmp.ne.s32.totalorder %s361, %s375
    %p377 = scmp.eq.s32.totalorder %s31, 0
    %p378 = por %p376, %p377
    %s380 = sadd.s32 %s379, 1
    %p383 = scmp.eq.s32.totalorder %s25, 1
    %p384 = scmp.ne.s32.totalorder %s379, %s381
    %p385 = scmp.eq.s32.totalorder %s25, 0
    %p386 = por %p384, %p385
    %p387 = scmp.ne.s32.totalorder %s379, %s381
    %p388 = scmp.eq.s32.totalorder %s30, 1
    %p389 = por %p387, %p388
    %p390 = scmp.ne.s32.totalorder %s381, %s382
    %p391 = scmp.eq.s32.totalorder %s30, 0
    %p392 = por %p390, %p391
    %p393 = scmp.ne.s32.totalorder %s381, %s382
    %p394 = scmp.eq.s32.totalorder %s31, 1
    %p395 = por %p393, %p394
    %p397 = scmp.ne.s32.totalorder %s382, %s396
    %p398 = scmp.eq.s32.totalorder %s31, 0
    %p399 = por %p397, %p398
    %s401 = sadd.s32 %s400, 1
    %p404 = scmp.eq.s32.totalorder %s25, 1
    %p405 = scmp.ne.s32.totalorder %s400, %s402
    %p406 = scmp.eq.s32.totalorder %s25, 0
    %p407 = por %p405, %p406
    %p408 = scmp.ne.s32.totalorder %s400, %s402
    %p409 = scmp.eq.s32.totalorder %s30, 1
    %p410 = por %p408, %p409
    %p411 = scmp.ne.s32.totalorder %s402, %s403
    %p412 = scmp.eq.s32.totalorder %s30, 0
    %p413 = por %p411, %p412
    %p414 = scmp.ne.s32.totalorder %s402, %s403
    %p415 = scmp.eq.s32.totalorder %s31, 1
    %p416 = por %p414, %p415
    %p418 = scmp.ne.s32.totalorder %s403, %s417
    %p419 = scmp.eq.s32.totalorder %s31, 0
    %p420 = por %p418, %p419
    %s422 = sadd.s32 %s421, 1
    %p425 = scmp.eq.s32.totalorder %s25, 1
    %p426 = scmp.ne.s32.totalorder %s421, %s423
    %p427 = scmp.eq.s32.totalorder %s25, 0
    %p428 = por %p426, %p427
    %p429 = scmp.ne.s32.totalorder %s421, %s423
    %p430 = scmp.eq.s32.totalorder %s30, 1
    %p431 = por %p429, %p430
    %p432 = scmp.ne.s32.totalorder %s423, %s424
    %p433 = scmp.eq.s32.totalorder %s30, 0
    %p434 = por %p432, %p433
    %p435 = scmp.ne.s32.totalorder %s423, %s424
    %p436 = scmp.eq.s32.totalorder %s31, 1
    %p437 = por %p435, %p436
    %p439 = scmp.ne.s32.totalorder %s424, %s438
    %p440 = scmp.eq.s32.totalorder %s31, 0
    %p441 = por %p439, %p440
    %s442 = ssub.s32 %s25, %s32
    %p443 = scmp.eq.s32.totalorder %s442, 0
    %s445 = sadd.s32 %s444, 1
    %s446 = scalar_select %p443, %s444, %s445
    %p449 = pneg %p443
    %p450 = scmp.eq.s32.totalorder %s25, 1
    %p451 = por %p449, %p450
    %p452 = scmp.ne.s32.totalorder %s444, %s447
    %p453 = scmp.eq.s32.totalorder %s25, 0
    %p454 = por %p452, %p453
    %p455 = scmp.ne.s32.totalorder %s444, %s447
    %p456 = scmp.eq.s32.totalorder %s30, 1
    %p457 = por %p455, %p456
    %p458 = scmp.ne.s32.totalorder %s447, %s448
    %p459 = scmp.eq.s32.totalorder %s30, 0
    %p460 = por %p458, %p459
    %p461 = scmp.ne.s32.totalorder %s447, %s448
    %p462 = scmp.eq.s32.totalorder %s31, 1
    %p463 = por %p461, %p462
    %p465 = scmp.ne.s32.totalorder %s448, %s464
    %p466 = scmp.eq.s32.totalorder %s31, 0
    %p467 = por %p465, %p466
    %p468 = scmp.le.s32.totalorder 1, %s25
    %p469 = scmp.lt.s32.totalorder %s25, 3
    %p470 = pnand %p468, %p469
    %p471 = pneg %p470
    // Predicated region
    $region9: #{tpu_custom_call.1} parent=5 // pred_check
      _
    $region10: #{tpu_custom_call.1} parent=5 // pred_check_branch
      %473 = sbr.rel (%p470) target = $region12
    $region11: #{tpu_custom_call.1} parent=5 // pred_region
      %s474 = ssub.s32 %s25, 1
      // Predicated region
      $region13: #{tpu_custom_call.1} parent=11 // pred_check
        %p475 = pneg %p98
      $region14: #{tpu_custom_call.1} parent=11 // pred_check_branch
        %477 = sbr.rel (%p475) target = $region16
      $region15: #{tpu_custom_call.1} parent=11 // pred_region
        _
      $region16: #{tpu_custom_call.1} parent=11 // pred_fallthru
        _
      // Predicated region
      $region17: #{tpu_custom_call.1} parent=11 // pred_check
        %p478 = pneg %p119
      $region18: #{tpu_custom_call.1} parent=11 // pred_check_branch
        %480 = sbr.rel (%p478) target = $region20
      $region19: #{tpu_custom_call.1} parent=11 // pred_region
        _
      $region20: #{tpu_custom_call.1} parent=11 // pred_fallthru
        _
      // Predicated region
      $region21: #{tpu_custom_call.1} parent=11 // pred_check
        %p481 = pneg %p140
      $region22: #{tpu_custom_call.1} parent=11 // pred_check_branch
        %483 = sbr.rel (%p481) target = $region24
      $region23: #{tpu_custom_call.1} parent=11 // pred_region
        _
      $region24: #{tpu_custom_call.1} parent=11 // pred_fallthru
        _
      // Predicated region
      $region25: #{tpu_custom_call.1} parent=11 // pred_check
        %p484 = pneg %p161
      $region26: #{tpu_custom_call.1} parent=11 // pred_check_branch
        %486 = sbr.rel (%p484) target = $region28
      $region27: #{tpu_custom_call.1} parent=11 // pred_region
        _
      $region28: #{tpu_custom_call.1} parent=11 // pred_fallthru
        _
      // Predicated region
      $region29: #{tpu_custom_call.1} parent=11 // pred_check
        %p487 = pneg %p182
      $region30: #{tpu_custom_call.1} parent=11 // pred_check_branch
        %489 = sbr.rel (%p487) target = $region32
      $region31: #{tpu_custom_call.1} parent=11 // pred_region
        _
      $region32: #{tpu_custom_call.1} parent=11 // pred_fallthru
        _
      // Predicated region
      $region33: #{tpu_custom_call.1} parent=11 // pred_check
        %p490 = pneg %p203
      $region34: #{tpu_custom_call.1} parent=11 // pred_check_branch
        %492 = sbr.rel (%p490) target = $region36
      $region35: #{tpu_custom_call.1} parent=11 // pred_region
        _
      $region36: #{tpu_custom_call.1} parent=11 // pred_fallthru
        _
      // Predicated region
      $region37: #{tpu_custom_call.1} parent=11 // pred_check
        %p493 = pneg %p224
      $region38: #{tpu_custom_call.1} parent=11 // pred_check_branch
        %495 = sbr.rel (%p493) target = $region40
      $region39: #{tpu_custom_call.1} parent=11 // pred_region
        _
      $region40: #{tpu_custom_call.1} parent=11 // pred_fallthru
        _
      // Predicated region
      $region41: #{tpu_custom_call.1} parent=11 // pred_check
        %p496 = pneg %p245
      $region42: #{tpu_custom_call.1} parent=11 // pred_check_branch
        %498 = sbr.rel (%p496) target = $region44
      $region43: #{tpu_custom_call.1} parent=11 // pred_region
        _
      $region44: #{tpu_custom_call.1} parent=11 // pred_fallthru
        _
      // Predicated region
      $region45: #{tpu_custom_call.1} parent=11 // pred_check
        %p499 = pneg %p266
      $region46: #{tpu_custom_call.1} parent=11 // pred_check_branch
        %501 = sbr.rel (%p499) target = $region48
      $region47: #{tpu_custom_call.1} parent=11 // pred_region
        _
      $region48: #{tpu_custom_call.1} parent=11 // pred_fallthru
        _
      // Predicated region
      $region49: #{tpu_custom_call.1} parent=11 // pred_check
        %p502 = pneg %p287
      $region50: #{tpu_custom_call.1} parent=11 // pred_check_branch
        %504 = sbr.rel (%p502) target = $region52
      $region51: #{tpu_custom_call.1} parent=11 // pred_region
        _
      $region52: #{tpu_custom_call.1} parent=11 // pred_fallthru
        _
      // Predicated region
      $region53: #{tpu_custom_call.1} parent=11 // pred_check
        %p505 = pneg %p308
      $region54: #{tpu_custom_call.1} parent=11 // pred_check_branch
        %507 = sbr.rel (%p505) target = $region56
      $region55: #{tpu_custom_call.1} parent=11 // pred_region
        _
      $region56: #{tpu_custom_call.1} parent=11 // pred_fallthru
        _
      // Predicated region
      $region57: #{tpu_custom_call.1} parent=11 // pred_check
        %p508 = pneg %p329
      $region58: #{tpu_custom_call.1} parent=11 // pred_check_branch
        %510 = sbr.rel (%p508) target = $region60
      $region59: #{tpu_custom_call.1} parent=11 // pred_region
        _
      $region60: #{tpu_custom_call.1} parent=11 // pred_fallthru
        _
      // Predicated region
      $region61: #{tpu_custom_call.1} parent=11 // pred_check
        %p511 = pneg %p350
      $region62: #{tpu_custom_call.1} parent=11 // pred_check_branch
        %513 = sbr.rel (%p511) target = $region64
      $region63: #{tpu_custom_call.1} parent=11 // pred_region
        _
      $region64: #{tpu_custom_call.1} parent=11 // pred_fallthru
        _
      // Predicated region
      $region65: #{tpu_custom_call.1} parent=11 // pred_check
        %p514 = pneg %p371
      $region66: #{tpu_custom_call.1} parent=11 // pred_check_branch
        %516 = sbr.rel (%p514) target = $region68
      $region67: #{tpu_custom_call.1} parent=11 // pred_region
        _
      $region68: #{tpu_custom_call.1} parent=11 // pred_fallthru
        _
      // Predicated region
      $region69: #{tpu_custom_call.1} parent=11 // pred_check
        %p517 = pneg %p392
      $region70: #{tpu_custom_call.1} parent=11 // pred_check_branch
        %519 = sbr.rel (%p517) target = $region72
      $region71: #{tpu_custom_call.1} parent=11 // pred_region
        _
      $region72: #{tpu_custom_call.1} parent=11 // pred_fallthru
        _
      // Predicated region
      $region73: #{tpu_custom_call.1} parent=11 // pred_check
        %p520 = pneg %p413
      $region74: #{tpu_custom_call.1} parent=11 // pred_check_branch
        %522 = sbr.rel (%p520) target = $region76
      $region75: #{tpu_custom_call.1} parent=11 // pred_region
        _
      $region76: #{tpu_custom_call.1} parent=11 // pred_fallthru
        _
      // Predicated region
      $region77: #{tpu_custom_call.1} parent=11 // pred_check
        %p523 = pneg %p434
      $region78: #{tpu_custom_call.1} parent=11 // pred_check_branch
        %525 = sbr.rel (%p523) target = $region80
      $region79: #{tpu_custom_call.1} parent=11 // pred_region
        _
      $region80: #{tpu_custom_call.1} parent=11 // pred_fallthru
        _
    $region12: #{tpu_custom_call.1} parent=5 // pred_fallthru
      _
    %p526 = scmp.lt.s32.totalorder %s25, 2
    // Predicated region
    $region81: #{tpu_custom_call.1} parent=5 // pred_check
      %p527 = pneg %p526
    $region82: #{tpu_custom_call.1} parent=5 // pred_check_branch
      %529 = sbr.rel (%p527) target = $region84
    $region83: #{tpu_custom_call.1} parent=5 // pred_region
      // Predicated region
      $region85: #{tpu_custom_call.1} parent=83 // pred_check
        %p530 = pneg %p45
      $region86: #{tpu_custom_call.1} parent=83 // pred_check_branch
        %532 = sbr.rel (%p530) target = $region88
      $region87: #{tpu_custom_call.1} parent=83 // pred_region
        %p533 = scmp.lt.s32.totalorder %s25, 1
        %s534 = scalar_select %p533, %s25, 1
        %s535 = smul.addr %s534, 2
        %s536 = smul.addr %s535, 4
        %s537 = scalar_lea.vmem %s0, %s536
      $region88: #{tpu_custom_call.1} parent=83 // pred_fallthru
        _
      // Predicated region
      $region89: #{tpu_custom_call.1} parent=83 // pred_check
        %p538 = pneg %p71
      $region90: #{tpu_custom_call.1} parent=83 // pred_check_branch
        %540 = sbr.rel (%p538) target = $region92
      $region91: #{tpu_custom_call.1} parent=83 // pred_region
        %p541 = scmp.lt.s32.totalorder %s25, 1
        %s542 = scalar_select %p541, %s25, 1
        %s543 = smul.addr %s542, 4
        %s544 = smul.addr %s543, 2
        %s545 = scalar_lea.vmem %s1, %s544
      $region92: #{tpu_custom_call.1} parent=83 // pred_fallthru
        _
    $region84: #{tpu_custom_call.1} parent=5 // pred_fallthru
      _
    %p546 = scmp.le.s32.totalorder 1, %s25
    %p547 = scmp.lt.s32.totalorder %s25, 3
    %p548 = pnand %p546, %p547
    %p549 = pneg %p548
    // Predicated region
    $region93: #{tpu_custom_call.1} parent=5 // pred_check
      _
    $region94: #{tpu_custom_call.1} parent=5 // pred_check_branch
      %551 = sbr.rel (%p548) target = $region96
    $region95: #{tpu_custom_call.1} parent=5 // pred_region
      %s552 = ssub.s32 %s25, 1
      %p553 = scmp.lt.s32.totalorder %s30, 1
      %s554 = scalar_select %p553, %s30, 1
      %s555 = smul.addr %s554, 2
      %s556 = smul.addr %s555, 4
      %s557 = scalar_lea.vmem %s0, %s556
      %p558 = pneg %p51
      %p559 = pneg %p48
      %p560 = scmp.lt.s32.totalorder %s30, 1
      %s561 = scalar_select %p560, %s30, 1
      %s562 = smul.addr %s561, 4
      %s563 = smul.addr %s562, 2
      %s564 = scalar_lea.vmem %s1, %s563
      %p565 = pneg %p77
      %p566 = pneg %p74
      %p567 = pneg %p98
      %p568 = pneg %p95
      %p569 = pneg %p119
      %p570 = pneg %p116
      %p571 = pneg %p140
      %p572 = pneg %p137
      %p573 = pneg %p161
      %p574 = pneg %p158
      %p575 = pneg %p182
      %p576 = pneg %p179
      %p577 = pneg %p203
      %p578 = pneg %p200
      %p579 = pneg %p224
      %p580 = pneg %p221
      %p581 = pneg %p245
      %p582 = pneg %p242
      %p583 = pneg %p266
      %p584 = pneg %p263
      %p585 = pneg %p287
      %p586 = pneg %p284
      %p587 = pneg %p308
      %p588 = pneg %p305
      %p589 = pneg %p329
      %p590 = pneg %p326
      %p591 = pneg %p350
      %p592 = pneg %p347
      %p593 = pneg %p371
      %p594 = pneg %p368
      %p595 = pneg %p392
      %p596 = pneg %p389
      %p597 = pneg %p413
      %p598 = pneg %p410
      %p599 = pneg %p434
      %p600 = pneg %p431
      %p601 = pneg %p460
      %p602 = pneg %p457
      %p603 = scmp.lt.s32.totalorder %s30, 1
      %s604 = scalar_select %p603, %s30, 1
      %s605 = smul.addr %s604, 2
      %s606 = smul.addr %s605, 4
      %s607 = scalar_lea.vmem %s19, %s606
      %p608 = scmp.lt.s32.totalorder %s30, 1
      %s609 = scalar_select %p608, %s30, 1
      %s610 = smul.addr %s609, 2
      %s611 = smul.addr %s610, 4
      %s612 = scalar_lea.vmem %s0, %s611
      %p613 = scmp.lt.s32.totalorder %s30, 1
      %s614 = scalar_select %p613, %s30, 1
      %s615 = smul.addr %s614, 4
      %s616 = smul.addr %s615, 2
      %s617 = scalar_lea.vmem %s1, %s616
      %p618 = scmp.lt.s32.totalorder %s30, 1
      %s619 = scalar_select %p618, %s30, 1
      %s620 = smul.addr %s619, 2
      %s621 = smul.addr %s620, 4
      %s622 = scalar_lea.vmem %s19, %s621
      %v623 = vld [vmem:[%s612] sm:$0x77]
      %v624 = vld [vmem:[%s2] sm:$0xff]
      %v625 = vld [vmem:[%s2 + $0x8] sm:$0xff]
      %v626 = vld [vmem:[%s3] sm:$0xff]
      %v627 = vld [vmem:[%s3 + $0x8] sm:$0xff]
      %629 = vset.pattern.permute.xlu0 0
      %630 = vperm.xlu0 %629, %v626
      %v631 = vpop.permute.xlu0 %630
      %634 = vset.pattern.permute.xlu0 0
      %635 = vperm.xlu0 %634, %v627
      %v636 = vpop.permute.xlu0 %635
      %v639 = vcombine.high %v623, %v623
      %vm640 = vcmask 23552
      %v642 = vsel %vm640, %v624, 0
      %v645 = vsel %vm640, %v625, 0
      %vm647 = vcmask 1042432
      %v648 = vsel %vm647, %v623, 0
      %v650 = vsel %vm647, %v639, 0
      %652 = vmatprep.subr.mxu0 %v650
      %653 = vmatpush1.msra.mxu0 %v648
      %654 = vmatprep.subr.mxu0 0.0
      %655 = vmatpush1.msra.mxu0 0.0
      %656 = vmatprep.subr.mxu0 0.0
      %657 = vmatpush1.msra.mxu0 0.0
      %658 = vmatprep.subr.mxu0 0.0
      %659 = vmatpush1.msra.mxu0 0.0
      %660 = vmatprep.subr.mxu0 0.0
      %661 = vmatpush1.msra.mxu0 0.0
      %662 = vmatprep.subr.mxu0 0.0
      %663 = vmatpush1.msra.mxu0 0.0
      %664 = vmatprep.subr.mxu0 0.0
      %665 = vmatpush1.msra.mxu0 0.0
      %666 = vmatprep.subr.mxu0 0.0
      %667 = vmatpush1.msra.mxu0 0.0
      %668 = vmatprep.subr.mxu0 0.0
      %669 = vmatpush1.msra.mxu0 0.0
      %670 = vmatprep.subr.mxu0 0.0
      %671 = vmatpush1.msra.mxu0 0.0
      %672 = vmatprep.subr.mxu0 0.0
      %673 = vmatpush1.msra.mxu0 0.0
      %674 = vmatprep.subr.mxu0 0.0
      %675 = vmatpush1.msra.mxu0 0.0
      %676 = vmatprep.subr.mxu0 0.0
      %677 = vmatpush1.msra.mxu0 0.0
      %678 = vmatprep.subr.mxu0 0.0
      %679 = vmatpush1.msra.mxu0 0.0
      %680 = vmatprep.subr.mxu0 0.0
      %681 = vmatpush1.msra.mxu0 0.0
      %682 = vmatprep.subr.mxu0 0.0
      %683 = vmatpush1.msra.mxu0 0.0
      %684 = vmatprep.subr.mxu0 0.0
      %685 = vmatpush1.msra.mxu0 0.0
      %686 = vmatprep.subr.mxu0 0.0
      %687 = vmatpush1.msra.mxu0 0.0
      %688 = vmatprep.subr.mxu0 0.0
      %689 = vmatpush1.msra.mxu0 0.0
      %690 = vmatprep.subr.mxu0 0.0
      %691 = vmatpush1.msra.mxu0 0.0
      %692 = vmatprep.subr.mxu0 0.0
      %693 = vmatpush1.msra.mxu0 0.0
      %694 = vmatprep.subr.mxu0 0.0
      %695 = vmatpush1.msra.mxu0 0.0
      %696 = vmatprep.subr.mxu0 0.0
      %697 = vmatpush1.msra.mxu0 0.0
      %698 = vmatprep.subr.mxu0 0.0
      %699 = vmatpush1.msra.mxu0 0.0
      %700 = vmatprep.subr.mxu0 0.0
      %701 = vmatpush1.msra.mxu0 0.0
      %702 = vmatprep.subr.mxu0 0.0
      %703 = vmatpush1.msra.mxu0 0.0
      %704 = vmatprep.subr.mxu0 0.0
      %705 = vmatpush1.msra.mxu0 0.0
      %706 = vmatprep.subr.mxu0 0.0
      %707 = vmatpush1.msra.mxu0 0.0
      %708 = vmatprep.subr.mxu0 0.0
      %709 = vmatpush1.msra.mxu0 0.0
      %710 = vmatprep.subr.mxu0 0.0
      %711 = vmatpush1.msra.mxu0 0.0
      %712 = vmatprep.subr.mxu0 0.0
      %713 = vmatpush1.msra.mxu0 0.0
      %714 = vmatprep.subr.mxu0 0.0
      %715 = vmatpush1.msra.mxu0 0.0
      %716 = vmatprep.mubr.f32.mxu0 0.0
      %717 = vmatmul.mubr.f32.gmra.mrb[0].mxu0 %v642
      %v718 = vpop.f32.mrb[0].mxu0
      %v719 = vadd.f32 %v631, %v718
      %v720 = vpop.f32.mrb[0].mxu0
      %v721 = vadd.f32 %v631, %v720
      %722 = vmatprep.mubr.f32.mxu0 0.0
      %723 = vmatmul.mubr.f32.gmra.mrb[0].mxu0 %v645
      %v724 = vpop.f32.mrb[0].mxu0
      %v725 = vadd.f32 %v636, %v724
      %v726 = vpop.f32.mrb[0].mxu0
      %v727 = vadd.f32 %v636, %v726
      %728 = vdwg.mxu0
      %v729 = vmax.f32 %v719, 0.0
      %v730 = vmax.f32 %v721, 0.0
      %v731 = vmax.f32 %v725, 0.0
      %v732 = vmax.f32 %v727, 0.0
      %v733 = vld [vmem:[%s4] sm:$0xff]
      %v734 = vld [vmem:[%s4 + $0x8] sm:$0xff]
      %v735 = vld [vmem:[%s4 + $0x10] sm:$0xff]
      %v736 = vld [vmem:[%s4 + $0x18] sm:$0xff]
      %v737 = vld [vmem:[%s5] sm:$0xff]
      %v738 = vld [vmem:[%s5 + $0x8] sm:$0xff]
      %v739 = vld [vmem:[%s5 + $0x10] sm:$0xff]
      %v740 = vld [vmem:[%s5 + $0x18] sm:$0xff]
      %742 = vset.pattern.permute.xlu0 0
      %743 = vperm.xlu0 %742, %v737
      %v744 = vpop.permute.xlu0 %743
      %747 = vset.pattern.permute.xlu0 0
      %748 = vperm.xlu0 %747, %v738
      %v749 = vpop.permute.xlu0 %748
      %752 = vset.pattern.permute.xlu0 0
      %753 = vperm.xlu0 %752, %v739
      %v754 = vpop.permute.xlu0 %753
      %757 = vset.pattern.permute.xlu0 0
      %758 = vperm.xlu0 %757, %v740
      %v759 = vpop.permute.xlu0 %758
      %vm761 = vcmask 130048
      %v763 = vsel %vm761, %v733, 0
      %v766 = vsel %vm761, %v734, 0
      %v769 = vsel %vm761, %v735, 0
      %v772 = vsel %vm761, %v736, 0
      %774 = vmatprep.subr.mxu0 %v730
      %775 = vmatpush1.msra.mxu0 %v729
      %776 = vmatprep.subr.mxu0 %v732
      %777 = vmatpush1.msra.mxu0 %v731
      %778 = vmatprep.subr.mxu0 0.0
      %779 = vmatpush1.msra.mxu0 0.0
      %780 = vmatprep.subr.mxu0 0.0
      %781 = vmatpush1.msra.mxu0 0.0
      %782 = vmatprep.subr.mxu0 0.0
      %783 = vmatpush1.msra.mxu0 0.0
      %784 = vmatprep.subr.mxu0 0.0
      %785 = vmatpush1.msra.mxu0 0.0
      %786 = vmatprep.subr.mxu0 0.0
      %787 = vmatpush1.msra.mxu0 0.0
      %788 = vmatprep.subr.mxu0 0.0
      %789 = vmatpush1.msra.mxu0 0.0
      %790 = vmatprep.subr.mxu0 0.0
      %791 = vmatpush1.msra.mxu0 0.0
      %792 = vmatprep.subr.mxu0 0.0
      %793 = vmatpush1.msra.mxu0 0.0
      %794 = vmatprep.subr.mxu0 0.0
      %795 = vmatpush1.msra.mxu0 0.0
      %796 = vmatprep.subr.mxu0 0.0
      %797 = vmatpush1.msra.mxu0 0.0
      %798 = vmatprep.subr.mxu0 0.0
      %799 = vmatpush1.msra.mxu0 0.0
      %800 = vmatprep.subr.mxu0 0.0
      %801 = vmatpush1.msra.mxu0 0.0
      %802 = vmatprep.subr.mxu0 0.0
      %803 = vmatpush1.msra.mxu0 0.0
      %804 = vmatprep.subr.mxu0 0.0
      %805 = vmatpush1.msra.mxu0 0.0
      %806 = vmatprep.subr.mxu0 0.0
      %807 = vmatpush1.msra.mxu0 0.0
      %808 = vmatprep.subr.mxu0 0.0
      %809 = vmatpush1.msra.mxu0 0.0
      %810 = vmatprep.subr.mxu0 0.0
      %811 = vmatpush1.msra.mxu0 0.0
      %812 = vmatprep.subr.mxu0 0.0
      %813 = vmatpush1.msra.mxu0 0.0
      %814 = vmatprep.subr.mxu0 0.0
      %815 = vmatpush1.msra.mxu0 0.0
      %816 = vmatprep.subr.mxu0 0.0
      %817 = vmatpush1.msra.mxu0 0.0
      %818 = vmatprep.subr.mxu0 0.0
      %819 = vmatpush1.msra.mxu0 0.0
      %820 = vmatprep.subr.mxu0 0.0
      %821 = vmatpush1.msra.mxu0 0.0
      %822 = vmatprep.subr.mxu0 0.0
      %823 = vmatpush1.msra.mxu0 0.0
      %824 = vmatprep.subr.mxu0 0.0
      %825 = vmatpush1.msra.mxu0 0.0
      %826 = vmatprep.subr.mxu0 0.0
      %827 = vmatpush1.msra.mxu0 0.0
      %828 = vmatprep.subr.mxu0 0.0
      %829 = vmatpush1.msra.mxu0 0.0
      %830 = vmatprep.subr.mxu0 0.0
      %831 = vmatpush1.msra.mxu0 0.0
      %832 = vmatprep.subr.mxu0 0.0
      %833 = vmatpush1.msra.mxu0 0.0
      %834 = vmatprep.subr.mxu0 0.0
      %835 = vmatpush1.msra.mxu0 0.0
      %836 = vmatprep.subr.mxu0 0.0
      %837 = vmatpush1.msra.mxu0 0.0
      %838 = vmatprep.mubr.f32.mxu0 0.0
      %839 = vmatmul.mubr.f32.gmra.mrb[0].mxu0 %v763
      %v840 = vpop.f32.mrb[0].mxu0
      %v841 = vadd.f32 %v744, %v840
      %v842 = vpop.f32.mrb[0].mxu0
      %v843 = vadd.f32 %v744, %v842
      %844 = vmatprep.mubr.f32.mxu0 0.0
      %845 = vmatmul.mubr.f32.gmra.mrb[0].mxu0 %v766
      %v846 = vpop.f32.mrb[0].mxu0
      %v847 = vadd.f32 %v749, %v846
      %v848 = vpop.f32.mrb[0].mxu0
      %v849 = vadd.f32 %v749, %v848
      %850 = vmatprep.mubr.f32.mxu0 0.0
      %851 = vmatmul.mubr.f32.gmra.mrb[0].mxu0 %v769
      %v852 = vpop.f32.mrb[0].mxu0
      %v853 = vadd.f32 %v754, %v852
      %v854 = vpop.f32.mrb[0].mxu0
      %v855 = vadd.f32 %v754, %v854
      %856 = vmatprep.mubr.f32.mxu0 0.0
      %857 = vmatmul.mubr.f32.gmra.mrb[0].mxu0 %v772
      %v858 = vpop.f32.mrb[0].mxu0
      %v859 = vadd.f32 %v759, %v858
      %v860 = vpop.f32.mrb[0].mxu0
      %v861 = vadd.f32 %v759, %v860
      %862 = vdwg.mxu0
      %v863 = vmax.f32 %v841, 0.0
      %v864 = vmax.f32 %v843, 0.0
      %v865 = vmax.f32 %v847, 0.0
      %v866 = vmax.f32 %v849, 0.0
      %v867 = vmax.f32 %v853, 0.0
      %v868 = vmax.f32 %v855, 0.0
      %v869 = vmax.f32 %v859, 0.0
      %v870 = vmax.f32 %v861, 0.0
      %v871 = vld [vmem:[%s6] sm:$0xff]
      %v872 = vld [vmem:[%s6 + $0x8] sm:$0xff]
      %v873 = vld [vmem:[%s6 + $0x10] sm:$0xff]
      %v874 = vld [vmem:[%s6 + $0x18] sm:$0xff]
      %v875 = vld [vmem:[%s6 + $0x20] sm:$0xff]
      %v876 = vld [vmem:[%s6 + $0x28] sm:$0xff]
      %v877 = vld [vmem:[%s6 + $0x30] sm:$0xff]
      %v878 = vld [vmem:[%s6 + $0x38] sm:$0xff]
      %v879 = vld [vmem:[%s7] sm:$0xff]
      %v880 = vld [vmem:[%s7 + $0x8] sm:$0xff]
      %v881 = vld [vmem:[%s7 + $0x10] sm:$0xff]
      %v882 = vld [vmem:[%s7 + $0x18] sm:$0xff]
      %v883 = vld [vmem:[%s7 + $0x20] sm:$0xff]
      %v884 = vld [vmem:[%s7 + $0x28] sm:$0xff]
      %v885 = vld [vmem:[%s7 + $0x30] sm:$0xff]
      %v886 = vld [vmem:[%s7 + $0x38] sm:$0xff]
      %888 = vset.pattern.permute.xlu0 0
      %889 = vperm.xlu0 %888, %v879
      %v890 = vpop.permute.xlu0 %889
      %893 = vset.pattern.permute.xlu0 0
      %894 = vperm.xlu0 %893, %v880
      %v895 = vpop.permute.xlu0 %894
      %898 = vset.pattern.permute.xlu0 0
      %899 = vperm.xlu0 %898, %v881
      %v900 = vpop.permute.xlu0 %899
      %903 = vset.pattern.permute.xlu0 0
      %904 = vperm.xlu0 %903, %v882
      %v905 = vpop.permute.xlu0 %904
      %908 = vset.pattern.permute.xlu0 0
      %909 = vperm.xlu0 %908, %v883
      %v910 = vpop.permute.xlu0 %909
      %913 = vset.pattern.permute.xlu0 0
      %914 = vperm.xlu0 %913, %v884
      %v915 = vpop.permute.xlu0 %914
      %918 = vset.pattern.permute.xlu0 0
      %919 = vperm.xlu0 %918, %v885
      %v920 = vpop.permute.xlu0 %919
      %923 = vset.pattern.permute.xlu0 0
      %924 = vperm.xlu0 %923, %v886
      %v925 = vpop.permute.xlu0 %924
      %vm927 = vcmask 261120
      %v929 = vsel %vm927, %v871, 0
      %v932 = vsel %vm927, %v872, 0
      %v935 = vsel %vm927, %v873, 0
      %v938 = vsel %vm927, %v874, 0
      %v941 = vsel %vm927, %v875, 0
      %v944 = vsel %vm927, %v876, 0
      %v947 = vsel %vm927, %v877, 0
      %v950 = vsel %vm927, %v878, 0
      %952 = vmatprep.subr.mxu0 %v864
      %953 = vmatpush1.msra.mxu0 %v863
      %954 = vmatprep.subr.mxu0 %v866
      %955 = vmatpush1.msra.mxu0 %v865
      %956 = vmatprep.subr.mxu0 %v868
      %957 = vmatpush1.msra.mxu0 %v867
      %958 = vmatprep.subr.mxu0 %v870
      %959 = vmatpush1.msra.mxu0 %v869
      %960 = vmatprep.subr.mxu0 0.0
      %961 = vmatpush1.msra.mxu0 0.0
      %962 = vmatprep.subr.mxu0 0.0
      %963 = vmatpush1.msra.mxu0 0.0
      %964 = vmatprep.subr.mxu0 0.0
      %965 = vmatpush1.msra.mxu0 0.0
      %966 = vmatprep.subr.mxu0 0.0
      %967 = vmatpush1.msra.mxu0 0.0
      %968 = vmatprep.subr.mxu0 0.0
      %969 = vmatpush1.msra.mxu0 0.0
      %970 = vmatprep.subr.mxu0 0.0
      %971 = vmatpush1.msra.mxu0 0.0
      %972 = vmatprep.subr.mxu0 0.0
      %973 = vmatpush1.msra.mxu0 0.0
      %974 = vmatprep.subr.mxu0 0.0
      %975 = vmatpush1.msra.mxu0 0.0
      %976 = vmatprep.subr.mxu0 0.0
      %977 = vmatpush1.msra.mxu0 0.0
      %978 = vmatprep.subr.mxu0 0.0
      %979 = vmatpush1.msra.mxu0 0.0
      %980 = vmatprep.subr.mxu0 0.0
      %981 = vmatpush1.msra.mxu0 0.0
      %982 = vmatprep.subr.mxu0 0.0
      %983 = vmatpush1.msra.mxu0 0.0
      %984 = vmatprep.subr.mxu0 0.0
      %985 = vmatpush1.msra.mxu0 0.0
      %986 = vmatprep.subr.mxu0 0.0
      %987 = vmatpush1.msra.mxu0 0.0
      %988 = vmatprep.subr.mxu0 0.0
      %989 = vmatpush1.msra.mxu0 0.0
      %990 = vmatprep.subr.mxu0 0.0
      %991 = vmatpush1.msra.mxu0 0.0
      %992 = vmatprep.subr.mxu0 0.0
      %993 = vmatpush1.msra.mxu0 0.0
      %994 = vmatprep.subr.mxu0 0.0
      %995 = vmatpush1.msra.mxu0 0.0
      %996 = vmatprep.subr.mxu0 0.0
      %997 = vmatpush1.msra.mxu0 0.0
      %998 = vmatprep.subr.mxu0 0.0
      %999 = vmatpush1.msra.mxu0 0.0
      %1000 = vmatprep.subr.mxu0 0.0
      %1001 = vmatpush1.msra.mxu0 0.0
      %1002 = vmatprep.subr.mxu0 0.0
      %1003 = vmatpush1.msra.mxu0 0.0
      %1004 = vmatprep.subr.mxu0 0.0
      %1005 = vmatpush1.msra.mxu0 0.0
      %1006 = vmatprep.subr.mxu0 0.0
      %1007 = vmatpush1.msra.mxu0 0.0
      %1008 = vmatprep.subr.mxu0 0.0
      %1009 = vmatpush1.msra.mxu0 0.0
      %1010 = vmatprep.subr.mxu0 0.0
      %1011 = vmatpush1.msra.mxu0 0.0
      %1012 = vmatprep.subr.mxu0 0.0
      %1013 = vmatpush1.msra.mxu0 0.0
      %1014 = vmatprep.subr.mxu0 0.0
      %1015 = vmatpush1.msra.mxu0 0.0
      %1016 = vmatprep.mubr.f32.mxu0 0.0
      %1017 = vmatmul.mubr.f32.gmra.mrb[0].mxu0 %v929
      %v1018 = vpop.f32.mrb[0].mxu0
      %v1019 = vadd.f32 %v890, %v1018
      %v1020 = vpop.f32.mrb[0].mxu0
      %v1021 = vadd.f32 %v890, %v1020
      %1022 = vmatprep.mubr.f32.mxu0 0.0
      %1023 = vmatmul.mubr.f32.gmra.mrb[0].mxu0 %v932
      %v1024 = vpop.f32.mrb[0].mxu0
      %v1025 = vadd.f32 %v895, %v1024
      %v1026 = vpop.f32.mrb[0].mxu0
      %v1027 = vadd.f32 %v895, %v1026
      %1028 = vmatprep.mubr.f32.mxu0 0.0
      %1029 = vmatmul.mubr.f32.gmra.mrb[0].mxu0 %v935
      %v1030 = vpop.f32.mrb[0].mxu0
      %v1031 = vadd.f32 %v900, %v1030
      %v1032 = vpop.f32.mrb[0].mxu0
      %v1033 = vadd.f32 %v900, %v1032
      %1034 = vmatprep.mubr.f32.mxu0 0.0
      %1035 = vmatmul.mubr.f32.gmra.mrb[0].mxu0 %v938
      %v1036 = vpop.f32.mrb[0].mxu0
      %v1037 = vadd.f32 %v905, %v1036
      %v1038 = vpop.f32.mrb[0].mxu0
      %v1039 = vadd.f32 %v905, %v1038
      %1040 = vmatprep.mubr.f32.mxu0 0.0
      %1041 = vmatmul.mubr.f32.gmra.mrb[0].mxu0 %v941
      %v1042 = vpop.f32.mrb[0].mxu0
      %v1043 = vadd.f32 %v910, %v1042
      %v1044 = vpop.f32.mrb[0].mxu0
      %v1045 = vadd.f32 %v910, %v1044
      %1046 = vmatprep.mubr.f32.mxu0 0.0
      %1047 = vmatmul.mubr.f32.gmra.mrb[0].mxu0 %v944
      %v1048 = vpop.f32.mrb[0].mxu0
      %v1049 = vadd.f32 %v915, %v1048
      %v1050 = vpop.f32.mrb[0].mxu0
      %v1051 = vadd.f32 %v915, %v1050
      %1052 = vmatprep.mubr.f32.mxu0 0.0
      %1053 = vmatmul.mubr.f32.gmra.mrb[0].mxu0 %v947
      %v1054 = vpop.f32.mrb[0].mxu0
      %v1055 = vadd.f32 %v920, %v1054
      %v1056 = vpop.f32.mrb[0].mxu0
      %v1057 = vadd.f32 %v920, %v1056
      %1058 = vmatprep.mubr.f32.mxu0 0.0
      %1059 = vmatmul.mubr.f32.gmra.mrb[0].mxu0 %v950
      %v1060 = vpop.f32.mrb[0].mxu0
      %v1061 = vadd.f32 %v925, %v1060
      %v1062 = vpop.f32.mrb[0].mxu0
      %v1063 = vadd.f32 %v925, %v1062
      %1064 = vdwg.mxu0
      %v1065 = vmax.f32 %v1019, %v1021
      %1066 = vmax.xlane.f32.xlu0 %v1065
      %v1067 = vpop.xlane.xlu0 %1066
      %v1068 = vmax.f32 %v1025, %v1027
      %1069 = vmax.xlane.f32.xlu0 %v1068
      %v1070 = vpop.xlane.xlu0 %1069
      %v1071 = vmax.f32 %v1031, %v1033
      %1072 = vmax.xlane.f32.xlu0 %v1071
      %v1073 = vpop.xlane.xlu0 %1072
      %v1074 = vmax.f32 %v1037, %v1039
      %1075 = vmax.xlane.f32.xlu0 %v1074
      %v1076 = vpop.xlane.xlu0 %1075
      %v1077 = vmax.f32 %v1043, %v1045
      %1078 = vmax.xlane.f32.xlu0 %v1077
      %v1079 = vpop.xlane.xlu0 %1078
      %v1080 = vmax.f32 %v1049, %v1051
      %1081 = vmax.xlane.f32.xlu0 %v1080
      %v1082 = vpop.xlane.xlu0 %1081
      %v1083 = vmax.f32 %v1055, %v1057
      %1084 = vmax.xlane.f32.xlu0 %v1083
      %v1085 = vpop.xlane.xlu0 %1084
      %v1086 = vmax.f32 %v1061, %v1063
      %1087 = vmax.xlane.f32.xlu0 %v1086
      %v1088 = vpop.xlane.xlu0 %1087
      %v1089 = vld [vmem:[%s8] sm:$0xff]
      %v1090 = vld [vmem:[%s8 + $0x8] sm:$0xff]
      %v1091 = vld [vmem:[%s8 + $0x10] sm:$0xff]
      %v1092 = vld [vmem:[%s8 + $0x18] sm:$0xff]
      %v1093 = vld [vmem:[%s9] sm:$0xff]
      %v1094 = vld [vmem:[%s9 + $0x8] sm:$0xff]
      %v1095 = vld [vmem:[%s9 + $0x10] sm:$0xff]
      %v1096 = vld [vmem:[%s9 + $0x18] sm:$0xff]
      %vm1097 = vcmask 523264
      %v1099 = vsel %vm1097, %v1089, 0
      %v1102 = vsel %vm1097, %v1090, 0
      %v1105 = vsel %vm1097, %v1091, 0
      %v1108 = vsel %vm1097, %v1092, 0
      %1110 = vmatprep.subr.mxu0 0.0
      %1111 = vmatpush1.msra.mxu0 %v1067
      %1112 = vmatprep.subr.mxu0 0.0
      %1113 = vmatpush1.msra.mxu0 %v1070
      %1114 = vmatprep.subr.mxu0 0.0
      %1115 = vmatpush1.msra.mxu0 %v1073
      %1116 = vmatprep.subr.mxu0 0.0
      %1117 = vmatpush1.msra.mxu0 %v1076
      %1118 = vmatprep.subr.mxu0 0.0
      %1119 = vmatpush1.msra.mxu0 %v1079
      %1120 = vmatprep.subr.mxu0 0.0
      %1121 = vmatpush1.msra.mxu0 %v1082
      %1122 = vmatprep.subr.mxu0 0.0
      %1123 = vmatpush1.msra.mxu0 %v1085
      %1124 = vmatprep.subr.mxu0 0.0
      %1125 = vmatpush1.msra.mxu0 %v1088
      %1126 = vmatprep.subr.mxu0 0.0
      %1127 = vmatpush1.msra.mxu0 0.0
      %1128 = vmatprep.subr.mxu0 0.0
      %1129 = vmatpush1.msra.mxu0 0.0
      %1130 = vmatprep.subr.mxu0 0.0
      %1131 = vmatpush1.msra.mxu0 0.0
      %1132 = vmatprep.subr.mxu0 0.0
      %1133 = vmatpush1.msra.mxu0 0.0
      %1134 = vmatprep.subr.mxu0 0.0
      %1135 = vmatpush1.msra.mxu0 0.0
      %1136 = vmatprep.subr.mxu0 0.0
      %1137 = vmatpush1.msra.mxu0 0.0
      %1138 = vmatprep.subr.mxu0 0.0
      %1139 = vmatpush1.msra.mxu0 0.0
      %1140 = vmatprep.subr.mxu0 0.0
      %1141 = vmatpush1.msra.mxu0 0.0
      %1142 = vmatprep.subr.mxu0 0.0
      %1143 = vmatpush1.msra.mxu0 0.0
      %1144 = vmatprep.subr.mxu0 0.0
      %1145 = vmatpush1.msra.mxu0 0.0
      %1146 = vmatprep.subr.mxu0 0.0
      %1147 = vmatpush1.msra.mxu0 0.0
      %1148 = vmatprep.subr.mxu0 0.0
      %1149 = vmatpush1.msra.mxu0 0.0
      %1150 = vmatprep.subr.mxu0 0.0
      %1151 = vmatpush1.msra.mxu0 0.0
      %1152 = vmatprep.subr.mxu0 0.0
      %1153 = vmatpush1.msra.mxu0 0.0
      %1154 = vmatprep.subr.mxu0 0.0
      %1155 = vmatpush1.msra.mxu0 0.0
      %1156 = vmatprep.subr.mxu0 0.0
      %1157 = vmatpush1.msra.mxu0 0.0
      %1158 = vmatprep.subr.mxu0 0.0
      %1159 = vmatpush1.msra.mxu0 0.0
      %1160 = vmatprep.subr.mxu0 0.0
      %1161 = vmatpush1.msra.mxu0 0.0
      %1162 = vmatprep.subr.mxu0 0.0
      %1163 = vmatpush1.msra.mxu0 0.0
      %1164 = vmatprep.subr.mxu0 0.0
      %1165 = vmatpush1.msra.mxu0 0.0
      %1166 = vmatprep.subr.mxu0 0.0
      %1167 = vmatpush1.msra.mxu0 0.0
      %1168 = vmatprep.subr.mxu0 0.0
      %1169 = vmatpush1.msra.mxu0 0.0
      %1170 = vmatprep.subr.mxu0 0.0
      %1171 = vmatpush1.msra.mxu0 0.0
      %1172 = vmatprep.subr.mxu0 0.0
      %1173 = vmatpush1.msra.mxu0 0.0
      %1174 = vmatprep.mubr.f32.mxu0 0.0
      %1175 = vmatmul.mubr.f32.gmra.mrb[0].mxu0 %v1099
      %v1176 = vpop.f32.mrb[0].mxu0
      %v1177 = vadd.f32 %v1093, %v1176
      %v1178 = vpop.f32.mrb[0].mxu0
      %1179 = vmatprep.mubr.f32.mxu0 0.0
      %1180 = vmatmul.mubr.f32.gmra.mrb[0].mxu0 %v1102
      %v1181 = vpop.f32.mrb[0].mxu0
      %v1182 = vadd.f32 %v1094, %v1181
      %v1183 = vpop.f32.mrb[0].mxu0
      %1184 = vmatprep.mubr.f32.mxu0 0.0
      %1185 = vmatmul.mubr.f32.gmra.mrb[0].mxu0 %v1105
      %v1186 = vpop.f32.mrb[0].mxu0
      %v1187 = vadd.f32 %v1095, %v1186
      %v1188 = vpop.f32.mrb[0].mxu0
      %1189 = vmatprep.mubr.f32.mxu0 0.0
      %1190 = vmatmul.mubr.f32.gmra.mrb[0].mxu0 %v1108
      %v1191 = vpop.f32.mrb[0].mxu0
      %v1192 = vadd.f32 %v1096, %v1191
      %v1193 = vpop.f32.mrb[0].mxu0
      %1194 = vdwg.mxu0
      %v1195 = vmax.f32 %v1177, 0.0
      %v1196 = vmax.f32 %v1182, 0.0
      %v1197 = vmax.f32 %v1187, 0.0
      %v1198 = vmax.f32 %v1192, 0.0
      %v1199 = vld [vmem:[%s617] sm:$0x3]
      %v1200 = vld [vmem:[%s11] sm:$0xff]
      %v1201 = vld [vmem:[%s11 + $0x8] sm:$0xff]
      %v1202 = vld [vmem:[%s11 + $0x10] sm:$0xff]
      %v1203 = vld [vmem:[%s11 + $0x18] sm:$0xff]
      %v1204 = vld [vmem:[%s11 + $0x20] sm:$0x3]
      %v1206 = vsel %vm927, %v1200, 0
      %v1209 = vsel %vm927, %v1201, 0
      %v1212 = vsel %vm927, %v1202, 0
      %v1215 = vsel %vm927, %v1203, 0
      %v1218 = vsel %vm927, %v1204, 0
      %1220 = vmatprep.subr.mxu0 0.0
      %1221 = vmatpush1.msra.mxu0 %v1195
      %1222 = vmatprep.subr.mxu0 0.0
      %1223 = vmatpush1.msra.mxu0 %v1196
      %1224 = vmatprep.subr.mxu0 0.0
      %1225 = vmatpush1.msra.mxu0 %v1197
      %1226 = vmatprep.subr.mxu0 0.0
      %1227 = vmatpush1.msra.mxu0 %v1198
      %1228 = vmatprep.subr.mxu0 0.0
      %1229 = vmatpush1.msra.mxu0 0.0
      %1230 = vmatprep.subr.mxu0 0.0
      %1231 = vmatpush1.msra.mxu0 0.0
      %1232 = vmatprep.subr.mxu0 0.0
      %1233 = vmatpush1.msra.mxu0 0.0
      %1234 = vmatprep.subr.mxu0 0.0
      %1235 = vmatpush1.msra.mxu0 0.0
      %1236 = vmatprep.subr.mxu0 0.0
      %1237 = vmatpush1.msra.mxu0 0.0
      %1238 = vmatprep.subr.mxu0 0.0
      %1239 = vmatpush1.msra.mxu0 0.0
      %1240 = vmatprep.subr.mxu0 0.0
      %1241 = vmatpush1.msra.mxu0 0.0
      %1242 = vmatprep.subr.mxu0 0.0
      %1243 = vmatpush1.msra.mxu0 0.0
      %1244 = vmatprep.subr.mxu0 0.0
      %1245 = vmatpush1.msra.mxu0 0.0
      %1246 = vmatprep.subr.mxu0 0.0
      %1247 = vmatpush1.msra.mxu0 0.0
      %1248 = vmatprep.subr.mxu0 0.0
      %1249 = vmatpush1.msra.mxu0 0.0
      %1250 = vmatprep.subr.mxu0 0.0
      %1251 = vmatpush1.msra.mxu0 0.0
      %1252 = vmatprep.subr.mxu0 0.0
      %1253 = vmatpush1.msra.mxu0 0.0
      %1254 = vmatprep.subr.mxu0 0.0
      %1255 = vmatpush1.msra.mxu0 0.0
      %1256 = vmatprep.subr.mxu0 0.0
      %1257 = vmatpush1.msra.mxu0 0.0
      %1258 = vmatprep.subr.mxu0 0.0
      %1259 = vmatpush1.msra.mxu0 0.0
      %1260 = vmatprep.subr.mxu0 0.0
      %1261 = vmatpush1.msra.mxu0 0.0
      %1262 = vmatprep.subr.mxu0 0.0
      %1263 = vmatpush1.msra.mxu0 0.0
      %1264 = vmatprep.subr.mxu0 0.0
      %1265 = vmatpush1.msra.mxu0 0.0
      %1266 = vmatprep.subr.mxu0 0.0
      %1267 = vmatpush1.msra.mxu0 0.0
      %1268 = vmatprep.subr.mxu0 0.0
      %1269 = vmatpush1.msra.mxu0 0.0
      %1270 = vmatprep.subr.mxu0 0.0
      %1271 = vmatpush1.msra.mxu0 0.0
      %1272 = vmatprep.subr.mxu0 0.0
      %1273 = vmatpush1.msra.mxu0 0.0
      %1274 = vmatprep.subr.mxu0 0.0
      %1275 = vmatpush1.msra.mxu0 0.0
      %1276 = vmatprep.subr.mxu0 0.0
      %1277 = vmatpush1.msra.mxu0 0.0
      %1278 = vmatprep.subr.mxu0 0.0
      %1279 = vmatpush1.msra.mxu0 0.0
      %1280 = vmatprep.subr.mxu0 0.0
      %1281 = vmatpush1.msra.mxu0 0.0
      %1282 = vmatprep.subr.mxu0 0.0
      %1283 = vmatpush1.msra.mxu0 0.0
      %1284 = vmatprep.mubr.f32.mxu0 0.0
      %1285 = vmatmul.mubr.f32.gmra.mrb[0].mxu0 %v1206
      %v1286 = vpop.f32.mrb[0].mxu0
      %v1287 = vadd.f32 0.0, %v1286
      %v1288 = vpop.f32.mrb[0].mxu0
      %1289 = vmatprep.mubr.f32.mxu0 0.0
      %1290 = vmatmul.mubr.f32.gmra.mrb[0].mxu0 %v1209
      %v1291 = vpop.f32.mrb[0].mxu0
      %v1292 = vadd.f32 0.0, %v1291
      %v1293 = vpop.f32.mrb[0].mxu0
      %1294 = vmatprep.mubr.f32.mxu0 0.0
      %1295 = vmatmul.mubr.f32.gmra.mrb[0].mxu0 %v1212
      %v1296 = vpop.f32.mrb[0].mxu0
      %v1297 = vadd.f32 0.0, %v1296
      %v1298 = vpop.f32.mrb[0].mxu0
      %1299 = vmatprep.mubr.f32.mxu0 0.0
      %1300 = vmatmul.mubr.f32.gmra.mrb[0].mxu0 %v1215
      %v1301 = vpop.f32.mrb[0].mxu0
      %v1302 = vadd.f32 0.0, %v1301
      %v1303 = vpop.f32.mrb[0].mxu0
      %1304 = vmatprep.mubr.f32.mxu0 0.0
      %1305 = vmatmul.mubr.f32.gmra.mrb[0].mxu0 %v1218
      %v1306 = vpop.f32.mrb[0].mxu0
      %v1307 = vadd.f32 0.0, %v1306
      %v1308 = vpop.f32.mrb[0].mxu0
      %1309 = vdwg.mxu0
      %v1310 = vld [vmem:[%s10] sm:$0xff]
      %v1311 = vld [vmem:[%s10 + $0x8] sm:$0xff]
      %v1312 = vld [vmem:[%s10 + $0x10] sm:$0xff]
      %v1313 = vld [vmem:[%s10 + $0x18] sm:$0xff]
      %v1314 = vld [vmem:[%s10 + $0x20] sm:$0x3]
      %1316 = vset.pattern.permute.xlu0 0
      %1317 = vperm.xlu0 %1316, %v1287
      %v1318 = vpop.permute.xlu0 %1317
      %1321 = vset.pattern.permute.xlu0 0
      %1322 = vperm.xlu0 %1321, %v1292
      %v1323 = vpop.permute.xlu0 %1322
      %1326 = vset.pattern.permute.xlu0 0
      %1327 = vperm.xlu0 %1326, %v1297
      %v1328 = vpop.permute.xlu0 %1327
      %1331 = vset.pattern.permute.xlu0 0
      %1332 = vperm.xlu0 %1331, %v1302
      %v1333 = vpop.permute.xlu0 %1332
      %1336 = vset.pattern.permute.xlu0 0
      %1337 = vperm.xlu0 %1336, %v1307
      %v1338 = vpop.permute.xlu0 %1337
      %vm1340 = vcmask 15360
      %v1342 = vsel %vm1340, %v1310, 0
      %v1345 = vsel %vm1340, %v1311, 0
      %v1348 = vsel %vm1340, %v1312, 0
      %v1351 = vsel %vm1340, %v1313, 0
      %v1354 = vsel %vm1340, %v1314, 0
      %vm1356 = vcmask 1041408
      %v1358 = vsel %vm1356, %v1199, 0
      %1360 = vmatprep.subr.mxu0 0.0
      %1361 = vmatpush1.msra.mxu0 %v1358
      %1362 = vmatprep.subr.mxu0 0.0
      %1363 = vmatpush1.msra.mxu0 0.0
      %1364 = vmatprep.subr.mxu0 0.0
      %1365 = vmatpush1.msra.mxu0 0.0
      %1366 = vmatprep.subr.mxu0 0.0
      %1367 = vmatpush1.msra.mxu0 0.0
      %1368 = vmatprep.subr.mxu0 0.0
      %1369 = vmatpush1.msra.mxu0 0.0
      %1370 = vmatprep.subr.mxu0 0.0
      %1371 = vmatpush1.msra.mxu0 0.0
      %1372 = vmatprep.subr.mxu0 0.0
      %1373 = vmatpush1.msra.mxu0 0.0
      %1374 = vmatprep.subr.mxu0 0.0
      %1375 = vmatpush1.msra.mxu0 0.0
      %1376 = vmatprep.subr.mxu0 0.0
      %1377 = vmatpush1.msra.mxu0 0.0
      %1378 = vmatprep.subr.mxu0 0.0
      %1379 = vmatpush1.msra.mxu0 0.0
      %1380 = vmatprep.subr.mxu0 0.0
      %1381 = vmatpush1.msra.mxu0 0.0
      %1382 = vmatprep.subr.mxu0 0.0
      %1383 = vmatpush1.msra.mxu0 0.0
      %1384 = vmatprep.subr.mxu0 0.0
      %1385 = vmatpush1.msra.mxu0 0.0
      %1386 = vmatprep.subr.mxu0 0.0
      %1387 = vmatpush1.msra.mxu0 0.0
      %1388 = vmatprep.subr.mxu0 0.0
      %1389 = vmatpush1.msra.mxu0 0.0
      %1390 = vmatprep.subr.mxu0 0.0
      %1391 = vmatpush1.msra.mxu0 0.0
      %1392 = vmatprep.subr.mxu0 0.0
      %1393 = vmatpush1.msra.mxu0 0.0
      %1394 = vmatprep.subr.mxu0 0.0
      %1395 = vmatpush1.msra.mxu0 0.0
      %1396 = vmatprep.subr.mxu0 0.0
      %1397 = vmatpush1.msra.mxu0 0.0
      %1398 = vmatprep.subr.mxu0 0.0
      %1399 = vmatpush1.msra.mxu0 0.0
      %1400 = vmatprep.subr.mxu0 0.0
      %1401 = vmatpush1.msra.mxu0 0.0
      %1402 = vmatprep.subr.mxu0 0.0
      %1403 = vmatpush1.msra.mxu0 0.0
      %1404 = vmatprep.subr.mxu0 0.0
      %1405 = vmatpush1.msra.mxu0 0.0
      %1406 = vmatprep.subr.mxu0 0.0
      %1407 = vmatpush1.msra.mxu0 0.0
      %1408 = vmatprep.subr.mxu0 0.0
      %1409 = vmatpush1.msra.mxu0 0.0
      %1410 = vmatprep.subr.mxu0 0.0
      %1411 = vmatpush1.msra.mxu0 0.0
      %1412 = vmatprep.subr.mxu0 0.0
      %1413 = vmatpush1.msra.mxu0 0.0
      %1414 = vmatprep.subr.mxu0 0.0
      %1415 = vmatpush1.msra.mxu0 0.0
      %1416 = vmatprep.subr.mxu0 0.0
      %1417 = vmatpush1.msra.mxu0 0.0
      %1418 = vmatprep.subr.mxu0 0.0
      %1419 = vmatpush1.msra.mxu0 0.0
      %1420 = vmatprep.subr.mxu0 0.0
      %1421 = vmatpush1.msra.mxu0 0.0
      %1422 = vmatprep.subr.mxu0 0.0
      %1423 = vmatpush1.msra.mxu0 0.0
      %1424 = vmatprep.mubr.f32.mxu0 0.0
      %1425 = vmatmul.mubr.f32.gmra.mrb[0].mxu0 %v1342
      %v1426 = vpop.f32.mrb[0].mxu0
      %v1427 = vadd.f32 %v1318, %v1426
      %v1428 = vpop.f32.mrb[0].mxu0
      %1429 = vmatprep.mubr.f32.mxu0 0.0
      %1430 = vmatmul.mubr.f32.gmra.mrb[0].mxu0 %v1345
      %v1431 = vpop.f32.mrb[0].mxu0
      %v1432 = vadd.f32 %v1323, %v1431
      %v1433 = vpop.f32.mrb[0].mxu0
      %1434 = vmatprep.mubr.f32.mxu0 0.0
      %1435 = vmatmul.mubr.f32.gmra.mrb[0].mxu0 %v1348
      %v1436 = vpop.f32.mrb[0].mxu0
      %v1437 = vadd.f32 %v1328, %v1436
      %v1438 = vpop.f32.mrb[0].mxu0
      %1439 = vmatprep.mubr.f32.mxu0 0.0
      %1440 = vmatmul.mubr.f32.gmra.mrb[0].mxu0 %v1351
      %v1441 = vpop.f32.mrb[0].mxu0
      %v1442 = vadd.f32 %v1333, %v1441
      %v1443 = vpop.f32.mrb[0].mxu0
      %1444 = vmatprep.mubr.f32.mxu0 0.0
      %1445 = vmatmul.mubr.f32.gmra.mrb[0].mxu0 %v1354
      %v1446 = vpop.f32.mrb[0].mxu0
      %v1447 = vadd.f32 %v1338, %v1446
      %v1448 = vpop.f32.mrb[0].mxu0
      %1449 = vdwg.mxu0
      %v1450 = vld [vmem:[%s12] sm:$0xff]
      %v1451 = vld [vmem:[%s12 + $0x8] sm:$0xff]
      %v1452 = vld [vmem:[%s12 + $0x10] sm:$0xff]
      %v1453 = vld [vmem:[%s12 + $0x18] sm:$0xff]
      %v1454 = vld [vmem:[%s12 + $0x20] sm:$0x3]
      %1456 = vset.pattern.permute.xlu0 0
      %1457 = vperm.xlu0 %1456, %v1450
      %v1458 = vpop.permute.xlu0 %1457
      %1461 = vset.pattern.permute.xlu0 0
      %1462 = vperm.xlu0 %1461, %v1451
      %v1463 = vpop.permute.xlu0 %1462
      %1466 = vset.pattern.permute.xlu0 0
      %1467 = vperm.xlu0 %1466, %v1452
      %v1468 = vpop.permute.xlu0 %1467
      %1471 = vset.pattern.permute.xlu0 0
      %1472 = vperm.xlu0 %1471, %v1453
      %v1473 = vpop.permute.xlu0 %1472
      %1476 = vset.pattern.permute.xlu0 0
      %1477 = vperm.xlu0 %1476, %v1454
      %v1478 = vpop.permute.xlu0 %1477
      %v1480 = vadd.f32 %v1427, %v1458
      %v1481 = vadd.f32 %v1432, %v1463
      %v1482 = vadd.f32 %v1437, %v1468
      %v1483 = vadd.f32 %v1442, %v1473
      %v1484 = vadd.f32 %v1447, %v1478
      %v1485 = vmax.f32 %v1480, 0.0
      %v1486 = vmax.f32 %v1481, 0.0
      %v1487 = vmax.f32 %v1482, 0.0
      %v1488 = vmax.f32 %v1483, 0.0
      %v1489 = vmax.f32 %v1484, 0.0
      %v1490 = vld [vmem:[%s13] sm:$0xff]
      %v1491 = vld [vmem:[%s13 + $0x8] sm:$0xff]
      %v1492 = vld [vmem:[%s13 + $0x10] sm:$0x1]
      %v1493 = vld [vmem:[%s14] sm:$0xff]
      %v1494 = vld [vmem:[%s14 + $0x8] sm:$0xff]
      %v1495 = vld [vmem:[%s14 + $0x10] sm:$0x1]
      %1497 = vset.pattern.permute.xlu0 0
      %1498 = vperm.xlu0 %1497, %v1493
      %v1499 = vpop.permute.xlu0 %1498
      %1502 = vset.pattern.permute.xlu0 0
      %1503 = vperm.xlu0 %1502, %v1494
      %v1504 = vpop.permute.xlu0 %1503
      %1507 = vset.pattern.permute.xlu0 0
      %1508 = vperm.xlu0 %1507, %v1495
      %v1509 = vpop.permute.xlu0 %1508
      %vm1511 = vcmask 277504
      %v1513 = vsel %vm1511, %v1490, 0
      %v1516 = vsel %vm1511, %v1491, 0
      %v1519 = vsel %vm1511, %v1492, 0
      %v1522 = vsel %vm1356, %v1489, 0
      %1524 = vmatprep.subr.mxu0 0.0
      %1525 = vmatpush1.msra.mxu0 %v1485
      %1526 = vmatprep.subr.mxu0 0.0
      %1527 = vmatpush1.msra.mxu0 %v1486
      %1528 = vmatprep.subr.mxu0 0.0
      %1529 = vmatpush1.msra.mxu0 %v1487
      %1530 = vmatprep.subr.mxu0 0.0
      %1531 = vmatpush1.msra.mxu0 %v1488
      %1532 = vmatprep.subr.mxu0 0.0
      %1533 = vmatpush1.msra.mxu0 %v1522
      %1534 = vmatprep.subr.mxu0 0.0
      %1535 = vmatpush1.msra.mxu0 0.0
      %1536 = vmatprep.subr.mxu0 0.0
      %1537 = vmatpush1.msra.mxu0 0.0
      %1538 = vmatprep.subr.mxu0 0.0
      %1539 = vmatpush1.msra.mxu0 0.0
      %1540 = vmatprep.subr.mxu0 0.0
      %1541 = vmatpush1.msra.mxu0 0.0
      %1542 = vmatprep.subr.mxu0 0.0
      %1543 = vmatpush1.msra.mxu0 0.0
      %1544 = vmatprep.subr.mxu0 0.0
      %1545 = vmatpush1.msra.mxu0 0.0
      %1546 = vmatprep.subr.mxu0 0.0
      %1547 = vmatpush1.msra.mxu0 0.0
      %1548 = vmatprep.subr.mxu0 0.0
      %1549 = vmatpush1.msra.mxu0 0.0
      %1550 = vmatprep.subr.mxu0 0.0
      %1551 = vmatpush1.msra.mxu0 0.0
      %1552 = vmatprep.subr.mxu0 0.0
      %1553 = vmatpush1.msra.mxu0 0.0
      %1554 = vmatprep.subr.mxu0 0.0
      %1555 = vmatpush1.msra.mxu0 0.0
      %1556 = vmatprep.subr.mxu0 0.0
      %1557 = vmatpush1.msra.mxu0 0.0
      %1558 = vmatprep.subr.mxu0 0.0
      %1559 = vmatpush1.msra.mxu0 0.0
      %1560 = vmatprep.subr.mxu0 0.0
      %1561 = vmatpush1.msra.mxu0 0.0
      %1562 = vmatprep.subr.mxu0 0.0
      %1563 = vmatpush1.msra.mxu0 0.0
      %1564 = vmatprep.subr.mxu0 0.0
      %1565 = vmatpush1.msra.mxu0 0.0
      %1566 = vmatprep.subr.mxu0 0.0
      %1567 = vmatpush1.msra.mxu0 0.0
      %1568 = vmatprep.subr.mxu0 0.0
      %1569 = vmatpush1.msra.mxu0 0.0
      %1570 = vmatprep.subr.mxu0 0.0
      %1571 = vmatpush1.msra.mxu0 0.0
      %1572 = vmatprep.subr.mxu0 0.0
      %1573 = vmatpush1.msra.mxu0 0.0
      %1574 = vmatprep.subr.mxu0 0.0
      %1575 = vmatpush1.msra.mxu0 0.0
      %1576 = vmatprep.subr.mxu0 0.0
      %1577 = vmatpush1.msra.mxu0 0.0
      %1578 = vmatprep.subr.mxu0 0.0
      %1579 = vmatpush1.msra.mxu0 0.0
      %1580 = vmatprep.subr.mxu0 0.0
      %1581 = vmatpush1.msra.mxu0 0.0
      %1582 = vmatprep.subr.mxu0 0.0
      %1583 = vmatpush1.msra.mxu0 0.0
      %1584 = vmatprep.subr.mxu0 0.0
      %1585 = vmatpush1.msra.mxu0 0.0
      %1586 = vmatprep.subr.mxu0 0.0
      %1587 = vmatpush1.msra.mxu0 0.0
      %1588 = vmatprep.mubr.f32.mxu0 0.0
      %1589 = vmatmul.mubr.f32.gmra.mrb[0].mxu0 %v1513
      %v1590 = vpop.f32.mrb[0].mxu0
      %v1591 = vadd.f32 %v1499, %v1590
      %v1592 = vpop.f32.mrb[0].mxu0
      %1593 = vmatprep.mubr.f32.mxu0 0.0
      %1594 = vmatmul.mubr.f32.gmra.mrb[0].mxu0 %v1516
      %v1595 = vpop.f32.mrb[0].mxu0
      %v1596 = vadd.f32 %v1504, %v1595
      %v1597 = vpop.f32.mrb[0].mxu0
      %1598 = vmatprep.mubr.f32.mxu0 0.0
      %1599 = vmatmul.mubr.f32.gmra.mrb[0].mxu0 %v1519
      %v1600 = vpop.f32.mrb[0].mxu0
      %v1601 = vadd.f32 %v1509, %v1600
      %v1602 = vpop.f32.mrb[0].mxu0
      %1603 = vdwg.mxu0
      %v1604 = vmax.f32 %v1591, 0.0
      %v1605 = vmax.f32 %v1596, 0.0
      %v1606 = vmax.f32 %v1601, 0.0
      %v1607 = vld [vmem:[%s15] sm:$0xff]
      %v1608 = vld [vmem:[%s16] sm:$0xff]
      %1610 = vset.pattern.permute.xlu0 0
      %1611 = vperm.xlu0 %1610, %v1608
      %v1612 = vpop.permute.xlu0 %1611
      %vm1614 = vcmask 138240
      %v1616 = vsel %vm1614, %v1607, 0
      %vm1618 = vcmask 1040384
      %v1620 = vsel %vm1618, %v1606, 0
      %1622 = vmatprep.subr.mxu0 0.0
      %1623 = vmatpush1.msra.mxu0 %v1604
      %1624 = vmatprep.subr.mxu0 0.0
      %1625 = vmatpush1.msra.mxu0 %v1605
      %1626 = vmatprep.subr.mxu0 0.0
      %1627 = vmatpush1.msra.mxu0 %v1620
      %1628 = vmatprep.subr.mxu0 0.0
      %1629 = vmatpush1.msra.mxu0 0.0
      %1630 = vmatprep.subr.mxu0 0.0
      %1631 = vmatpush1.msra.mxu0 0.0
      %1632 = vmatprep.subr.mxu0 0.0
      %1633 = vmatpush1.msra.mxu0 0.0
      %1634 = vmatprep.subr.mxu0 0.0
      %1635 = vmatpush1.msra.mxu0 0.0
      %1636 = vmatprep.subr.mxu0 0.0
      %1637 = vmatpush1.msra.mxu0 0.0
      %1638 = vmatprep.subr.mxu0 0.0
      %1639 = vmatpush1.msra.mxu0 0.0
      %1640 = vmatprep.subr.mxu0 0.0
      %1641 = vmatpush1.msra.mxu0 0.0
      %1642 = vmatprep.subr.mxu0 0.0
      %1643 = vmatpush1.msra.mxu0 0.0
      %1644 = vmatprep.subr.mxu0 0.0
      %1645 = vmatpush1.msra.mxu0 0.0
      %1646 = vmatprep.subr.mxu0 0.0
      %1647 = vmatpush1.msra.mxu0 0.0
      %1648 = vmatprep.subr.mxu0 0.0
      %1649 = vmatpush1.msra.mxu0 0.0
      %1650 = vmatprep.subr.mxu0 0.0
      %1651 = vmatpush1.msra.mxu0 0.0
      %1652 = vmatprep.subr.mxu0 0.0
      %1653 = vmatpush1.msra.mxu0 0.0
      %1654 = vmatprep.subr.mxu0 0.0
      %1655 = vmatpush1.msra.mxu0 0.0
      %1656 = vmatprep.subr.mxu0 0.0
      %1657 = vmatpush1.msra.mxu0 0.0
      %1658 = vmatprep.subr.mxu0 0.0
      %1659 = vmatpush1.msra.mxu0 0.0
      %1660 = vmatprep.subr.mxu0 0.0
      %1661 = vmatpush1.msra.mxu0 0.0
      %1662 = vmatprep.subr.mxu0 0.0
      %1663 = vmatpush1.msra.mxu0 0.0
      %1664 = vmatprep.subr.mxu0 0.0
      %1665 = vmatpush1.msra.mxu0 0.0
      %1666 = vmatprep.subr.mxu0 0.0
      %1667 = vmatpush1.msra.mxu0 0.0
      %1668 = vmatprep.subr.mxu0 0.0
      %1669 = vmatpush1.msra.mxu0 0.0
      %1670 = vmatprep.subr.mxu0 0.0
      %1671 = vmatpush1.msra.mxu0 0.0
      %1672 = vmatprep.subr.mxu0 0.0
      %1673 = vmatpush1.msra.mxu0 0.0
      %1674 = vmatprep.subr.mxu0 0.0
      %1675 = vmatpush1.msra.mxu0 0.0
      %1676 = vmatprep.subr.mxu0 0.0
      %1677 = vmatpush1.msra.mxu0 0.0
      %1678 = vmatprep.subr.mxu0 0.0
      %1679 = vmatpush1.msra.mxu0 0.0
      %1680 = vmatprep.subr.mxu0 0.0
      %1681 = vmatpush1.msra.mxu0 0.0
      %1682 = vmatprep.subr.mxu0 0.0
      %1683 = vmatpush1.msra.mxu0 0.0
      %1684 = vmatprep.subr.mxu0 0.0
      %1685 = vmatpush1.msra.mxu0 0.0
      %1686 = vmatprep.mubr.f32.mxu0 0.0
      %1687 = vmatmul.mubr.f32.gmra.mrb[0].mxu0 %v1616
      %v1688 = vpop.f32.mrb[0].mxu0
      %v1689 = vadd.f32 %v1612, %v1688
      %v1690 = vpop.f32.mrb[0].mxu0
      %1691 = vdwg.mxu0
      %v1692 = vmax.f32 %v1689, 0.0
      %v1693 = vld [vmem:[%s17] sm:$0x7]
      %v1694 = vld [vmem:[%s18] sm:$0x7]
      %1696 = vset.pattern.permute.xlu0 0
      %1697 = vperm.xlu0 %1696, %v1694
      %v1698 = vpop.permute.xlu0 %1697
      %vm1700 = vcmask 64512
      %v1702 = vsel %vm1700, %v1693, 0
      %1704 = vmatprep.subr.mxu0 0.0
      %1705 = vmatpush1.msra.mxu0 %v1692
      %1706 = vmatprep.subr.mxu0 0.0
      %1707 = vmatpush1.msra.mxu0 0.0
      %1708 = vmatprep.subr.mxu0 0.0
      %1709 = vmatpush1.msra.mxu0 0.0
      %1710 = vmatprep.subr.mxu0 0.0
      %1711 = vmatpush1.msra.mxu0 0.0
      %1712 = vmatprep.subr.mxu0 0.0
      %1713 = vmatpush1.msra.mxu0 0.0
      %1714 = vmatprep.subr.mxu0 0.0
      %1715 = vmatpush1.msra.mxu0 0.0
      %1716 = vmatprep.subr.mxu0 0.0
      %1717 = vmatpush1.msra.mxu0 0.0
      %1718 = vmatprep.subr.mxu0 0.0
      %1719 = vmatpush1.msra.mxu0 0.0
      %1720 = vmatprep.subr.mxu0 0.0
      %1721 = vmatpush1.msra.mxu0 0.0
      %1722 = vmatprep.subr.mxu0 0.0
      %1723 = vmatpush1.msra.mxu0 0.0
      %1724 = vmatprep.subr.mxu0 0.0
      %1725 = vmatpush1.msra.mxu0 0.0
      %1726 = vmatprep.subr.mxu0 0.0
      %1727 = vmatpush1.msra.mxu0 0.0
      %1728 = vmatprep.subr.mxu0 0.0
      %1729 = vmatpush1.msra.mxu0 0.0
      %1730 = vmatprep.subr.mxu0 0.0
      %1731 = vmatpush1.msra.mxu0 0.0
      %1732 = vmatprep.subr.mxu0 0.0
      %1733 = vmatpush1.msra.mxu0 0.0
      %1734 = vmatprep.subr.mxu0 0.0
      %1735 = vmatpush1.msra.mxu0 0.0
      %1736 = vmatprep.subr.mxu0 0.0
      %1737 = vmatpush1.msra.mxu0 0.0
      %1738 = vmatprep.subr.mxu0 0.0
      %1739 = vmatpush1.msra.mxu0 0.0
      %1740 = vmatprep.subr.mxu0 0.0
      %1741 = vmatpush1.msra.mxu0 0.0
      %1742 = vmatprep.subr.mxu0 0.0
      %1743 = vmatpush1.msra.mxu0 0.0
      %1744 = vmatprep.subr.mxu0 0.0
      %1745 = vmatpush1.msra.mxu0 0.0
      %1746 = vmatprep.subr.mxu0 0.0
      %1747 = vmatpush1.msra.mxu0 0.0
      %1748 = vmatprep.subr.mxu0 0.0
      %1749 = vmatpush1.msra.mxu0 0.0
      %1750 = vmatprep.subr.mxu0 0.0
      %1751 = vmatpush1.msra.mxu0 0.0
      %1752 = vmatprep.subr.mxu0 0.0
      %1753 = vmatpush1.msra.mxu0 0.0
      %1754 = vmatprep.subr.mxu0 0.0
      %1755 = vmatpush1.msra.mxu0 0.0
      %1756 = vmatprep.subr.mxu0 0.0
      %1757 = vmatpush1.msra.mxu0 0.0
      %1758 = vmatprep.subr.mxu0 0.0
      %1759 = vmatpush1.msra.mxu0 0.0
      %1760 = vmatprep.subr.mxu0 0.0
      %1761 = vmatpush1.msra.mxu0 0.0
      %1762 = vmatprep.subr.mxu0 0.0
      %1763 = vmatpush1.msra.mxu0 0.0
      %1764 = vmatprep.subr.mxu0 0.0
      %1765 = vmatpush1.msra.mxu0 0.0
      %1766 = vmatprep.subr.mxu0 0.0
      %1767 = vmatpush1.msra.mxu0 0.0
      %1768 = vmatprep.mubr.f32.mxu0 0.0
      %1769 = vmatmul.mubr.f32.gmra.mrb[0].mxu0 %v1702
      %v1770 = vpop.f32.mrb[0].mxu0
      %v1771 = vadd.f32 %v1698, %v1770
      %v1772 = vpop.f32.mrb[0].mxu0
      %1773 = vdwg.mxu0
      %v1774 = vtanh.pop %v1771
      %v1775 = vmul.f32 %v1774, 2.0
      %s1776 = scalar_lea.vmem %s617, 2
      %v1777 = vld [vmem:[%s1776] sm:$0x3]
      %s1778 = scalar_lea.vmem %s11, 40
      %v1779 = vld [vmem:[%s1778] sm:$0xff]
      %v1780 = vld [vmem:[%s1778 + $0x8] sm:$0xff]
      %v1781 = vld [vmem:[%s1778 + $0x10] sm:$0xff]
      %v1782 = vld [vmem:[%s1778 + $0x18] sm:$0xff]
      %v1783 = vld [vmem:[%s1778 + $0x20] sm:$0x3]
      %v1785 = vsel %vm927, %v1779, 0
      %v1788 = vsel %vm927, %v1780, 0
      %v1791 = vsel %vm927, %v1781, 0
      %v1794 = vsel %vm927, %v1782, 0
      %v1797 = vsel %vm927, %v1783, 0
      %1799 = vmatprep.subr.mxu0 0.0
      %1800 = vmatpush1.msra.mxu0 %v1195
      %1801 = vmatprep.subr.mxu0 0.0
      %1802 = vmatpush1.msra.mxu0 %v1196
      %1803 = vmatprep.subr.mxu0 0.0
      %1804 = vmatpush1.msra.mxu0 %v1197
      %1805 = vmatprep.subr.mxu0 0.0
      %1806 = vmatpush1.msra.mxu0 %v1198
      %1807 = vmatprep.subr.mxu0 0.0
      %1808 = vmatpush1.msra.mxu0 0.0
      %1809 = vmatprep.subr.mxu0 0.0
      %1810 = vmatpush1.msra.mxu0 0.0
      %1811 = vmatprep.subr.mxu0 0.0
      %1812 = vmatpush1.msra.mxu0 0.0
      %1813 = vmatprep.subr.mxu0 0.0
      %1814 = vmatpush1.msra.mxu0 0.0
      %1815 = vmatprep.subr.mxu0 0.0
      %1816 = vmatpush1.msra.mxu0 0.0
      %1817 = vmatprep.subr.mxu0 0.0
      %1818 = vmatpush1.msra.mxu0 0.0
      %1819 = vmatprep.subr.mxu0 0.0
      %1820 = vmatpush1.msra.mxu0 0.0
      %1821 = vmatprep.subr.mxu0 0.0
      %1822 = vmatpush1.msra.mxu0 0.0
      %1823 = vmatprep.subr.mxu0 0.0
      %1824 = vmatpush1.msra.mxu0 0.0
      %1825 = vmatprep.subr.mxu0 0.0
      %1826 = vmatpush1.msra.mxu0 0.0
      %1827 = vmatprep.subr.mxu0 0.0
      %1828 = vmatpush1.msra.mxu0 0.0
      %1829 = vmatprep.subr.mxu0 0.0
      %1830 = vmatpush1.msra.mxu0 0.0
      %1831 = vmatprep.subr.mxu0 0.0
      %1832 = vmatpush1.msra.mxu0 0.0
      %1833 = vmatprep.subr.mxu0 0.0
      %1834 = vmatpush1.msra.mxu0 0.0
      %1835 = vmatprep.subr.mxu0 0.0
      %1836 = vmatpush1.msra.mxu0 0.0
      %1837 = vmatprep.subr.mxu0 0.0
      %1838 = vmatpush1.msra.mxu0 0.0
      %1839 = vmatprep.subr.mxu0 0.0
      %1840 = vmatpush1.msra.mxu0 0.0
      %1841 = vmatprep.subr.mxu0 0.0
      %1842 = vmatpush1.msra.mxu0 0.0
      %1843 = vmatprep.subr.mxu0 0.0
      %1844 = vmatpush1.msra.mxu0 0.0
      %1845 = vmatprep.subr.mxu0 0.0
      %1846 = vmatpush1.msra.mxu0 0.0
      %1847 = vmatprep.subr.mxu0 0.0
      %1848 = vmatpush1.msra.mxu0 0.0
      %1849 = vmatprep.subr.mxu0 0.0
      %1850 = vmatpush1.msra.mxu0 0.0
      %1851 = vmatprep.subr.mxu0 0.0
      %1852 = vmatpush1.msra.mxu0 0.0
      %1853 = vmatprep.subr.mxu0 0.0
      %1854 = vmatpush1.msra.mxu0 0.0
      %1855 = vmatprep.subr.mxu0 0.0
      %1856 = vmatpush1.msra.mxu0 0.0
      %1857 = vmatprep.subr.mxu0 0.0
      %1858 = vmatpush1.msra.mxu0 0.0
      %1859 = vmatprep.subr.mxu0 0.0
      %1860 = vmatpush1.msra.mxu0 0.0
      %1861 = vmatprep.subr.mxu0 0.0
      %1862 = vmatpush1.msra.mxu0 0.0
      %1863 = vmatprep.mubr.f32.mxu0 0.0
      %1864 = vmatmul.mubr.f32.gmra.mrb[0].mxu0 %v1785
      %v1865 = vpop.f32.mrb[0].mxu0
      %v1866 = vadd.f32 0.0, %v1865
      %v1867 = vpop.f32.mrb[0].mxu0
      %1868 = vmatprep.mubr.f32.mxu0 0.0
      %1869 = vmatmul.mubr.f32.gmra.mrb[0].mxu0 %v1788
      %v1870 = vpop.f32.mrb[0].mxu0
      %v1871 = vadd.f32 0.0, %v1870
      %v1872 = vpop.f32.mrb[0].mxu0
      %1873 = vmatprep.mubr.f32.mxu0 0.0
      %1874 = vmatmul.mubr.f32.gmra.mrb[0].mxu0 %v1791
      %v1875 = vpop.f32.mrb[0].mxu0
      %v1876 = vadd.f32 0.0, %v1875
      %v1877 = vpop.f32.mrb[0].mxu0
      %1878 = vmatprep.mubr.f32.mxu0 0.0
      %1879 = vmatmul.mubr.f32.gmra.mrb[0].mxu0 %v1794
      %v1880 = vpop.f32.mrb[0].mxu0
      %v1881 = vadd.f32 0.0, %v1880
      %v1882 = vpop.f32.mrb[0].mxu0
      %1883 = vmatprep.mubr.f32.mxu0 0.0
      %1884 = vmatmul.mubr.f32.gmra.mrb[0].mxu0 %v1797
      %v1885 = vpop.f32.mrb[0].mxu0
      %v1886 = vadd.f32 0.0, %v1885
      %v1887 = vpop.f32.mrb[0].mxu0
      %1888 = vdwg.mxu0
      %s1889 = scalar_lea.vmem %s10, 40
      %v1890 = vld [vmem:[%s1889] sm:$0xff]
      %v1891 = vld [vmem:[%s1889 + $0x8] sm:$0xff]
      %v1892 = vld [vmem:[%s1889 + $0x10] sm:$0xff]
      %v1893 = vld [vmem:[%s1889 + $0x18] sm:$0xff]
      %v1894 = vld [vmem:[%s1889 + $0x20] sm:$0x3]
      %1896 = vset.pattern.permute.xlu0 0
      %1897 = vperm.xlu0 %1896, %v1866
      %v1898 = vpop.permute.xlu0 %1897
      %1901 = vset.pattern.permute.xlu0 0
      %1902 = vperm.xlu0 %1901, %v1871
      %v1903 = vpop.permute.xlu0 %1902
      %1906 = vset.pattern.permute.xlu0 0
      %1907 = vperm.xlu0 %1906, %v1876
      %v1908 = vpop.permute.xlu0 %1907
      %1911 = vset.pattern.permute.xlu0 0
      %1912 = vperm.xlu0 %1911, %v1881
      %v1913 = vpop.permute.xlu0 %1912
      %1916 = vset.pattern.permute.xlu0 0
      %1917 = vperm.xlu0 %1916, %v1886
      %v1918 = vpop.permute.xlu0 %1917
      %v1921 = vsel %vm1340, %v1890, 0
      %v1924 = vsel %vm1340, %v1891, 0
      %v1927 = vsel %vm1340, %v1892, 0
      %v1930 = vsel %vm1340, %v1893, 0
      %v1933 = vsel %vm1340, %v1894, 0
      %v1936 = vsel %vm1356, %v1777, 0
      %1938 = vmatprep.subr.mxu0 0.0
      %1939 = vmatpush1.msra.mxu0 %v1936
      %1940 = vmatprep.subr.mxu0 0.0
      %1941 = vmatpush1.msra.mxu0 0.0
      %1942 = vmatprep.subr.mxu0 0.0
      %1943 = vmatpush1.msra.mxu0 0.0
      %1944 = vmatprep.subr.mxu0 0.0
      %1945 = vmatpush1.msra.mxu0 0.0
      %1946 = vmatprep.subr.mxu0 0.0
      %1947 = vmatpush1.msra.mxu0 0.0
      %1948 = vmatprep.subr.mxu0 0.0
      %1949 = vmatpush1.msra.mxu0 0.0
      %1950 = vmatprep.subr.mxu0 0.0
      %1951 = vmatpush1.msra.mxu0 0.0
      %1952 = vmatprep.subr.mxu0 0.0
      %1953 = vmatpush1.msra.mxu0 0.0
      %1954 = vmatprep.subr.mxu0 0.0
      %1955 = vmatpush1.msra.mxu0 0.0
      %1956 = vmatprep.subr.mxu0 0.0
      %1957 = vmatpush1.msra.mxu0 0.0
      %1958 = vmatprep.subr.mxu0 0.0
      %1959 = vmatpush1.msra.mxu0 0.0
      %1960 = vmatprep.subr.mxu0 0.0
      %1961 = vmatpush1.msra.mxu0 0.0
      %1962 = vmatprep.subr.mxu0 0.0
      %1963 = vmatpush1.msra.mxu0 0.0
      %1964 = vmatprep.subr.mxu0 0.0
      %1965 = vmatpush1.msra.mxu0 0.0
      %1966 = vmatprep.subr.mxu0 0.0
      %1967 = vmatpush1.msra.mxu0 0.0
      %1968 = vmatprep.subr.mxu0 0.0
      %1969 = vmatpush1.msra.mxu0 0.0
      %1970 = vmatprep.subr.mxu0 0.0
      %1971 = vmatpush1.msra.mxu0 0.0
      %1972 = vmatprep.subr.mxu0 0.0
      %1973 = vmatpush1.msra.mxu0 0.0
      %1974 = vmatprep.subr.mxu0 0.0
      %1975 = vmatpush1.msra.mxu0 0.0
      %1976 = vmatprep.subr.mxu0 0.0
      %1977 = vmatpush1.msra.mxu0 0.0
      %1978 = vmatprep.subr.mxu0 0.0
      %1979 = vmatpush1.msra.mxu0 0.0
      %1980 = vmatprep.subr.mxu0 0.0
      %1981 = vmatpush1.msra.mxu0 0.0
      %1982 = vmatprep.subr.mxu0 0.0
      %1983 = vmatpush1.msra.mxu0 0.0
      %1984 = vmatprep.subr.mxu0 0.0
      %1985 = vmatpush1.msra.mxu0 0.0
      %1986 = vmatprep.subr.mxu0 0.0
      %1987 = vmatpush1.msra.mxu0 0.0
      %1988 = vmatprep.subr.mxu0 0.0
      %1989 = vmatpush1.msra.mxu0 0.0
      %1990 = vmatprep.subr.mxu0 0.0
      %1991 = vmatpush1.msra.mxu0 0.0
      %1992 = vmatprep.subr.mxu0 0.0
      %1993 = vmatpush1.msra.mxu0 0.0
      %1994 = vmatprep.subr.mxu0 0.0
      %1995 = vmatpush1.msra.mxu0 0.0
      %1996 = vmatprep.subr.mxu0 0.0
      %1997 = vmatpush1.msra.mxu0 0.0
      %1998 = vmatprep.subr.mxu0 0.0
      %1999 = vmatpush1.msra.mxu0 0.0
      %2000 = vmatprep.subr.mxu0 0.0
      %2001 = vmatpush1.msra.mxu0 0.0
      %2002 = vmatprep.mubr.f32.mxu0 0.0
      %2003 = vmatmul.mubr.f32.gmra.mrb[0].mxu0 %v1921
      %v2004 = vpop.f32.mrb[0].mxu0
      %v2005 = vadd.f32 %v1898, %v2004
      %v2006 = vpop.f32.mrb[0].mxu0
      %2007 = vmatprep.mubr.f32.mxu0 0.0
      %2008 = vmatmul.mubr.f32.gmra.mrb[0].mxu0 %v1924
      %v2009 = vpop.f32.mrb[0].mxu0
      %v2010 = vadd.f32 %v1903, %v2009
      %v2011 = vpop.f32.mrb[0].mxu0
      %2012 = vmatprep.mubr.f32.mxu0 0.0
      %2013 = vmatmul.mubr.f32.gmra.mrb[0].mxu0 %v1927
      %v2014 = vpop.f32.mrb[0].mxu0
      %v2015 = vadd.f32 %v1908, %v2014
      %v2016 = vpop.f32.mrb[0].mxu0
      %2017 = vmatprep.mubr.f32.mxu0 0.0
      %2018 = vmatmul.mubr.f32.gmra.mrb[0].mxu0 %v1930
      %v2019 = vpop.f32.mrb[0].mxu0
      %v2020 = vadd.f32 %v1913, %v2019
      %v2021 = vpop.f32.mrb[0].mxu0
      %2022 = vmatprep.mubr.f32.mxu0 0.0
      %2023 = vmatmul.mubr.f32.gmra.mrb[0].mxu0 %v1933
      %v2024 = vpop.f32.mrb[0].mxu0
      %v2025 = vadd.f32 %v1918, %v2024
      %v2026 = vpop.f32.mrb[0].mxu0
      %2027 = vdwg.mxu0
      %s2028 = scalar_lea.vmem %s12, 40
      %v2029 = vld [vmem:[%s2028] sm:$0xff]
      %v2030 = vld [vmem:[%s2028 + $0x8] sm:$0xff]
      %v2031 = vld [vmem:[%s2028 + $0x10] sm:$0xff]
      %v2032 = vld [vmem:[%s2028 + $0x18] sm:$0xff]
      %v2033 = vld [vmem:[%s2028 + $0x20] sm:$0x3]
      %2035 = vset.pattern.permute.xlu0 0
      %2036 = vperm.xlu0 %2035, %v2029
      %v2037 = vpop.permute.xlu0 %2036
      %2040 = vset.pattern.permute.xlu0 0
      %2041 = vperm.xlu0 %2040, %v2030
      %v2042 = vpop.permute.xlu0 %2041
      %2045 = vset.pattern.permute.xlu0 0
      %2046 = vperm.xlu0 %2045, %v2031
      %v2047 = vpop.permute.xlu0 %2046
      %2050 = vset.pattern.permute.xlu0 0
      %2051 = vperm.xlu0 %2050, %v2032
      %v2052 = vpop.permute.xlu0 %2051
      %2055 = vset.pattern.permute.xlu0 0
      %2056 = vperm.xlu0 %2055, %v2033
      %v2057 = vpop.permute.xlu0 %2056
      %v2059 = vadd.f32 %v2005, %v2037
      %v2060 = vadd.f32 %v2010, %v2042
      %v2061 = vadd.f32 %v2015, %v2047
      %v2062 = vadd.f32 %v2020, %v2052
      %v2063 = vadd.f32 %v2025, %v2057
      %v2064 = vmax.f32 %v2059, 0.0
      %v2065 = vmax.f32 %v2060, 0.0
      %v2066 = vmax.f32 %v2061, 0.0
      %v2067 = vmax.f32 %v2062, 0.0
      %v2068 = vmax.f32 %v2063, 0.0
      %s2069 = scalar_lea.vmem %s13, 24
      %v2070 = vld [vmem:[%s2069] sm:$0xff]
      %v2071 = vld [vmem:[%s2069 + $0x8] sm:$0xff]
      %v2072 = vld [vmem:[%s2069 + $0x10] sm:$0x1]
      %s2073 = scalar_lea.vmem %s14, 24
      %v2074 = vld [vmem:[%s2073] sm:$0xff]
      %v2075 = vld [vmem:[%s2073 + $0x8] sm:$0xff]
      %v2076 = vld [vmem:[%s2073 + $0x10] sm:$0x1]
      %2078 = vset.pattern.permute.xlu0 0
      %2079 = vperm.xlu0 %2078, %v2074
      %v2080 = vpop.permute.xlu0 %2079
      %2083 = vset.pattern.permute.xlu0 0
      %2084 = vperm.xlu0 %2083, %v2075
      %v2085 = vpop.permute.xlu0 %2084
      %2088 = vset.pattern.permute.xlu0 0
      %2089 = vperm.xlu0 %2088, %v2076
      %v2090 = vpop.permute.xlu0 %2089
      %v2093 = vsel %vm1511, %v2070, 0
      %v2096 = vsel %vm1511, %v2071, 0
      %v2099 = vsel %vm1511, %v2072, 0
      %v2102 = vsel %vm1356, %v2068, 0
      %2104 = vmatprep.subr.mxu0 0.0
      %2105 = vmatpush1.msra.mxu0 %v2064
      %2106 = vmatprep.subr.mxu0 0.0
      %2107 = vmatpush1.msra.mxu0 %v2065
      %2108 = vmatprep.subr.mxu0 0.0
      %2109 = vmatpush1.msra.mxu0 %v2066
      %2110 = vmatprep.subr.mxu0 0.0
      %2111 = vmatpush1.msra.mxu0 %v2067
      %2112 = vmatprep.subr.mxu0 0.0
      %2113 = vmatpush1.msra.mxu0 %v2102
      %2114 = vmatprep.subr.mxu0 0.0
      %2115 = vmatpush1.msra.mxu0 0.0
      %2116 = vmatprep.subr.mxu0 0.0
      %2117 = vmatpush1.msra.mxu0 0.0
      %2118 = vmatprep.subr.mxu0 0.0
      %2119 = vmatpush1.msra.mxu0 0.0
      %2120 = vmatprep.subr.mxu0 0.0
      %2121 = vmatpush1.msra.mxu0 0.0
      %2122 = vmatprep.subr.mxu0 0.0
      %2123 = vmatpush1.msra.mxu0 0.0
      %2124 = vmatprep.subr.mxu0 0.0
      %2125 = vmatpush1.msra.mxu0 0.0
      %2126 = vmatprep.subr.mxu0 0.0
      %2127 = vmatpush1.msra.mxu0 0.0
      %2128 = vmatprep.subr.mxu0 0.0
      %2129 = vmatpush1.msra.mxu0 0.0
      %2130 = vmatprep.subr.mxu0 0.0
      %2131 = vmatpush1.msra.mxu0 0.0
      %2132 = vmatprep.subr.mxu0 0.0
      %2133 = vmatpush1.msra.mxu0 0.0
      %2134 = vmatprep.subr.mxu0 0.0
      %2135 = vmatpush1.msra.mxu0 0.0
      %2136 = vmatprep.subr.mxu0 0.0
      %2137 = vmatpush1.msra.mxu0 0.0
      %2138 = vmatprep.subr.mxu0 0.0
      %2139 = vmatpush1.msra.mxu0 0.0
      %2140 = vmatprep.subr.mxu0 0.0
      %2141 = vmatpush1.msra.mxu0 0.0
      %2142 = vmatprep.subr.mxu0 0.0
      %2143 = vmatpush1.msra.mxu0 0.0
      %2144 = vmatprep.subr.mxu0 0.0
      %2145 = vmatpush1.msra.mxu0 0.0
      %2146 = vmatprep.subr.mxu0 0.0
      %2147 = vmatpush1.msra.mxu0 0.0
      %2148 = vmatprep.subr.mxu0 0.0
      %2149 = vmatpush1.msra.mxu0 0.0
      %2150 = vmatprep.subr.mxu0 0.0
      %2151 = vmatpush1.msra.mxu0 0.0
      %2152 = vmatprep.subr.mxu0 0.0
      %2153 = vmatpush1.msra.mxu0 0.0
      %2154 = vmatprep.subr.mxu0 0.0
      %2155 = vmatpush1.msra.mxu0 0.0
      %2156 = vmatprep.subr.mxu0 0.0
      %2157 = vmatpush1.msra.mxu0 0.0
      %2158 = vmatprep.subr.mxu0 0.0
      %2159 = vmatpush1.msra.mxu0 0.0
      %2160 = vmatprep.subr.mxu0 0.0
      %2161 = vmatpush1.msra.mxu0 0.0
      %2162 = vmatprep.subr.mxu0 0.0
      %2163 = vmatpush1.msra.mxu0 0.0
      %2164 = vmatprep.subr.mxu0 0.0
      %2165 = vmatpush1.msra.mxu0 0.0
      %2166 = vmatprep.subr.mxu0 0.0
      %2167 = vmatpush1.msra.mxu0 0.0
      %2168 = vmatprep.mubr.f32.mxu0 0.0
      %2169 = vmatmul.mubr.f32.gmra.mrb[0].mxu0 %v2093
      %v2170 = vpop.f32.mrb[0].mxu0
      %v2171 = vadd.f32 %v2080, %v2170
      %v2172 = vpop.f32.mrb[0].mxu0
      %2173 = vmatprep.mubr.f32.mxu0 0.0
      %2174 = vmatmul.mubr.f32.gmra.mrb[0].mxu0 %v2096
      %v2175 = vpop.f32.mrb[0].mxu0
      %v2176 = vadd.f32 %v2085, %v2175
      %v2177 = vpop.f32.mrb[0].mxu0
      %2178 = vmatprep.mubr.f32.mxu0 0.0
      %2179 = vmatmul.mubr.f32.gmra.mrb[0].mxu0 %v2099
      %v2180 = vpop.f32.mrb[0].mxu0
      %v2181 = vadd.f32 %v2090, %v2180
      %v2182 = vpop.f32.mrb[0].mxu0
      %2183 = vdwg.mxu0
      %v2184 = vmax.f32 %v2171, 0.0
      %v2185 = vmax.f32 %v2176, 0.0
      %v2186 = vmax.f32 %v2181, 0.0
      %s2187 = scalar_lea.vmem %s15, 8
      %v2188 = vld [vmem:[%s2187] sm:$0xff]
      %s2189 = scalar_lea.vmem %s16, 8
      %v2190 = vld [vmem:[%s2189] sm:$0xff]
      %2192 = vset.pattern.permute.xlu0 0
      %2193 = vperm.xlu0 %2192, %v2190
      %v2194 = vpop.permute.xlu0 %2193
      %v2197 = vsel %vm1614, %v2188, 0
      %v2200 = vsel %vm1618, %v2186, 0
      %2202 = vmatprep.subr.mxu0 0.0
      %2203 = vmatpush1.msra.mxu0 %v2184
      %2204 = vmatprep.subr.mxu0 0.0
      %2205 = vmatpush1.msra.mxu0 %v2185
      %2206 = vmatprep.subr.mxu0 0.0
      %2207 = vmatpush1.msra.mxu0 %v2200
      %2208 = vmatprep.subr.mxu0 0.0
      %2209 = vmatpush1.msra.mxu0 0.0
      %2210 = vmatprep.subr.mxu0 0.0
      %2211 = vmatpush1.msra.mxu0 0.0
      %2212 = vmatprep.subr.mxu0 0.0
      %2213 = vmatpush1.msra.mxu0 0.0
      %2214 = vmatprep.subr.mxu0 0.0
      %2215 = vmatpush1.msra.mxu0 0.0
      %2216 = vmatprep.subr.mxu0 0.0
      %2217 = vmatpush1.msra.mxu0 0.0
      %2218 = vmatprep.subr.mxu0 0.0
      %2219 = vmatpush1.msra.mxu0 0.0
      %2220 = vmatprep.subr.mxu0 0.0
      %2221 = vmatpush1.msra.mxu0 0.0
      %2222 = vmatprep.subr.mxu0 0.0
      %2223 = vmatpush1.msra.mxu0 0.0
      %2224 = vmatprep.subr.mxu0 0.0
      %2225 = vmatpush1.msra.mxu0 0.0
      %2226 = vmatprep.subr.mxu0 0.0
      %2227 = vmatpush1.msra.mxu0 0.0
      %2228 = vmatprep.subr.mxu0 0.0
      %2229 = vmatpush1.msra.mxu0 0.0
      %2230 = vmatprep.subr.mxu0 0.0
      %2231 = vmatpush1.msra.mxu0 0.0
      %2232 = vmatprep.subr.mxu0 0.0
      %2233 = vmatpush1.msra.mxu0 0.0
      %2234 = vmatprep.subr.mxu0 0.0
      %2235 = vmatpush1.msra.mxu0 0.0
      %2236 = vmatprep.subr.mxu0 0.0
      %2237 = vmatpush1.msra.mxu0 0.0
      %2238 = vmatprep.subr.mxu0 0.0
      %2239 = vmatpush1.msra.mxu0 0.0
      %2240 = vmatprep.subr.mxu0 0.0
      %2241 = vmatpush1.msra.mxu0 0.0
      %2242 = vmatprep.subr.mxu0 0.0
      %2243 = vmatpush1.msra.mxu0 0.0
      %2244 = vmatprep.subr.mxu0 0.0
      %2245 = vmatpush1.msra.mxu0 0.0
      %2246 = vmatprep.subr.mxu0 0.0
      %2247 = vmatpush1.msra.mxu0 0.0
      %2248 = vmatprep.subr.mxu0 0.0
      %2249 = vmatpush1.msra.mxu0 0.0
      %2250 = vmatprep.subr.mxu0 0.0
      %2251 = vmatpush1.msra.mxu0 0.0
      %2252 = vmatprep.subr.mxu0 0.0
      %2253 = vmatpush1.msra.mxu0 0.0
      %2254 = vmatprep.subr.mxu0 0.0
      %2255 = vmatpush1.msra.mxu0 0.0
      %2256 = vmatprep.subr.mxu0 0.0
      %2257 = vmatpush1.msra.mxu0 0.0
      %2258 = vmatprep.subr.mxu0 0.0
      %2259 = vmatpush1.msra.mxu0 0.0
      %2260 = vmatprep.subr.mxu0 0.0
      %2261 = vmatpush1.msra.mxu0 0.0
      %2262 = vmatprep.subr.mxu0 0.0
      %2263 = vmatpush1.msra.mxu0 0.0
      %2264 = vmatprep.subr.mxu0 0.0
      %2265 = vmatpush1.msra.mxu0 0.0
      %2266 = vmatprep.mubr.f32.mxu0 0.0
      %2267 = vmatmul.mubr.f32.gmra.mrb[0].mxu0 %v2197
      %v2268 = vpop.f32.mrb[0].mxu0
      %v2269 = vadd.f32 %v2194, %v2268
      %v2270 = vpop.f32.mrb[0].mxu0
      %2271 = vdwg.mxu0
      %v2272 = vmax.f32 %v2269, 0.0
      %s2273 = scalar_lea.vmem %s17, 4
      %v2274 = vld [vmem:[%s2273] sm:$0x7]
      %s2275 = scalar_lea.vmem %s18, 4
      %v2276 = vld [vmem:[%s2275] sm:$0x7]
      %2278 = vset.pattern.permute.xlu0 0
      %2279 = vperm.xlu0 %2278, %v2276
      %v2280 = vpop.permute.xlu0 %2279
      %v2283 = vsel %vm1700, %v2274, 0
      %2285 = vmatprep.subr.mxu0 0.0
      %2286 = vmatpush1.msra.mxu0 %v2272
      %2287 = vmatprep.subr.mxu0 0.0
      %2288 = vmatpush1.msra.mxu0 0.0
      %2289 = vmatprep.subr.mxu0 0.0
      %2290 = vmatpush1.msra.mxu0 0.0
      %2291 = vmatprep.subr.mxu0 0.0
      %2292 = vmatpush1.msra.mxu0 0.0
      %2293 = vmatprep.subr.mxu0 0.0
      %2294 = vmatpush1.msra.mxu0 0.0
      %2295 = vmatprep.subr.mxu0 0.0
      %2296 = vmatpush1.msra.mxu0 0.0
      %2297 = vmatprep.subr.mxu0 0.0
      %2298 = vmatpush1.msra.mxu0 0.0
      %2299 = vmatprep.subr.mxu0 0.0
      %2300 = vmatpush1.msra.mxu0 0.0
      %2301 = vmatprep.subr.mxu0 0.0
      %2302 = vmatpush1.msra.mxu0 0.0
      %2303 = vmatprep.subr.mxu0 0.0
      %2304 = vmatpush1.msra.mxu0 0.0
      %2305 = vmatprep.subr.mxu0 0.0
      %2306 = vmatpush1.msra.mxu0 0.0
      %2307 = vmatprep.subr.mxu0 0.0
      %2308 = vmatpush1.msra.mxu0 0.0
      %2309 = vmatprep.subr.mxu0 0.0
      %2310 = vmatpush1.msra.mxu0 0.0
      %2311 = vmatprep.subr.mxu0 0.0
      %2312 = vmatpush1.msra.mxu0 0.0
      %2313 = vmatprep.subr.mxu0 0.0
      %2314 = vmatpush1.msra.mxu0 0.0
      %2315 = vmatprep.subr.mxu0 0.0
      %2316 = vmatpush1.msra.mxu0 0.0
      %2317 = vmatprep.subr.mxu0 0.0
      %2318 = vmatpush1.msra.mxu0 0.0
      %2319 = vmatprep.subr.mxu0 0.0
      %2320 = vmatpush1.msra.mxu0 0.0
      %2321 = vmatprep.subr.mxu0 0.0
      %2322 = vmatpush1.msra.mxu0 0.0
      %2323 = vmatprep.subr.mxu0 0.0
      %2324 = vmatpush1.msra.mxu0 0.0
      %2325 = vmatprep.subr.mxu0 0.0
      %2326 = vmatpush1.msra.mxu0 0.0
      %2327 = vmatprep.subr.mxu0 0.0
      %2328 = vmatpush1.msra.mxu0 0.0
      %2329 = vmatprep.subr.mxu0 0.0
      %2330 = vmatpush1.msra.mxu0 0.0
      %2331 = vmatprep.subr.mxu0 0.0
      %2332 = vmatpush1.msra.mxu0 0.0
      %2333 = vmatprep.subr.mxu0 0.0
      %2334 = vmatpush1.msra.mxu0 0.0
      %2335 = vmatprep.subr.mxu0 0.0
      %2336 = vmatpush1.msra.mxu0 0.0
      %2337 = vmatprep.subr.mxu0 0.0
      %2338 = vmatpush1.msra.mxu0 0.0
      %2339 = vmatprep.subr.mxu0 0.0
      %2340 = vmatpush1.msra.mxu0 0.0
      %2341 = vmatprep.subr.mxu0 0.0
      %2342 = vmatpush1.msra.mxu0 0.0
      %2343 = vmatprep.subr.mxu0 0.0
      %2344 = vmatpush1.msra.mxu0 0.0
      %2345 = vmatprep.subr.mxu0 0.0
      %2346 = vmatpush1.msra.mxu0 0.0
      %2347 = vmatprep.subr.mxu0 0.0
      %2348 = vmatpush1.msra.mxu0 0.0
      %2349 = vmatprep.mubr.f32.mxu0 0.0
      %2350 = vmatmul.mubr.f32.gmra.mrb[0].mxu0 %v2283
      %v2351 = vpop.f32.mrb[0].mxu0
      %v2352 = vadd.f32 %v2280, %v2351
      %v2353 = vpop.f32.mrb[0].mxu0
      %2354 = vdwg.mxu0
      %v2355 = vtanh.pop %v2352
      %v2356 = vmul.f32 %v2355, 2.0
      %s2357 = scalar_lea.vmem %s617, 4
      %v2358 = vld [vmem:[%s2357] sm:$0x3]
      %s2359 = scalar_lea.vmem %s11, 80
      %v2360 = vld [vmem:[%s2359] sm:$0xff]
      %v2361 = vld [vmem:[%s2359 + $0x8] sm:$0xff]
      %v2362 = vld [vmem:[%s2359 + $0x10] sm:$0xff]
      %v2363 = vld [vmem:[%s2359 + $0x18] sm:$0xff]
      %v2364 = vld [vmem:[%s2359 + $0x20] sm:$0x3]
      %v2366 = vsel %vm927, %v2360, 0
      %v2369 = vsel %vm927, %v2361, 0
      %v2372 = vsel %vm927, %v2362, 0
      %v2375 = vsel %vm927, %v2363, 0
      %v2378 = vsel %vm927, %v2364, 0
      %2380 = vmatprep.subr.mxu0 0.0
      %2381 = vmatpush1.msra.mxu0 %v1195
      %2382 = vmatprep.subr.mxu0 0.0
      %2383 = vmatpush1.msra.mxu0 %v1196
      %2384 = vmatprep.subr.mxu0 0.0
      %2385 = vmatpush1.msra.mxu0 %v1197
      %2386 = vmatprep.subr.mxu0 0.0
      %2387 = vmatpush1.msra.mxu0 %v1198
      %2388 = vmatprep.subr.mxu0 0.0
      %2389 = vmatpush1.msra.mxu0 0.0
      %2390 = vmatprep.subr.mxu0 0.0
      %2391 = vmatpush1.msra.mxu0 0.0
      %2392 = vmatprep.subr.mxu0 0.0
      %2393 = vmatpush1.msra.mxu0 0.0
      %2394 = vmatprep.subr.mxu0 0.0
      %2395 = vmatpush1.msra.mxu0 0.0
      %2396 = vmatprep.subr.mxu0 0.0
      %2397 = vmatpush1.msra.mxu0 0.0
      %2398 = vmatprep.subr.mxu0 0.0
      %2399 = vmatpush1.msra.mxu0 0.0
      %2400 = vmatprep.subr.mxu0 0.0
      %2401 = vmatpush1.msra.mxu0 0.0
      %2402 = vmatprep.subr.mxu0 0.0
      %2403 = vmatpush1.msra.mxu0 0.0
      %2404 = vmatprep.subr.mxu0 0.0
      %2405 = vmatpush1.msra.mxu0 0.0
      %2406 = vmatprep.subr.mxu0 0.0
      %2407 = vmatpush1.msra.mxu0 0.0
      %2408 = vmatprep.subr.mxu0 0.0
      %2409 = vmatpush1.msra.mxu0 0.0
      %2410 = vmatprep.subr.mxu0 0.0
      %2411 = vmatpush1.msra.mxu0 0.0
      %2412 = vmatprep.subr.mxu0 0.0
      %2413 = vmatpush1.msra.mxu0 0.0
      %2414 = vmatprep.subr.mxu0 0.0
      %2415 = vmatpush1.msra.mxu0 0.0
      %2416 = vmatprep.subr.mxu0 0.0
      %2417 = vmatpush1.msra.mxu0 0.0
      %2418 = vmatprep.subr.mxu0 0.0
      %2419 = vmatpush1.msra.mxu0 0.0
      %2420 = vmatprep.subr.mxu0 0.0
      %2421 = vmatpush1.msra.mxu0 0.0
      %2422 = vmatprep.subr.mxu0 0.0
      %2423 = vmatpush1.msra.mxu0 0.0
      %2424 = vmatprep.subr.mxu0 0.0
      %2425 = vmatpush1.msra.mxu0 0.0
      %2426 = vmatprep.subr.mxu0 0.0
      %2427 = vmatpush1.msra.mxu0 0.0
      %2428 = vmatprep.subr.mxu0 0.0
      %2429 = vmatpush1.msra.mxu0 0.0
      %2430 = vmatprep.subr.mxu0 0.0
      %2431 = vmatpush1.msra.mxu0 0.0
      %2432 = vmatprep.subr.mxu0 0.0
      %2433 = vmatpush1.msra.mxu0 0.0
      %2434 = vmatprep.subr.mxu0 0.0
      %2435 = vmatpush1.msra.mxu0 0.0
      %2436 = vmatprep.subr.mxu0 0.0
      %2437 = vmatpush1.msra.mxu0 0.0
      %2438 = vmatprep.subr.mxu0 0.0
      %2439 = vmatpush1.msra.mxu0 0.0
      %2440 = vmatprep.subr.mxu0 0.0
      %2441 = vmatpush1.msra.mxu0 0.0
      %2442 = vmatprep.subr.mxu0 0.0
      %2443 = vmatpush1.msra.mxu0 0.0
      %2444 = vmatprep.mubr.f32.mxu0 0.0
      %2445 = vmatmul.mubr.f32.gmra.mrb[0].mxu0 %v2366
      %v2446 = vpop.f32.mrb[0].mxu0
      %v2447 = vadd.f32 0.0, %v2446
      %v2448 = vpop.f32.mrb[0].mxu0
      %2449 = vmatprep.mubr.f32.mxu0 0.0
      %2450 = vmatmul.mubr.f32.gmra.mrb[0].mxu0 %v2369
      %v2451 = vpop.f32.mrb[0].mxu0
      %v2452 = vadd.f32 0.0, %v2451
      %v2453 = vpop.f32.mrb[0].mxu0
      %2454 = vmatprep.mubr.f32.mxu0 0.0
      %2455 = vmatmul.mubr.f32.gmra.mrb[0].mxu0 %v2372
      %v2456 = vpop.f32.mrb[0].mxu0
      %v2457 = vadd.f32 0.0, %v2456
      %v2458 = vpop.f32.mrb[0].mxu0
      %2459 = vmatprep.mubr.f32.mxu0 0.0
      %2460 = vmatmul.mubr.f32.gmra.mrb[0].mxu0 %v2375
      %v2461 = vpop.f32.mrb[0].mxu0
      %v2462 = vadd.f32 0.0, %v2461
      %v2463 = vpop.f32.mrb[0].mxu0
      %2464 = vmatprep.mubr.f32.mxu0 0.0
      %2465 = vmatmul.mubr.f32.gmra.mrb[0].mxu0 %v2378
      %v2466 = vpop.f32.mrb[0].mxu0
      %v2467 = vadd.f32 0.0, %v2466
      %v2468 = vpop.f32.mrb[0].mxu0
      %2469 = vdwg.mxu0
      %s2470 = scalar_lea.vmem %s10, 80
      %v2471 = vld [vmem:[%s2470] sm:$0xff]
      %v2472 = vld [vmem:[%s2470 + $0x8] sm:$0xff]
      %v2473 = vld [vmem:[%s2470 + $0x10] sm:$0xff]
      %v2474 = vld [vmem:[%s2470 + $0x18] sm:$0xff]
      %v2475 = vld [vmem:[%s2470 + $0x20] sm:$0x3]
      %2477 = vset.pattern.permute.xlu0 0
      %2478 = vperm.xlu0 %2477, %v2447
      %v2479 = vpop.permute.xlu0 %2478
      %2482 = vset.pattern.permute.xlu0 0
      %2483 = vperm.xlu0 %2482, %v2452
      %v2484 = vpop.permute.xlu0 %2483
      %2487 = vset.pattern.permute.xlu0 0
      %2488 = vperm.xlu0 %2487, %v2457
      %v2489 = vpop.permute.xlu0 %2488
      %2492 = vset.pattern.permute.xlu0 0
      %2493 = vperm.xlu0 %2492, %v2462
      %v2494 = vpop.permute.xlu0 %2493
      %2497 = vset.pattern.permute.xlu0 0
      %2498 = vperm.xlu0 %2497, %v2467
      %v2499 = vpop.permute.xlu0 %2498
      %v2502 = vsel %vm1340, %v2471, 0
      %v2505 = vsel %vm1340, %v2472, 0
      %v2508 = vsel %vm1340, %v2473, 0
      %v2511 = vsel %vm1340, %v2474, 0
      %v2514 = vsel %vm1340, %v2475, 0
      %v2517 = vsel %vm1356, %v2358, 0
      %2519 = vmatprep.subr.mxu0 0.0
      %2520 = vmatpush1.msra.mxu0 %v2517
      %2521 = vmatprep.subr.mxu0 0.0
      %2522 = vmatpush1.msra.mxu0 0.0
      %2523 = vmatprep.subr.mxu0 0.0
      %2524 = vmatpush1.msra.mxu0 0.0
      %2525 = vmatprep.subr.mxu0 0.0
      %2526 = vmatpush1.msra.mxu0 0.0
      %2527 = vmatprep.subr.mxu0 0.0
      %2528 = vmatpush1.msra.mxu0 0.0
      %2529 = vmatprep.subr.mxu0 0.0
      %2530 = vmatpush1.msra.mxu0 0.0
      %2531 = vmatprep.subr.mxu0 0.0
      %2532 = vmatpush1.msra.mxu0 0.0
      %2533 = vmatprep.subr.mxu0 0.0
      %2534 = vmatpush1.msra.mxu0 0.0
      %2535 = vmatprep.subr.mxu0 0.0
      %2536 = vmatpush1.msra.mxu0 0.0
      %2537 = vmatprep.subr.mxu0 0.0
      %2538 = vmatpush1.msra.mxu0 0.0
      %2539 = vmatprep.subr.mxu0 0.0
      %2540 = vmatpush1.msra.mxu0 0.0
      %2541 = vmatprep.subr.mxu0 0.0
      %2542 = vmatpush1.msra.mxu0 0.0
      %2543 = vmatprep.subr.mxu0 0.0
      %2544 = vmatpush1.msra.mxu0 0.0
      %2545 = vmatprep.subr.mxu0 0.0
      %2546 = vmatpush1.msra.mxu0 0.0
      %2547 = vmatprep.subr.mxu0 0.0
      %2548 = vmatpush1.msra.mxu0 0.0
      %2549 = vmatprep.subr.mxu0 0.0
      %2550 = vmatpush1.msra.mxu0 0.0
      %2551 = vmatprep.subr.mxu0 0.0
      %2552 = vmatpush1.msra.mxu0 0.0
      %2553 = vmatprep.subr.mxu0 0.0
      %2554 = vmatpush1.msra.mxu0 0.0
      %2555 = vmatprep.subr.mxu0 0.0
      %2556 = vmatpush1.msra.mxu0 0.0
      %2557 = vmatprep.subr.mxu0 0.0
      %2558 = vmatpush1.msra.mxu0 0.0
      %2559 = vmatprep.subr.mxu0 0.0
      %2560 = vmatpush1.msra.mxu0 0.0
      %2561 = vmatprep.subr.mxu0 0.0
      %2562 = vmatpush1.msra.mxu0 0.0
      %2563 = vmatprep.subr.mxu0 0.0
      %2564 = vmatpush1.msra.mxu0 0.0
      %2565 = vmatprep.subr.mxu0 0.0
      %2566 = vmatpush1.msra.mxu0 0.0
      %2567 = vmatprep.subr.mxu0 0.0
      %2568 = vmatpush1.msra.mxu0 0.0
      %2569 = vmatprep.subr.mxu0 0.0
      %2570 = vmatpush1.msra.mxu0 0.0
      %2571 = vmatprep.subr.mxu0 0.0
      %2572 = vmatpush1.msra.mxu0 0.0
      %2573 = vmatprep.subr.mxu0 0.0
      %2574 = vmatpush1.msra.mxu0 0.0
      %2575 = vmatprep.subr.mxu0 0.0
      %2576 = vmatpush1.msra.mxu0 0.0
      %2577 = vmatprep.subr.mxu0 0.0
      %2578 = vmatpush1.msra.mxu0 0.0
      %2579 = vmatprep.subr.mxu0 0.0
      %2580 = vmatpush1.msra.mxu0 0.0
      %2581 = vmatprep.subr.mxu0 0.0
      %2582 = vmatpush1.msra.mxu0 0.0
      %2583 = vmatprep.mubr.f32.mxu0 0.0
      %2584 = vmatmul.mubr.f32.gmra.mrb[0].mxu0 %v2502
      %v2585 = vpop.f32.mrb[0].mxu0
      %v2586 = vadd.f32 %v2479, %v2585
      %v2587 = vpop.f32.mrb[0].mxu0
      %2588 = vmatprep.mubr.f32.mxu0 0.0
      %2589 = vmatmul.mubr.f32.gmra.mrb[0].mxu0 %v2505
      %v2590 = vpop.f32.mrb[0].mxu0
      %v2591 = vadd.f32 %v2484, %v2590
      %v2592 = vpop.f32.mrb[0].mxu0
      %2593 = vmatprep.mubr.f32.mxu0 0.0
      %2594 = vmatmul.mubr.f32.gmra.mrb[0].mxu0 %v2508
      %v2595 = vpop.f32.mrb[0].mxu0
      %v2596 = vadd.f32 %v2489, %v2595
      %v2597 = vpop.f32.mrb[0].mxu0
      %2598 = vmatprep.mubr.f32.mxu0 0.0
      %2599 = vmatmul.mubr.f32.gmra.mrb[0].mxu0 %v2511
      %v2600 = vpop.f32.mrb[0].mxu0
      %v2601 = vadd.f32 %v2494, %v2600
      %v2602 = vpop.f32.mrb[0].mxu0
      %2603 = vmatprep.mubr.f32.mxu0 0.0
      %2604 = vmatmul.mubr.f32.gmra.mrb[0].mxu0 %v2514
      %v2605 = vpop.f32.mrb[0].mxu0
      %v2606 = vadd.f32 %v2499, %v2605
      %v2607 = vpop.f32.mrb[0].mxu0
      %2608 = vdwg.mxu0
      %s2609 = scalar_lea.vmem %s12, 80
      %v2610 = vld [vmem:[%s2609] sm:$0xff]
      %v2611 = vld [vmem:[%s2609 + $0x8] sm:$0xff]
      %v2612 = vld [vmem:[%s2609 + $0x10] sm:$0xff]
      %v2613 = vld [vmem:[%s2609 + $0x18] sm:$0xff]
      %v2614 = vld [vmem:[%s2609 + $0x20] sm:$0x3]
      %2616 = vset.pattern.permute.xlu0 0
      %2617 = vperm.xlu0 %2616, %v2610
      %v2618 = vpop.permute.xlu0 %2617
      %2621 = vset.pattern.permute.xlu0 0
      %2622 = vperm.xlu0 %2621, %v2611
      %v2623 = vpop.permute.xlu0 %2622
      %2626 = vset.pattern.permute.xlu0 0
      %2627 = vperm.xlu0 %2626, %v2612
      %v2628 = vpop.permute.xlu0 %2627
      %2631 = vset.pattern.permute.xlu0 0
      %2632 = vperm.xlu0 %2631, %v2613
      %v2633 = vpop.permute.xlu0 %2632
      %2636 = vset.pattern.permute.xlu0 0
      %2637 = vperm.xlu0 %2636, %v2614
      %v2638 = vpop.permute.xlu0 %2637
      %v2640 = vadd.f32 %v2586, %v2618
      %v2641 = vadd.f32 %v2591, %v2623
      %v2642 = vadd.f32 %v2596, %v2628
      %v2643 = vadd.f32 %v2601, %v2633
      %v2644 = vadd.f32 %v2606, %v2638
      %v2645 = vmax.f32 %v2640, 0.0
      %v2646 = vmax.f32 %v2641, 0.0
      %v2647 = vmax.f32 %v2642, 0.0
      %v2648 = vmax.f32 %v2643, 0.0
      %v2649 = vmax.f32 %v2644, 0.0
      %s2650 = scalar_lea.vmem %s13, 48
      %v2651 = vld [vmem:[%s2650] sm:$0xff]
      %v2652 = vld [vmem:[%s2650 + $0x8] sm:$0xff]
      %v2653 = vld [vmem:[%s2650 + $0x10] sm:$0x1]
      %s2654 = scalar_lea.vmem %s14, 48
      %v2655 = vld [vmem:[%s2654] sm:$0xff]
      %v2656 = vld [vmem:[%s2654 + $0x8] sm:$0xff]
      %v2657 = vld [vmem:[%s2654 + $0x10] sm:$0x1]
      %2659 = vset.pattern.permute.xlu0 0
      %2660 = vperm.xlu0 %2659, %v2655
      %v2661 = vpop.permute.xlu0 %2660
      %2664 = vset.pattern.permute.xlu0 0
      %2665 = vperm.xlu0 %2664, %v2656
      %v2666 = vpop.permute.xlu0 %2665
      %2669 = vset.pattern.permute.xlu0 0
      %2670 = vperm.xlu0 %2669, %v2657
      %v2671 = vpop.permute.xlu0 %2670
      %v2674 = vsel %vm1511, %v2651, 0
      %v2677 = vsel %vm1511, %v2652, 0
      %v2680 = vsel %vm1511, %v2653, 0
      %v2683 = vsel %vm1356, %v2649, 0
      %2685 = vmatprep.subr.mxu0 0.0
      %2686 = vmatpush1.msra.mxu0 %v2645
      %2687 = vmatprep.subr.mxu0 0.0
      %2688 = vmatpush1.msra.mxu0 %v2646
      %2689 = vmatprep.subr.mxu0 0.0
      %2690 = vmatpush1.msra.mxu0 %v2647
      %2691 = vmatprep.subr.mxu0 0.0
      %2692 = vmatpush1.msra.mxu0 %v2648
      %2693 = vmatprep.subr.mxu0 0.0
      %2694 = vmatpush1.msra.mxu0 %v2683
      %2695 = vmatprep.subr.mxu0 0.0
      %2696 = vmatpush1.msra.mxu0 0.0
      %2697 = vmatprep.subr.mxu0 0.0
      %2698 = vmatpush1.msra.mxu0 0.0
      %2699 = vmatprep.subr.mxu0 0.0
      %2700 = vmatpush1.msra.mxu0 0.0
      %2701 = vmatprep.subr.mxu0 0.0
      %2702 = vmatpush1.msra.mxu0 0.0
      %2703 = vmatprep.subr.mxu0 0.0
      %2704 = vmatpush1.msra.mxu0 0.0
      %2705 = vmatprep.subr.mxu0 0.0
      %2706 = vmatpush1.msra.mxu0 0.0
      %2707 = vmatprep.subr.mxu0 0.0
      %2708 = vmatpush1.msra.mxu0 0.0
      %2709 = vmatprep.subr.mxu0 0.0
      %2710 = vmatpush1.msra.mxu0 0.0
      %2711 = vmatprep.subr.mxu0 0.0
      %2712 = vmatpush1.msra.mxu0 0.0
      %2713 = vmatprep.subr.mxu0 0.0
      %2714 = vmatpush1.msra.mxu0 0.0
      %2715 = vmatprep.subr.mxu0 0.0
      %2716 = vmatpush1.msra.mxu0 0.0
      %2717 = vmatprep.subr.mxu0 0.0
      %2718 = vmatpush1.msra.mxu0 0.0
      %2719 = vmatprep.subr.mxu0 0.0
      %2720 = vmatpush1.msra.mxu0 0.0
      %2721 = vmatprep.subr.mxu0 0.0
      %2722 = vmatpush1.msra.mxu0 0.0
      %2723 = vmatprep.subr.mxu0 0.0
      %2724 = vmatpush1.msra.mxu0 0.0
      %2725 = vmatprep.subr.mxu0 0.0
      %2726 = vmatpush1.msra.mxu0 0.0
      %2727 = vmatprep.subr.mxu0 0.0
      %2728 = vmatpush1.msra.mxu0 0.0
      %2729 = vmatprep.subr.mxu0 0.0
      %2730 = vmatpush1.msra.mxu0 0.0
      %2731 = vmatprep.subr.mxu0 0.0
      %2732 = vmatpush1.msra.mxu0 0.0
      %2733 = vmatprep.subr.mxu0 0.0
      %2734 = vmatpush1.msra.mxu0 0.0
      %2735 = vmatprep.subr.mxu0 0.0
      %2736 = vmatpush1.msra.mxu0 0.0
      %2737 = vmatprep.subr.mxu0 0.0
      %2738 = vmatpush1.msra.mxu0 0.0
      %2739 = vmatprep.subr.mxu0 0.0
      %2740 = vmatpush1.msra.mxu0 0.0
      %2741 = vmatprep.subr.mxu0 0.0
      %2742 = vmatpush1.msra.mxu0 0.0
      %2743 = vmatprep.subr.mxu0 0.0
      %2744 = vmatpush1.msra.mxu0 0.0
      %2745 = vmatprep.subr.mxu0 0.0
      %2746 = vmatpush1.msra.mxu0 0.0
      %2747 = vmatprep.subr.mxu0 0.0
      %2748 = vmatpush1.msra.mxu0 0.0
      %2749 = vmatprep.mubr.f32.mxu0 0.0
      %2750 = vmatmul.mubr.f32.gmra.mrb[0].mxu0 %v2674
      %v2751 = vpop.f32.mrb[0].mxu0
      %v2752 = vadd.f32 %v2661, %v2751
      %v2753 = vpop.f32.mrb[0].mxu0
      %2754 = vmatprep.mubr.f32.mxu0 0.0
      %2755 = vmatmul.mubr.f32.gmra.mrb[0].mxu0 %v2677
      %v2756 = vpop.f32.mrb[0].mxu0
      %v2757 = vadd.f32 %v2666, %v2756
      %v2758 = vpop.f32.mrb[0].mxu0
      %2759 = vmatprep.mubr.f32.mxu0 0.0
      %2760 = vmatmul.mubr.f32.gmra.mrb[0].mxu0 %v2680
      %v2761 = vpop.f32.mrb[0].mxu0
      %v2762 = vadd.f32 %v2671, %v2761
      %v2763 = vpop.f32.mrb[0].mxu0
      %2764 = vdwg.mxu0
      %v2765 = vmax.f32 %v2752, 0.0
      %v2766 = vmax.f32 %v2757, 0.0
      %v2767 = vmax.f32 %v2762, 0.0
      %s2768 = scalar_lea.vmem %s15, 16
      %v2769 = vld [vmem:[%s2768] sm:$0xff]
      %s2770 = scalar_lea.vmem %s16, 16
      %v2771 = vld [vmem:[%s2770] sm:$0xff]
      %2773 = vset.pattern.permute.xlu0 0
      %2774 = vperm.xlu0 %2773, %v2771
      %v2775 = vpop.permute.xlu0 %2774
      %v2778 = vsel %vm1614, %v2769, 0
      %v2781 = vsel %vm1618, %v2767, 0
      %2783 = vmatprep.subr.mxu0 0.0
      %2784 = vmatpush1.msra.mxu0 %v2765
      %2785 = vmatprep.subr.mxu0 0.0
      %2786 = vmatpush1.msra.mxu0 %v2766
      %2787 = vmatprep.subr.mxu0 0.0
      %2788 = vmatpush1.msra.mxu0 %v2781
      %2789 = vmatprep.subr.mxu0 0.0
      %2790 = vmatpush1.msra.mxu0 0.0
      %2791 = vmatprep.subr.mxu0 0.0
      %2792 = vmatpush1.msra.mxu0 0.0
      %2793 = vmatprep.subr.mxu0 0.0
      %2794 = vmatpush1.msra.mxu0 0.0
      %2795 = vmatprep.subr.mxu0 0.0
      %2796 = vmatpush1.msra.mxu0 0.0
      %2797 = vmatprep.subr.mxu0 0.0
      %2798 = vmatpush1.msra.mxu0 0.0
      %2799 = vmatprep.subr.mxu0 0.0
      %2800 = vmatpush1.msra.mxu0 0.0
      %2801 = vmatprep.subr.mxu0 0.0
      %2802 = vmatpush1.msra.mxu0 0.0
      %2803 = vmatprep.subr.mxu0 0.0
      %2804 = vmatpush1.msra.mxu0 0.0
      %2805 = vmatprep.subr.mxu0 0.0
      %2806 = vmatpush1.msra.mxu0 0.0
      %2807 = vmatprep.subr.mxu0 0.0
      %2808 = vmatpush1.msra.mxu0 0.0
      %2809 = vmatprep.subr.mxu0 0.0
      %2810 = vmatpush1.msra.mxu0 0.0
      %2811 = vmatprep.subr.mxu0 0.0
      %2812 = vmatpush1.msra.mxu0 0.0
      %2813 = vmatprep.subr.mxu0 0.0
      %2814 = vmatpush1.msra.mxu0 0.0
      %2815 = vmatprep.subr.mxu0 0.0
      %2816 = vmatpush1.msra.mxu0 0.0
      %2817 = vmatprep.subr.mxu0 0.0
      %2818 = vmatpush1.msra.mxu0 0.0
      %2819 = vmatprep.subr.mxu0 0.0
      %2820 = vmatpush1.msra.mxu0 0.0
      %2821 = vmatprep.subr.mxu0 0.0
      %2822 = vmatpush1.msra.mxu0 0.0
      %2823 = vmatprep.subr.mxu0 0.0
      %2824 = vmatpush1.msra.mxu0 0.0
      %2825 = vmatprep.subr.mxu0 0.0
      %2826 = vmatpush1.msra.mxu0 0.0
      %2827 = vmatprep.subr.mxu0 0.0
      %2828 = vmatpush1.msra.mxu0 0.0
      %2829 = vmatprep.subr.mxu0 0.0
      %2830 = vmatpush1.msra.mxu0 0.0
      %2831 = vmatprep.subr.mxu0 0.0
      %2832 = vmatpush1.msra.mxu0 0.0
      %2833 = vmatprep.subr.mxu0 0.0
      %2834 = vmatpush1.msra.mxu0 0.0
      %2835 = vmatprep.subr.mxu0 0.0
      %2836 = vmatpush1.msra.mxu0 0.0
      %2837 = vmatprep.subr.mxu0 0.0
      %2838 = vmatpush1.msra.mxu0 0.0
      %2839 = vmatprep.subr.mxu0 0.0
      %2840 = vmatpush1.msra.mxu0 0.0
      %2841 = vmatprep.subr.mxu0 0.0
      %2842 = vmatpush1.msra.mxu0 0.0
      %2843 = vmatprep.subr.mxu0 0.0
      %2844 = vmatpush1.msra.mxu0 0.0
      %2845 = vmatprep.subr.mxu0 0.0
      %2846 = vmatpush1.msra.mxu0 0.0
      %2847 = vmatprep.mubr.f32.mxu0 0.0
      %2848 = vmatmul.mubr.f32.gmra.mrb[0].mxu0 %v2778
      %v2849 = vpop.f32.mrb[0].mxu0
      %v2850 = vadd.f32 %v2775, %v2849
      %v2851 = vpop.f32.mrb[0].mxu0
      %2852 = vdwg.mxu0
      %v2853 = vmax.f32 %v2850, 0.0
      %s2854 = scalar_lea.vmem %s17, 8
      %v2855 = vld [vmem:[%s2854] sm:$0x7]
      %s2856 = scalar_lea.vmem %s18, 8
      %v2857 = vld [vmem:[%s2856] sm:$0x7]
      %2859 = vset.pattern.permute.xlu0 0
      %2860 = vperm.xlu0 %2859, %v2857
      %v2861 = vpop.permute.xlu0 %2860
      %v2864 = vsel %vm1700, %v2855, 0
      %2866 = vmatprep.subr.mxu0 0.0
      %2867 = vmatpush1.msra.mxu0 %v2853
      %2868 = vmatprep.subr.mxu0 0.0
      %2869 = vmatpush1.msra.mxu0 0.0
      %2870 = vmatprep.subr.mxu0 0.0
      %2871 = vmatpush1.msra.mxu0 0.0
      %2872 = vmatprep.subr.mxu0 0.0
      %2873 = vmatpush1.msra.mxu0 0.0
      %2874 = vmatprep.subr.mxu0 0.0
      %2875 = vmatpush1.msra.mxu0 0.0
      %2876 = vmatprep.subr.mxu0 0.0
      %2877 = vmatpush1.msra.mxu0 0.0
      %2878 = vmatprep.subr.mxu0 0.0
      %2879 = vmatpush1.msra.mxu0 0.0
      %2880 = vmatprep.subr.mxu0 0.0
      %2881 = vmatpush1.msra.mxu0 0.0
      %2882 = vmatprep.subr.mxu0 0.0
      %2883 = vmatpush1.msra.mxu0 0.0
      %2884 = vmatprep.subr.mxu0 0.0
      %2885 = vmatpush1.msra.mxu0 0.0
      %2886 = vmatprep.subr.mxu0 0.0
      %2887 = vmatpush1.msra.mxu0 0.0
      %2888 = vmatprep.subr.mxu0 0.0
      %2889 = vmatpush1.msra.mxu0 0.0
      %2890 = vmatprep.subr.mxu0 0.0
      %2891 = vmatpush1.msra.mxu0 0.0
      %2892 = vmatprep.subr.mxu0 0.0
      %2893 = vmatpush1.msra.mxu0 0.0
      %2894 = vmatprep.subr.mxu0 0.0
      %2895 = vmatpush1.msra.mxu0 0.0
      %2896 = vmatprep.subr.mxu0 0.0
      %2897 = vmatpush1.msra.mxu0 0.0
      %2898 = vmatprep.subr.mxu0 0.0
      %2899 = vmatpush1.msra.mxu0 0.0
      %2900 = vmatprep.subr.mxu0 0.0
      %2901 = vmatpush1.msra.mxu0 0.0
      %2902 = vmatprep.subr.mxu0 0.0
      %2903 = vmatpush1.msra.mxu0 0.0
      %2904 = vmatprep.subr.mxu0 0.0
      %2905 = vmatpush1.msra.mxu0 0.0
      %2906 = vmatprep.subr.mxu0 0.0
      %2907 = vmatpush1.msra.mxu0 0.0
      %2908 = vmatprep.subr.mxu0 0.0
      %2909 = vmatpush1.msra.mxu0 0.0
      %2910 = vmatprep.subr.mxu0 0.0
      %2911 = vmatpush1.msra.mxu0 0.0
      %2912 = vmatprep.subr.mxu0 0.0
      %2913 = vmatpush1.msra.mxu0 0.0
      %2914 = vmatprep.subr.mxu0 0.0
      %2915 = vmatpush1.msra.mxu0 0.0
      %2916 = vmatprep.subr.mxu0 0.0
      %2917 = vmatpush1.msra.mxu0 0.0
      %2918 = vmatprep.subr.mxu0 0.0
      %2919 = vmatpush1.msra.mxu0 0.0
      %2920 = vmatprep.subr.mxu0 0.0
      %2921 = vmatpush1.msra.mxu0 0.0
      %2922 = vmatprep.subr.mxu0 0.0
      %2923 = vmatpush1.msra.mxu0 0.0
      %2924 = vmatprep.subr.mxu0 0.0
      %2925 = vmatpush1.msra.mxu0 0.0
      %2926 = vmatprep.subr.mxu0 0.0
      %2927 = vmatpush1.msra.mxu0 0.0
      %2928 = vmatprep.subr.mxu0 0.0
      %2929 = vmatpush1.msra.mxu0 0.0
      %2930 = vmatprep.mubr.f32.mxu0 0.0
      %2931 = vmatmul.mubr.f32.gmra.mrb[0].mxu0 %v2864
      %v2932 = vpop.f32.mrb[0].mxu0
      %v2933 = vadd.f32 %v2861, %v2932
      %v2934 = vpop.f32.mrb[0].mxu0
      %2935 = vdwg.mxu0
      %v2936 = vtanh.pop %v2933
      %v2937 = vmul.f32 %v2936, 2.0
      %s2938 = scalar_lea.vmem %s617, 6
      %v2939 = vld [vmem:[%s2938] sm:$0x3]
      %s2940 = scalar_lea.vmem %s11, 120
      %v2941 = vld [vmem:[%s2940] sm:$0xff]
      %v2942 = vld [vmem:[%s2940 + $0x8] sm:$0xff]
      %v2943 = vld [vmem:[%s2940 + $0x10] sm:$0xff]
      %v2944 = vld [vmem:[%s2940 + $0x18] sm:$0xff]
      %v2945 = vld [vmem:[%s2940 + $0x20] sm:$0x3]
      %v2947 = vsel %vm927, %v2941, 0
      %v2950 = vsel %vm927, %v2942, 0
      %v2953 = vsel %vm927, %v2943, 0
      %v2956 = vsel %vm927, %v2944, 0
      %v2959 = vsel %vm927, %v2945, 0
      %2961 = vmatprep.subr.mxu0 0.0
      %2962 = vmatpush1.msra.mxu0 %v1195
      %2963 = vmatprep.subr.mxu0 0.0
      %2964 = vmatpush1.msra.mxu0 %v1196
      %2965 = vmatprep.subr.mxu0 0.0
      %2966 = vmatpush1.msra.mxu0 %v1197
      %2967 = vmatprep.subr.mxu0 0.0
      %2968 = vmatpush1.msra.mxu0 %v1198
      %2969 = vmatprep.subr.mxu0 0.0
      %2970 = vmatpush1.msra.mxu0 0.0
      %2971 = vmatprep.subr.mxu0 0.0
      %2972 = vmatpush1.msra.mxu0 0.0
      %2973 = vmatprep.subr.mxu0 0.0
      %2974 = vmatpush1.msra.mxu0 0.0
      %2975 = vmatprep.subr.mxu0 0.0
      %2976 = vmatpush1.msra.mxu0 0.0
      %2977 = vmatprep.subr.mxu0 0.0
      %2978 = vmatpush1.msra.mxu0 0.0
      %2979 = vmatprep.subr.mxu0 0.0
      %2980 = vmatpush1.msra.mxu0 0.0
      %2981 = vmatprep.subr.mxu0 0.0
      %2982 = vmatpush1.msra.mxu0 0.0
      %2983 = vmatprep.subr.mxu0 0.0
      %2984 = vmatpush1.msra.mxu0 0.0
      %2985 = vmatprep.subr.mxu0 0.0
      %2986 = vmatpush1.msra.mxu0 0.0
      %2987 = vmatprep.subr.mxu0 0.0
      %2988 = vmatpush1.msra.mxu0 0.0
      %2989 = vmatprep.subr.mxu0 0.0
      %2990 = vmatpush1.msra.mxu0 0.0
      %2991 = vmatprep.subr.mxu0 0.0
      %2992 = vmatpush1.msra.mxu0 0.0
      %2993 = vmatprep.subr.mxu0 0.0
      %2994 = vmatpush1.msra.mxu0 0.0
      %2995 = vmatprep.subr.mxu0 0.0
      %2996 = vmatpush1.msra.mxu0 0.0
      %2997 = vmatprep.subr.mxu0 0.0
      %2998 = vmatpush1.msra.mxu0 0.0
      %2999 = vmatprep.subr.mxu0 0.0
      %3000 = vmatpush1.msra.mxu0 0.0
      %3001 = vmatprep.subr.mxu0 0.0
      %3002 = vmatpush1.msra.mxu0 0.0
      %3003 = vmatprep.subr.mxu0 0.0
      %3004 = vmatpush1.msra.mxu0 0.0
      %3005 = vmatprep.subr.mxu0 0.0
      %3006 = vmatpush1.msra.mxu0 0.0
      %3007 = vmatprep.subr.mxu0 0.0
      %3008 = vmatpush1.msra.mxu0 0.0
      %3009 = vmatprep.subr.mxu0 0.0
      %3010 = vmatpush1.msra.mxu0 0.0
      %3011 = vmatprep.subr.mxu0 0.0
      %3012 = vmatpush1.msra.mxu0 0.0
      %3013 = vmatprep.subr.mxu0 0.0
      %3014 = vmatpush1.msra.mxu0 0.0
      %3015 = vmatprep.subr.mxu0 0.0
      %3016 = vmatpush1.msra.mxu0 0.0
      %3017 = vmatprep.subr.mxu0 0.0
      %3018 = vmatpush1.msra.mxu0 0.0
      %3019 = vmatprep.subr.mxu0 0.0
      %3020 = vmatpush1.msra.mxu0 0.0
      %3021 = vmatprep.subr.mxu0 0.0
      %3022 = vmatpush1.msra.mxu0 0.0
      %3023 = vmatprep.subr.mxu0 0.0
      %3024 = vmatpush1.msra.mxu0 0.0
      %3025 = vmatprep.mubr.f32.mxu0 0.0
      %3026 = vmatmul.mubr.f32.gmra.mrb[0].mxu0 %v2947
      %v3027 = vpop.f32.mrb[0].mxu0
      %v3028 = vadd.f32 0.0, %v3027
      %v3029 = vpop.f32.mrb[0].mxu0
      %3030 = vmatprep.mubr.f32.mxu0 0.0
      %3031 = vmatmul.mubr.f32.gmra.mrb[0].mxu0 %v2950
      %v3032 = vpop.f32.mrb[0].mxu0
      %v3033 = vadd.f32 0.0, %v3032
      %v3034 = vpop.f32.mrb[0].mxu0
      %3035 = vmatprep.mubr.f32.mxu0 0.0
      %3036 = vmatmul.mubr.f32.gmra.mrb[0].mxu0 %v2953
      %v3037 = vpop.f32.mrb[0].mxu0
      %v3038 = vadd.f32 0.0, %v3037
      %v3039 = vpop.f32.mrb[0].mxu0
      %3040 = vmatprep.mubr.f32.mxu0 0.0
      %3041 = vmatmul.mubr.f32.gmra.mrb[0].mxu0 %v2956
      %v3042 = vpop.f32.mrb[0].mxu0
      %v3043 = vadd.f32 0.0, %v3042
      %v3044 = vpop.f32.mrb[0].mxu0
      %3045 = vmatprep.mubr.f32.mxu0 0.0
      %3046 = vmatmul.mubr.f32.gmra.mrb[0].mxu0 %v2959
      %v3047 = vpop.f32.mrb[0].mxu0
      %v3048 = vadd.f32 0.0, %v3047
      %v3049 = vpop.f32.mrb[0].mxu0
      %3050 = vdwg.mxu0
      %s3051 = scalar_lea.vmem %s10, 120
      %v3052 = vld [vmem:[%s3051] sm:$0xff]
      %v3053 = vld [vmem:[%s3051 + $0x8] sm:$0xff]
      %v3054 = vld [vmem:[%s3051 + $0x10] sm:$0xff]
      %v3055 = vld [vmem:[%s3051 + $0x18] sm:$0xff]
      %v3056 = vld [vmem:[%s3051 + $0x20] sm:$0x3]
      %3058 = vset.pattern.permute.xlu0 0
      %3059 = vperm.xlu0 %3058, %v3028
      %v3060 = vpop.permute.xlu0 %3059
      %3063 = vset.pattern.permute.xlu0 0
      %3064 = vperm.xlu0 %3063, %v3033
      %v3065 = vpop.permute.xlu0 %3064
      %3068 = vset.pattern.permute.xlu0 0
      %3069 = vperm.xlu0 %3068, %v3038
      %v3070 = vpop.permute.xlu0 %3069
      %3073 = vset.pattern.permute.xlu0 0
      %3074 = vperm.xlu0 %3073, %v3043
      %v3075 = vpop.permute.xlu0 %3074
      %3078 = vset.pattern.permute.xlu0 0
      %3079 = vperm.xlu0 %3078, %v3048
      %v3080 = vpop.permute.xlu0 %3079
      %v3083 = vsel %vm1340, %v3052, 0
      %v3086 = vsel %vm1340, %v3053, 0
      %v3089 = vsel %vm1340, %v3054, 0
      %v3092 = vsel %vm1340, %v3055, 0
      %v3095 = vsel %vm1340, %v3056, 0
      %v3098 = vsel %vm1356, %v2939, 0
      %3100 = vmatprep.subr.mxu0 0.0
      %3101 = vmatpush1.msra.mxu0 %v3098
      %3102 = vmatprep.subr.mxu0 0.0
      %3103 = vmatpush1.msra.mxu0 0.0
      %3104 = vmatprep.subr.mxu0 0.0
      %3105 = vmatpush1.msra.mxu0 0.0
      %3106 = vmatprep.subr.mxu0 0.0
      %3107 = vmatpush1.msra.mxu0 0.0
      %3108 = vmatprep.subr.mxu0 0.0
      %3109 = vmatpush1.msra.mxu0 0.0
      %3110 = vmatprep.subr.mxu0 0.0
      %3111 = vmatpush1.msra.mxu0 0.0
      %3112 = vmatprep.subr.mxu0 0.0
      %3113 = vmatpush1.msra.mxu0 0.0
      %3114 = vmatprep.subr.mxu0 0.0
      %3115 = vmatpush1.msra.mxu0 0.0
      %3116 = vmatprep.subr.mxu0 0.0
      %3117 = vmatpush1.msra.mxu0 0.0
      %3118 = vmatprep.subr.mxu0 0.0
      %3119 = vmatpush1.msra.mxu0 0.0
      %3120 = vmatprep.subr.mxu0 0.0
      %3121 = vmatpush1.msra.mxu0 0.0
      %3122 = vmatprep.subr.mxu0 0.0
      %3123 = vmatpush1.msra.mxu0 0.0
      %3124 = vmatprep.subr.mxu0 0.0
      %3125 = vmatpush1.msra.mxu0 0.0
      %3126 = vmatprep.subr.mxu0 0.0
      %3127 = vmatpush1.msra.mxu0 0.0
      %3128 = vmatprep.subr.mxu0 0.0
      %3129 = vmatpush1.msra.mxu0 0.0
      %3130 = vmatprep.subr.mxu0 0.0
      %3131 = vmatpush1.msra.mxu0 0.0
      %3132 = vmatprep.subr.mxu0 0.0
      %3133 = vmatpush1.msra.mxu0 0.0
      %3134 = vmatprep.subr.mxu0 0.0
      %3135 = vmatpush1.msra.mxu0 0.0
      %3136 = vmatprep.subr.mxu0 0.0
      %3137 = vmatpush1.msra.mxu0 0.0
      %3138 = vmatprep.subr.mxu0 0.0
      %3139 = vmatpush1.msra.mxu0 0.0
      %3140 = vmatprep.subr.mxu0 0.0
      %3141 = vmatpush1.msra.mxu0 0.0
      %3142 = vmatprep.subr.mxu0 0.0
      %3143 = vmatpush1.msra.mxu0 0.0
      %3144 = vmatprep.subr.mxu0 0.0
      %3145 = vmatpush1.msra.mxu0 0.0
      %3146 = vmatprep.subr.mxu0 0.0
      %3147 = vmatpush1.msra.mxu0 0.0
      %3148 = vmatprep.subr.mxu0 0.0
      %3149 = vmatpush1.msra.mxu0 0.0
      %3150 = vmatprep.subr.mxu0 0.0
      %3151 = vmatpush1.msra.mxu0 0.0
      %3152 = vmatprep.subr.mxu0 0.0
      %3153 = vmatpush1.msra.mxu0 0.0
      %3154 = vmatprep.subr.mxu0 0.0
      %3155 = vmatpush1.msra.mxu0 0.0
      %3156 = vmatprep.subr.mxu0 0.0
      %3157 = vmatpush1.msra.mxu0 0.0
      %3158 = vmatprep.subr.mxu0 0.0
      %3159 = vmatpush1.msra.mxu0 0.0
      %3160 = vmatprep.subr.mxu0 0.0
      %3161 = vmatpush1.msra.mxu0 0.0
      %3162 = vmatprep.subr.mxu0 0.0
      %3163 = vmatpush1.msra.mxu0 0.0
      %3164 = vmatprep.mubr.f32.mxu0 0.0
      %3165 = vmatmul.mubr.f32.gmra.mrb[0].mxu0 %v3083
      %v3166 = vpop.f32.mrb[0].mxu0
      %v3167 = vadd.f32 %v3060, %v3166
      %v3168 = vpop.f32.mrb[0].mxu0
      %3169 = vmatprep.mubr.f32.mxu0 0.0
      %3170 = vmatmul.mubr.f32.gmra.mrb[0].mxu0 %v3086
      %v3171 = vpop.f32.mrb[0].mxu0
      %v3172 = vadd.f32 %v3065, %v3171
      %v3173 = vpop.f32.mrb[0].mxu0
      %3174 = vmatprep.mubr.f32.mxu0 0.0
      %3175 = vmatmul.mubr.f32.gmra.mrb[0].mxu0 %v3089
      %v3176 = vpop.f32.mrb[0].mxu0
      %v3177 = vadd.f32 %v3070, %v3176
      %v3178 = vpop.f32.mrb[0].mxu0
      %3179 = vmatprep.mubr.f32.mxu0 0.0
      %3180 = vmatmul.mubr.f32.gmra.mrb[0].mxu0 %v3092
      %v3181 = vpop.f32.mrb[0].mxu0
      %v3182 = vadd.f32 %v3075, %v3181
      %v3183 = vpop.f32.mrb[0].mxu0
      %3184 = vmatprep.mubr.f32.mxu0 0.0
      %3185 = vmatmul.mubr.f32.gmra.mrb[0].mxu0 %v3095
      %v3186 = vpop.f32.mrb[0].mxu0
      %v3187 = vadd.f32 %v3080, %v3186
      %v3188 = vpop.f32.mrb[0].mxu0
      %3189 = vdwg.mxu0
      %s3190 = scalar_lea.vmem %s12, 120
      %v3191 = vld [vmem:[%s3190] sm:$0xff]
      %v3192 = vld [vmem:[%s3190 + $0x8] sm:$0xff]
      %v3193 = vld [vmem:[%s3190 + $0x10] sm:$0xff]
      %v3194 = vld [vmem:[%s3190 + $0x18] sm:$0xff]
      %v3195 = vld [vmem:[%s3190 + $0x20] sm:$0x3]
      %3197 = vset.pattern.permute.xlu0 0
      %3198 = vperm.xlu0 %3197, %v3191
      %v3199 = vpop.permute.xlu0 %3198
      %3202 = vset.pattern.permute.xlu0 0
      %3203 = vperm.xlu0 %3202, %v3192
      %v3204 = vpop.permute.xlu0 %3203
      %3207 = vset.pattern.permute.xlu0 0
      %3208 = vperm.xlu0 %3207, %v3193
      %v3209 = vpop.permute.xlu0 %3208
      %3212 = vset.pattern.permute.xlu0 0
      %3213 = vperm.xlu0 %3212, %v3194
      %v3214 = vpop.permute.xlu0 %3213
      %3217 = vset.pattern.permute.xlu0 0
      %3218 = vperm.xlu0 %3217, %v3195
      %v3219 = vpop.permute.xlu0 %3218
      %v3221 = vadd.f32 %v3167, %v3199
      %v3222 = vadd.f32 %v3172, %v3204
      %v3223 = vadd.f32 %v3177, %v3209
      %v3224 = vadd.f32 %v3182, %v3214
      %v3225 = vadd.f32 %v3187, %v3219
      %v3226 = vmax.f32 %v3221, 0.0
      %v3227 = vmax.f32 %v3222, 0.0
      %v3228 = vmax.f32 %v3223, 0.0
      %v3229 = vmax.f32 %v3224, 0.0
      %v3230 = vmax.f32 %v3225, 0.0
      %s3231 = scalar_lea.vmem %s13, 72
      %v3232 = vld [vmem:[%s3231] sm:$0xff]
      %v3233 = vld [vmem:[%s3231 + $0x8] sm:$0xff]
      %v3234 = vld [vmem:[%s3231 + $0x10] sm:$0x1]
      %s3235 = scalar_lea.vmem %s14, 72
      %v3236 = vld [vmem:[%s3235] sm:$0xff]
      %v3237 = vld [vmem:[%s3235 + $0x8] sm:$0xff]
      %v3238 = vld [vmem:[%s3235 + $0x10] sm:$0x1]
      %3240 = vset.pattern.permute.xlu0 0
      %3241 = vperm.xlu0 %3240, %v3236
      %v3242 = vpop.permute.xlu0 %3241
      %3245 = vset.pattern.permute.xlu0 0
      %3246 = vperm.xlu0 %3245, %v3237
      %v3247 = vpop.permute.xlu0 %3246
      %3250 = vset.pattern.permute.xlu0 0
      %3251 = vperm.xlu0 %3250, %v3238
      %v3252 = vpop.permute.xlu0 %3251
      %v3255 = vsel %vm1511, %v3232, 0
      %v3258 = vsel %vm1511, %v3233, 0
      %v3261 = vsel %vm1511, %v3234, 0
      %v3264 = vsel %vm1356, %v3230, 0
      %3266 = vmatprep.subr.mxu0 0.0
      %3267 = vmatpush1.msra.mxu0 %v3226
      %3268 = vmatprep.subr.mxu0 0.0
      %3269 = vmatpush1.msra.mxu0 %v3227
      %3270 = vmatprep.subr.mxu0 0.0
      %3271 = vmatpush1.msra.mxu0 %v3228
      %3272 = vmatprep.subr.mxu0 0.0
      %3273 = vmatpush1.msra.mxu0 %v3229
      %3274 = vmatprep.subr.mxu0 0.0
      %3275 = vmatpush1.msra.mxu0 %v3264
      %3276 = vmatprep.subr.mxu0 0.0
      %3277 = vmatpush1.msra.mxu0 0.0
      %3278 = vmatprep.subr.mxu0 0.0
      %3279 = vmatpush1.msra.mxu0 0.0
      %3280 = vmatprep.subr.mxu0 0.0
      %3281 = vmatpush1.msra.mxu0 0.0
      %3282 = vmatprep.subr.mxu0 0.0
      %3283 = vmatpush1.msra.mxu0 0.0
      %3284 = vmatprep.subr.mxu0 0.0
      %3285 = vmatpush1.msra.mxu0 0.0
      %3286 = vmatprep.subr.mxu0 0.0
      %3287 = vmatpush1.msra.mxu0 0.0
      %3288 = vmatprep.subr.mxu0 0.0
      %3289 = vmatpush1.msra.mxu0 0.0
      %3290 = vmatprep.subr.mxu0 0.0
      %3291 = vmatpush1.msra.mxu0 0.0
      %3292 = vmatprep.subr.mxu0 0.0
      %3293 = vmatpush1.msra.mxu0 0.0
      %3294 = vmatprep.subr.mxu0 0.0
      %3295 = vmatpush1.msra.mxu0 0.0
      %3296 = vmatprep.subr.mxu0 0.0
      %3297 = vmatpush1.msra.mxu0 0.0
      %3298 = vmatprep.subr.mxu0 0.0
      %3299 = vmatpush1.msra.mxu0 0.0
      %3300 = vmatprep.subr.mxu0 0.0
      %3301 = vmatpush1.msra.mxu0 0.0
      %3302 = vmatprep.subr.mxu0 0.0
      %3303 = vmatpush1.msra.mxu0 0.0
      %3304 = vmatprep.subr.mxu0 0.0
      %3305 = vmatpush1.msra.mxu0 0.0
      %3306 = vmatprep.subr.mxu0 0.0
      %3307 = vmatpush1.msra.mxu0 0.0
      %3308 = vmatprep.subr.mxu0 0.0
      %3309 = vmatpush1.msra.mxu0 0.0
      %3310 = vmatprep.subr.mxu0 0.0
      %3311 = vmatpush1.msra.mxu0 0.0
      %3312 = vmatprep.subr.mxu0 0.0
      %3313 = vmatpush1.msra.mxu0 0.0
      %3314 = vmatprep.subr.mxu0 0.0
      %3315 = vmatpush1.msra.mxu0 0.0
      %3316 = vmatprep.subr.mxu0 0.0
      %3317 = vmatpush1.msra.mxu0 0.0
      %3318 = vmatprep.subr.mxu0 0.0
      %3319 = vmatpush1.msra.mxu0 0.0
      %3320 = vmatprep.subr.mxu0 0.0
      %3321 = vmatpush1.msra.mxu0 0.0
      %3322 = vmatprep.subr.mxu0 0.0
      %3323 = vmatpush1.msra.mxu0 0.0
      %3324 = vmatprep.subr.mxu0 0.0
      %3325 = vmatpush1.msra.mxu0 0.0
      %3326 = vmatprep.subr.mxu0 0.0
      %3327 = vmatpush1.msra.mxu0 0.0
      %3328 = vmatprep.subr.mxu0 0.0
      %3329 = vmatpush1.msra.mxu0 0.0
      %3330 = vmatprep.mubr.f32.mxu0 0.0
      %3331 = vmatmul.mubr.f32.gmra.mrb[0].mxu0 %v3255
      %v3332 = vpop.f32.mrb[0].mxu0
      %v3333 = vadd.f32 %v3242, %v3332
      %v3334 = vpop.f32.mrb[0].mxu0
      %3335 = vmatprep.mubr.f32.mxu0 0.0
      %3336 = vmatmul.mubr.f32.gmra.mrb[0].mxu0 %v3258
      %v3337 = vpop.f32.mrb[0].mxu0
      %v3338 = vadd.f32 %v3247, %v3337
      %v3339 = vpop.f32.mrb[0].mxu0
      %3340 = vmatprep.mubr.f32.mxu0 0.0
      %3341 = vmatmul.mubr.f32.gmra.mrb[0].mxu0 %v3261
      %v3342 = vpop.f32.mrb[0].mxu0
      %v3343 = vadd.f32 %v3252, %v3342
      %v3344 = vpop.f32.mrb[0].mxu0
      %3345 = vdwg.mxu0
      %v3346 = vmax.f32 %v3333, 0.0
      %v3347 = vmax.f32 %v3338, 0.0
      %v3348 = vmax.f32 %v3343, 0.0
      %s3349 = scalar_lea.vmem %s15, 24
      %v3350 = vld [vmem:[%s3349] sm:$0xff]
      %s3351 = scalar_lea.vmem %s16, 24
      %v3352 = vld [vmem:[%s3351] sm:$0xff]
      %3354 = vset.pattern.permute.xlu0 0
      %3355 = vperm.xlu0 %3354, %v3352
      %v3356 = vpop.permute.xlu0 %3355
      %v3359 = vsel %vm1614, %v3350, 0
      %v3362 = vsel %vm1618, %v3348, 0
      %3364 = vmatprep.subr.mxu0 0.0
      %3365 = vmatpush1.msra.mxu0 %v3346
      %3366 = vmatprep.subr.mxu0 0.0
      %3367 = vmatpush1.msra.mxu0 %v3347
      %3368 = vmatprep.subr.mxu0 0.0
      %3369 = vmatpush1.msra.mxu0 %v3362
      %3370 = vmatprep.subr.mxu0 0.0
      %3371 = vmatpush1.msra.mxu0 0.0
      %3372 = vmatprep.subr.mxu0 0.0
      %3373 = vmatpush1.msra.mxu0 0.0
      %3374 = vmatprep.subr.mxu0 0.0
      %3375 = vmatpush1.msra.mxu0 0.0
      %3376 = vmatprep.subr.mxu0 0.0
      %3377 = vmatpush1.msra.mxu0 0.0
      %3378 = vmatprep.subr.mxu0 0.0
      %3379 = vmatpush1.msra.mxu0 0.0
      %3380 = vmatprep.subr.mxu0 0.0
      %3381 = vmatpush1.msra.mxu0 0.0
      %3382 = vmatprep.subr.mxu0 0.0
      %3383 = vmatpush1.msra.mxu0 0.0
      %3384 = vmatprep.subr.mxu0 0.0
      %3385 = vmatpush1.msra.mxu0 0.0
      %3386 = vmatprep.subr.mxu0 0.0
      %3387 = vmatpush1.msra.mxu0 0.0
      %3388 = vmatprep.subr.mxu0 0.0
      %3389 = vmatpush1.msra.mxu0 0.0
      %3390 = vmatprep.subr.mxu0 0.0
      %3391 = vmatpush1.msra.mxu0 0.0
      %3392 = vmatprep.subr.mxu0 0.0
      %3393 = vmatpush1.msra.mxu0 0.0
      %3394 = vmatprep.subr.mxu0 0.0
      %3395 = vmatpush1.msra.mxu0 0.0
      %3396 = vmatprep.subr.mxu0 0.0
      %3397 = vmatpush1.msra.mxu0 0.0
      %3398 = vmatprep.subr.mxu0 0.0
      %3399 = vmatpush1.msra.mxu0 0.0
      %3400 = vmatprep.subr.mxu0 0.0
      %3401 = vmatpush1.msra.mxu0 0.0
      %3402 = vmatprep.subr.mxu0 0.0
      %3403 = vmatpush1.msra.mxu0 0.0
      %3404 = vmatprep.subr.mxu0 0.0
      %3405 = vmatpush1.msra.mxu0 0.0
      %3406 = vmatprep.subr.mxu0 0.0
      %3407 = vmatpush1.msra.mxu0 0.0
      %3408 = vmatprep.subr.mxu0 0.0
      %3409 = vmatpush1.msra.mxu0 0.0
      %3410 = vmatprep.subr.mxu0 0.0
      %3411 = vmatpush1.msra.mxu0 0.0
      %3412 = vmatprep.subr.mxu0 0.0
      %3413 = vmatpush1.msra.mxu0 0.0
      %3414 = vmatprep.subr.mxu0 0.0
      %3415 = vmatpush1.msra.mxu0 0.0
      %3416 = vmatprep.subr.mxu0 0.0
      %3417 = vmatpush1.msra.mxu0 0.0
      %3418 = vmatprep.subr.mxu0 0.0
      %3419 = vmatpush1.msra.mxu0 0.0
      %3420 = vmatprep.subr.mxu0 0.0
      %3421 = vmatpush1.msra.mxu0 0.0
      %3422 = vmatprep.subr.mxu0 0.0
      %3423 = vmatpush1.msra.mxu0 0.0
      %3424 = vmatprep.subr.mxu0 0.0
      %3425 = vmatpush1.msra.mxu0 0.0
      %3426 = vmatprep.subr.mxu0 0.0
      %3427 = vmatpush1.msra.mxu0 0.0
      %3428 = vmatprep.mubr.f32.mxu0 0.0
      %3429 = vmatmul.mubr.f32.gmra.mrb[0].mxu0 %v3359
      %v3430 = vpop.f32.mrb[0].mxu0
      %v3431 = vadd.f32 %v3356, %v3430
      %v3432 = vpop.f32.mrb[0].mxu0
      %3433 = vdwg.mxu0
      %v3434 = vmax.f32 %v3431, 0.0
      %s3435 = scalar_lea.vmem %s17, 12
      %v3436 = vld [vmem:[%s3435] sm:$0x7]
      %s3437 = scalar_lea.vmem %s18, 12
      %v3438 = vld [vmem:[%s3437] sm:$0x7]
      %3440 = vset.pattern.permute.xlu0 0
      %3441 = vperm.xlu0 %3440, %v3438
      %v3442 = vpop.permute.xlu0 %3441
      %v3445 = vsel %vm1700, %v3436, 0
      %3447 = vmatprep.subr.mxu0 0.0
      %3448 = vmatpush1.msra.mxu0 %v3434
      %3449 = vmatprep.subr.mxu0 0.0
      %3450 = vmatpush1.msra.mxu0 0.0
      %3451 = vmatprep.subr.mxu0 0.0
      %3452 = vmatpush1.msra.mxu0 0.0
      %3453 = vmatprep.subr.mxu0 0.0
      %3454 = vmatpush1.msra.mxu0 0.0
      %3455 = vmatprep.subr.mxu0 0.0
      %3456 = vmatpush1.msra.mxu0 0.0
      %3457 = vmatprep.subr.mxu0 0.0
      %3458 = vmatpush1.msra.mxu0 0.0
      %3459 = vmatprep.subr.mxu0 0.0
      %3460 = vmatpush1.msra.mxu0 0.0
      %3461 = vmatprep.subr.mxu0 0.0
      %3462 = vmatpush1.msra.mxu0 0.0
      %3463 = vmatprep.subr.mxu0 0.0
      %3464 = vmatpush1.msra.mxu0 0.0
      %3465 = vmatprep.subr.mxu0 0.0
      %3466 = vmatpush1.msra.mxu0 0.0
      %3467 = vmatprep.subr.mxu0 0.0
      %3468 = vmatpush1.msra.mxu0 0.0
      %3469 = vmatprep.subr.mxu0 0.0
      %3470 = vmatpush1.msra.mxu0 0.0
      %3471 = vmatprep.subr.mxu0 0.0
      %3472 = vmatpush1.msra.mxu0 0.0
      %3473 = vmatprep.subr.mxu0 0.0
      %3474 = vmatpush1.msra.mxu0 0.0
      %3475 = vmatprep.subr.mxu0 0.0
      %3476 = vmatpush1.msra.mxu0 0.0
      %3477 = vmatprep.subr.mxu0 0.0
      %3478 = vmatpush1.msra.mxu0 0.0
      %3479 = vmatprep.subr.mxu0 0.0
      %3480 = vmatpush1.msra.mxu0 0.0
      %3481 = vmatprep.subr.mxu0 0.0
      %3482 = vmatpush1.msra.mxu0 0.0
      %3483 = vmatprep.subr.mxu0 0.0
      %3484 = vmatpush1.msra.mxu0 0.0
      %3485 = vmatprep.subr.mxu0 0.0
      %3486 = vmatpush1.msra.mxu0 0.0
      %3487 = vmatprep.subr.mxu0 0.0
      %3488 = vmatpush1.msra.mxu0 0.0
      %3489 = vmatprep.subr.mxu0 0.0
      %3490 = vmatpush1.msra.mxu0 0.0
      %3491 = vmatprep.subr.mxu0 0.0
      %3492 = vmatpush1.msra.mxu0 0.0
      %3493 = vmatprep.subr.mxu0 0.0
      %3494 = vmatpush1.msra.mxu0 0.0
      %3495 = vmatprep.subr.mxu0 0.0
      %3496 = vmatpush1.msra.mxu0 0.0
      %3497 = vmatprep.subr.mxu0 0.0
      %3498 = vmatpush1.msra.mxu0 0.0
      %3499 = vmatprep.subr.mxu0 0.0
      %3500 = vmatpush1.msra.mxu0 0.0
      %3501 = vmatprep.subr.mxu0 0.0
      %3502 = vmatpush1.msra.mxu0 0.0
      %3503 = vmatprep.subr.mxu0 0.0
      %3504 = vmatpush1.msra.mxu0 0.0
      %3505 = vmatprep.subr.mxu0 0.0
      %3506 = vmatpush1.msra.mxu0 0.0
      %3507 = vmatprep.subr.mxu0 0.0
      %3508 = vmatpush1.msra.mxu0 0.0
      %3509 = vmatprep.subr.mxu0 0.0
      %3510 = vmatpush1.msra.mxu0 0.0
      %3511 = vmatprep.mubr.f32.mxu0 0.0
      %3512 = vmatmul.mubr.f32.gmra.mrb[0].mxu0 %v3445
      %v3513 = vpop.f32.mrb[0].mxu0
      %v3514 = vadd.f32 %v3442, %v3513
      %v3515 = vpop.f32.mrb[0].mxu0
      %3516 = vdwg.mxu0
      %v3517 = vtanh.pop %v3514
      %v3518 = vmul.f32 %v3517, 2.0
      %3520 = vrot.lane.b32.xlu0 %v2356, 64
      %v3521 = vpop.permute.xlu0 %3520
      %3524 = vrot.lane.b32.xlu0 %v3518, 64
      %v3525 = vpop.permute.xlu0 %3524
      %v3527 = vsel %vm1097, %v1775, %v3521
      %v3528 = vsel %vm1097, %v2937, %v3525
      %v3531 = vcombine.low %v3527, %v3528
      %3533 = vst [vmem:[%s622] sm:$0x77] %v3531
      %p3534 = scmp.lt.s32.totalorder %s30, 1
      %s3535 = scalar_select %p3534, %s30, 1
      %s3536 = smul.addr %s3535, 2
      %s3537 = smul.addr %s3536, 4
      %s3538 = scalar_lea.vmem %s19, %s3537
      // Predicated region
      $region97: #{tpu_custom_call.1} parent=95 // pred_check
        %p3539 = pneg %p457
      $region98: #{tpu_custom_call.1} parent=95 // pred_check_branch
        %3541 = sbr.rel (%p3539) target = $region100
      $region99: #{tpu_custom_call.1} parent=95 // pred_region
        _
      $region100: #{tpu_custom_call.1} parent=95 // pred_fallthru
        _
    $region96: #{tpu_custom_call.1} parent=5 // pred_fallthru
      _
    %p3542 = scmp.le.s32.totalorder 2, %s25
    // Predicated region
    $region101: #{tpu_custom_call.1} parent=5 // pred_check
      %p3543 = pneg %p3542
    $region102: #{tpu_custom_call.1} parent=5 // pred_check_branch
      %3545 = sbr.rel (%p3543) target = $region104
    $region103: #{tpu_custom_call.1} parent=5 // pred_region
      %s3546 = ssub.s32 %s25, 2
      // Predicated region
      $region105: #{tpu_custom_call.1} parent=103 // pred_check
        %p3547 = pneg %p463
      $region106: #{tpu_custom_call.1} parent=103 // pred_check_branch
        %3549 = sbr.rel (%p3547) target = $region108
      $region107: #{tpu_custom_call.1} parent=103 // pred_region
        %p3550 = scmp.lt.s32.totalorder %s31, 1
        %s3551 = scalar_select %p3550, %s31, 1
        %s3552 = smul.addr %s3551, 2
        %s3553 = smul.addr %s3552, 4
        %s3554 = scalar_lea.vmem %s19, %s3553
      $region108: #{tpu_custom_call.1} parent=103 // pred_fallthru
        _
    $region104: #{tpu_custom_call.1} parent=5 // pred_fallthru
      _
  $region6: #{tpu_custom_call.1} parent=0 // loop_footer
    %s29 = sadd.s32 1, %s25
  $region7: #{tpu_custom_call.1} parent=0 // loop_footer_branch
    %24 = sbr.rel target = $region3
  $region8: #{tpu_custom_call.1} parent=0 // loop_exit
    _

</llo_original>
